<compile_context>
chip_gen: v5e
topology: v5e:2x2
jax: 0.10.0
libtpu: 0.0.40
codegen_flags: <defaults>
</compile_context>

<pallas_src>
import jax
import jax.numpy as jnp
from jax import lax
from jax.experimental import pallas as pl
from jax.experimental.pallas import tpu as pltpu

H = 128      # hidden_dim
L = 2        # layer_count
DIN = 1      # input_size
DOUT = 1     # output_size


def _sigmoid(x):
    # Single EUP push (tanh) + cheap VPU ops; mathematically identical to
    # sigmoid, keeps the gate blocks between the on-chain matmuls short.
    return 0.5 * (jnp.tanh(0.5 * x) + 1.0)


def stock_gru_kernel(x_ref, hid_ref,
                     wih0_ref, bih0_ref, whh0_ref, bhh0_ref,
                     wih1_ref, bih1_ref, whh1_ref, bhh1_ref,
                     fcw_ref, fcb_ref,
                     out_ref, hout_ref,
                     gx0_scr, relu_scr):
    # x_ref:   (T, B, DIN)   time-major input
    # hid_ref: (L, B, H)     initial hidden
    # wih0:    (DIN, 3H) bih0: (1, 3H)  whh0: (H, 3H)  bhh0: (1, 3H)
    # wih1:    (H, 3H)   bih1: (1, 3H)  whh1: (H, 3H)  bhh1: (1, 3H)
    # fcw:     (1, H)    fcb:  (1, 1)
    # out_ref: (T, B, DOUT)  hout_ref: (L, B, H)
    # gx0_scr: (T, B, 3H) VMEM scratch, relu_scr: (T, B, H) VMEM scratch
    T = x_ref.shape[0]

    # ---- Hoisted weight/bias loads + one-time bf16 casts of the MXU
    # operands.  Gate math stays f32; only the dot inputs are bf16 so every
    # matmul is a single MXU pass (biggest relative win on v5e). ----
    whh0_bf = whh0_ref[...].astype(jnp.bfloat16)
    whh1_bf = whh1_ref[...].astype(jnp.bfloat16)
    wih1_bf = wih1_ref[...].astype(jnp.bfloat16)
    bhh0 = bhh0_ref[...]
    bhh1 = bhh1_ref[...]
    bih1 = bih1_ref[...]

    # ---- Layer-0 input gates have no hidden-state dependence: compute them
    # for every timestep up front.  (T,B,1) * (1,1,3H) + (1,1,3H) -> (T,B,3H)
    # (For very long T on v7x, recompute per step instead of tracing it.)
    gx0_scr[...] = (x_ref[...] * wih0_ref[...][None]) + bih0_ref[...][None]

    def gru_gates(gx, gh, h_prev):
        r = _sigmoid(gx[:, 0 * H:1 * H] + gh[:, 0 * H:1 * H])
        z = _sigmoid(gx[:, 1 * H:2 * H] + gh[:, 1 * H:2 * H])
        n = jnp.tanh(gx[:, 2 * H:3 * H] + r * gh[:, 2 * H:3 * H])
        return (1.0 - z) * n + z * h_prev

    def rec_dot(h_f32, w_bf, b_f32):
        return jnp.dot(h_f32.astype(jnp.bfloat16), w_bf,
                       preferred_element_type=jnp.float32) + b_f32

    def step(t, carry):
        # gh0_pre / gh1_pre were produced at the END of the previous step
        # (software pipelining of the recurrent matmuls), so the per-step
        # serial chain here is only: gates0 -> gx1 matmul -> gates1.
        h0_prev, h1_prev, gh0_pre, gh1_pre = carry

        h0_new = gru_gates(gx0_scr[t], gh0_pre, h0_prev)

        # gx1 is the only matmul left on the dependent chain.
        gx1 = rec_dot(h0_new, wih1_bf, bih1)
        # Issue next step's layer-0 recurrent matmul immediately (off-chain,
        # hides under gates1 / next step's gates0).
        gh0_next = rec_dot(h0_new, whh0_bf, bhh0)

        # TODO(synk): inter-layer dropout in nn.GRU is a train-time-only op;
        # eval semantics are implemented here.
        h1_new = gru_gates(gx1, gh1_pre, h1_prev)
        # Next step's layer-1 recurrent matmul, also off-chain.
        gh1_next = rec_dot(h1_new, whh1_bf, bhh1)

        # Lane-dense (B, H) store; the 1-lane-wide fc runs after the loop.
        relu_scr[t] = jnp.maximum(h1_new, 0.0)
        return (h0_new, h1_new, gh0_next, gh1_next)

    # Seed the pipelined carries with the t=0 recurrent gates.
    h0_init = hid_ref[0]
    h1_init = hid_ref[1]
    gh0_init = rec_dot(h0_init, whh0_bf, bhh0)
    gh1_init = rec_dot(h1_init, whh1_bf, bhh1)

    # Static trip count: fully unroll small/medium T so the LLO scheduler can
    # overlap the carried matmuls with the next step's gate math.
    unroll = True if T <= 64 else 8
    h0_fin, h1_fin, _, _ = lax.fori_loop(
        0, T, step, (h0_init, h1_init, gh0_init, gh1_init), unroll=unroll)

    hout_ref[0] = h0_fin
    hout_ref[1] = h1_fin

    # fc(relu(out_gru)) with out_features=1: one batched lane reduction over
    # the whole trace instead of T masked 1-lane stores inside the loop.
    out_ref[...] = (jnp.sum(relu_scr[...] * fcw_ref[...][None],
                            axis=-1, keepdims=True)
                    + fcb_ref[...][None])


def init_params(key):
    """PyTorch-style uniform(-1/sqrt(H), 1/sqrt(H)) init, deterministic."""
    k = 1.0 / jnp.sqrt(jnp.float32(H))
    keys = jax.random.split(key, 10)

    def u(kk, shape):
        return jax.random.uniform(kk, shape, jnp.float32, -k, k)

    wih0 = u(keys[0], (3 * H, DIN))
    whh0 = u(keys[1], (3 * H, H))
    bih0 = u(keys[2], (3 * H,))
    bhh0 = u(keys[3], (3 * H,))
    wih1 = u(keys[4], (3 * H, H))
    whh1 = u(keys[5], (3 * H, H))
    bih1 = u(keys[6], (3 * H,))
    bhh1 = u(keys[7], (3 * H,))
    fcw = u(keys[8], (DOUT, H))
    fcb = u(keys[9], (DOUT,))
    return dict(
        wih0T=wih0.T, bih0=bih0.reshape(1, 3 * H),
        whh0T=whh0.T, bhh0=bhh0.reshape(1, 3 * H),
        wih1T=wih1.T, bih1=bih1.reshape(1, 3 * H),
        whh1T=whh1.T, bhh1=bhh1.reshape(1, 3 * H),
        fcw=fcw, fcb=fcb.reshape(1, DOUT),
    )


def stock_gru_forward(data, hidden, p):
    """data: (B, T, 1) batch_first; hidden: (L, B, H). Returns (out, hidden)."""
    B, T, _ = data.shape
    x_tm = jnp.transpose(data, (1, 0, 2)).astype(jnp.float32)   # (T, B, DIN)
    vmem = pl.BlockSpec(memory_space=pltpu.MemorySpace.VMEM)

    out_tm, h_out = pl.pallas_call(
        stock_gru_kernel,
        out_shape=(jax.ShapeDtypeStruct((T, B, DOUT), jnp.float32),
                   jax.ShapeDtypeStruct((L, B, H), jnp.float32)),
        in_specs=[vmem] * 12,
        out_specs=(vmem, vmem),
        scratch_shapes=[pltpu.VMEM((T, B, 3 * H), jnp.float32),   # gx0 trace
                        pltpu.VMEM((T, B, H), jnp.float32)],      # relu(h1) trace
    )(x_tm, hidden.astype(jnp.float32),
      p['wih0T'], p['bih0'], p['whh0T'], p['bhh0'],
      p['wih1T'], p['bih1'], p['whh1T'], p['bhh1'],
      p['fcw'], p['fcb'])

    return jnp.transpose(out_tm, (1, 0, 2)), h_out   # (B, T, 1), (L, B, H)


def stock_gru_reference(data, hidden, p):
    """Pure-JAX f32 reference of the same forward (eval-mode nn.GRU + fc(relu))."""
    B, T, _ = data.shape
    h0, h1 = hidden[0], hidden[1]

    def cell(gx, h, whhT, bhh):
        gh = h @ whhT + bhh
        r = jax.nn.sigmoid(gx[:, :H] + gh[:, :H])
        z = jax.nn.sigmoid(gx[:, H:2 * H] + gh[:, H:2 * H])
        n = jnp.tanh(gx[:, 2 * H:] + r * gh[:, 2 * H:])
        return (1.0 - z) * n + z * h

    outs = []
    for t in range(T):
        x_t = data[:, t, :]
        h0 = cell(x_t @ p['wih0T'] + p['bih0'], h0, p['whh0T'], p['bhh0'])
        h1 = cell(h0 @ p['wih1T'] + p['bih1'], h1, p['whh1T'], p['bhh1'])
        outs.append(jnp.maximum(h1, 0.0) @ p['fcw'].T + p['fcb'])
    return jnp.stack(outs, axis=1), jnp.stack([h0, h1], axis=0)


if __name__ == "__main__":
    key = jax.random.PRNGKey(0)
    k_param, k_data = jax.random.split(key)

    B, T = 2, 8
    params = init_params(k_param)
    data = jax.random.normal(k_data, (B, T, DIN), dtype=jnp.float32)
    hidden = jnp.zeros((L, B, H), dtype=jnp.float32)   # init_hidden()

    out, h_out = jax.block_until_ready(stock_gru_forward(data, hidden, params))

    out_ref, h_ref = stock_gru_reference(data, hidden, params)
    assert out.shape == (B, T, DOUT) and h_out.shape == (L, B, H)
    # Tolerance relaxed vs the pure-f32 version: the kernel uses bf16 operands
    # at the MXU (f32 accumulation, f32 gate math), the reference is all-f32.
    assert jnp.allclose(out, out_ref, atol=2e-2, rtol=2e-2)
    assert jnp.allclose(h_out, h_ref, atol=2e-2, rtol=2e-2)

    print("KERNEL_OK")
</pallas_src>

<mosaic_0001>
module attributes {stable_mosaic.version = 11 : i64} {
  func.func @stock_gru_kernel(%arg0: memref<8x2x1xf32, #tpu.memory_space<vmem>>, %arg1: memref<2x2x128xf32, #tpu.memory_space<vmem>>, %arg2: memref<1x384xf32, #tpu.memory_space<vmem>>, %arg3: memref<1x384xf32, #tpu.memory_space<vmem>>, %arg4: memref<128x384xf32, #tpu.memory_space<vmem>>, %arg5: memref<1x384xf32, #tpu.memory_space<vmem>>, %arg6: memref<128x384xf32, #tpu.memory_space<vmem>>, %arg7: memref<1x384xf32, #tpu.memory_space<vmem>>, %arg8: memref<128x384xf32, #tpu.memory_space<vmem>>, %arg9: memref<1x384xf32, #tpu.memory_space<vmem>>, %arg10: memref<1x128xf32, #tpu.memory_space<vmem>>, %arg11: memref<1x1xf32, #tpu.memory_space<vmem>>, %arg12: memref<8x2x1xf32, #tpu.memory_space<vmem>>, %arg13: memref<2x2x128xf32, #tpu.memory_space<vmem>>, %arg14: memref<8x2x384xf32, #tpu.memory_space<vmem>>, %arg15: memref<8x2x128xf32, #tpu.memory_space<vmem>>) attributes {dimension_semantics = [], scalar_prefetch = 0 : i64, scratch_operands = 2 : i64, tpu.core_type = #tpu.core_type<tc>} {
    %c0 = arith.constant 0 : index
    %c0_0 = arith.constant 0 : index
    %0 = vector.load %arg4[%c0, %c0_0] : memref<128x384xf32, #tpu.memory_space<vmem>>, vector<128x384xf32>
    %1 = arith.truncf %0 : vector<128x384xf32> to vector<128x384xbf16>
    %c0_1 = arith.constant 0 : index
    %c0_2 = arith.constant 0 : index
    %2 = vector.load %arg8[%c0_1, %c0_2] : memref<128x384xf32, #tpu.memory_space<vmem>>, vector<128x384xf32>
    %3 = arith.truncf %2 : vector<128x384xf32> to vector<128x384xbf16>
    %c0_3 = arith.constant 0 : index
    %c0_4 = arith.constant 0 : index
    %4 = vector.load %arg6[%c0_3, %c0_4] : memref<128x384xf32, #tpu.memory_space<vmem>>, vector<128x384xf32>
    %5 = arith.truncf %4 : vector<128x384xf32> to vector<128x384xbf16>
    %c0_5 = arith.constant 0 : index
    %c0_6 = arith.constant 0 : index
    %6 = vector.load %arg5[%c0_5, %c0_6] : memref<1x384xf32, #tpu.memory_space<vmem>>, vector<1x384xf32>
    %c0_7 = arith.constant 0 : index
    %c0_8 = arith.constant 0 : index
    %7 = vector.load %arg9[%c0_7, %c0_8] : memref<1x384xf32, #tpu.memory_space<vmem>>, vector<1x384xf32>
    %c0_9 = arith.constant 0 : index
    %c0_10 = arith.constant 0 : index
    %8 = vector.load %arg7[%c0_9, %c0_10] : memref<1x384xf32, #tpu.memory_space<vmem>>, vector<1x384xf32>
    %c0_11 = arith.constant 0 : index
    %c0_12 = arith.constant 0 : index
    %c0_13 = arith.constant 0 : index
    %9 = vector.load %arg0[%c0_11, %c0_12, %c0_13] : memref<8x2x1xf32, #tpu.memory_space<vmem>>, vector<8x2x1xf32>
    %c0_14 = arith.constant 0 : index
    %c0_15 = arith.constant 0 : index
    %10 = vector.load %arg2[%c0_14, %c0_15] : memref<1x384xf32, #tpu.memory_space<vmem>>, vector<1x384xf32>
    %11 = vector.shape_cast %10 : vector<1x384xf32> to vector<1x1x384xf32>
    %12 = vector.broadcast %9 : vector<8x2x1xf32> to vector<8x2x384xf32>
    %13 = vector.broadcast %11 : vector<1x1x384xf32> to vector<8x2x384xf32>
    %14 = arith.mulf %12, %13 : vector<8x2x384xf32>
    %c0_16 = arith.constant 0 : index
    %c0_17 = arith.constant 0 : index
    %15 = vector.load %arg3[%c0_16, %c0_17] : memref<1x384xf32, #tpu.memory_space<vmem>>, vector<1x384xf32>
    %16 = vector.shape_cast %15 : vector<1x384xf32> to vector<1x1x384xf32>
    %17 = vector.broadcast %16 : vector<1x1x384xf32> to vector<8x2x384xf32>
    %18 = arith.addf %14, %17 : vector<8x2x384xf32>
    %c0_18 = arith.constant 0 : index
    %c0_19 = arith.constant 0 : index
    %c0_20 = arith.constant 0 : index
    %19 = vector.load %arg14[%c0_18, %c0_19, %c0_20] : memref<8x2x384xf32, #tpu.memory_space<vmem>>, vector<8x2x384xf32>
    tpu.vector_store %arg14[%c0_18, %c0_19, %c0_20], %18 {strides = array<i32>} : memref<8x2x384xf32, #tpu.memory_space<vmem>>, vector<8x2x384xf32>,
    %c0_21 = arith.constant 0 : index
    %c0_22 = arith.constant 0 : index
    %c0_23 = arith.constant 0 : index
    %20 = vector.load %arg1[%c0_21, %c0_22, %c0_23] : memref<2x2x128xf32, #tpu.memory_space<vmem>>, vector<1x2x128xf32>
    %21 = vector.shape_cast %20 : vector<1x2x128xf32> to vector<2x128xf32>
    %c1 = arith.constant 1 : index
    %c0_24 = arith.constant 0 : index
    %c0_25 = arith.constant 0 : index
    %22 = vector.load %arg1[%c1, %c0_24, %c0_25] : memref<2x2x128xf32, #tpu.memory_space<vmem>>, vector<1x2x128xf32>
    %23 = vector.shape_cast %22 : vector<1x2x128xf32> to vector<2x128xf32>
    %24 = arith.truncf %21 : vector<2x128xf32> to vector<2x128xbf16>
    %cst = arith.constant dense<0.000000e+00> : vector<2x384xf32>
    %25 = tpu.matmul %24, %1, %cst {dimension_numbers = #tpu.dot_dimension_numbers<[1], [0], [0], [1], [0, 0, 1, 1], [], []>} : vector<2x128xbf16>, vector<128x384xbf16>, vector<2x384xf32> -> vector<2x384xf32>
    %26 = vector.broadcast %6 : vector<1x384xf32> to vector<2x384xf32>
    %27 = arith.addf %25, %26 : vector<2x384xf32>
    %28 = arith.truncf %23 : vector<2x128xf32> to vector<2x128xbf16>
    %cst_26 = arith.constant dense<0.000000e+00> : vector<2x384xf32>
    %29 = tpu.matmul %28, %3, %cst_26 {dimension_numbers = #tpu.dot_dimension_numbers<[1], [0], [0], [1], [0, 0, 1, 1], [], []>} : vector<2x128xbf16>, vector<128x384xbf16>, vector<2x384xf32> -> vector<2x384xf32>
    %30 = vector.broadcast %7 : vector<1x384xf32> to vector<2x384xf32>
    %31 = arith.addf %29, %30 : vector<2x384xf32>
    %c0_i32 = arith.constant 0 : i32
    %32 = arith.index_cast %c0_i32 : i32 to index
    %c0_27 = arith.constant 0 : index
    %c0_28 = arith.constant 0 : index
    %33 = vector.load %arg14[%32, %c0_27, %c0_28] : memref<8x2x384xf32, #tpu.memory_space<vmem>>, vector<1x2x384xf32>
    %34 = vector.shape_cast %33 : vector<1x2x384xf32> to vector<2x384xf32>
    %35 = vector.extract_strided_slice %34 {offsets = [0, 0], sizes = [2, 128], strides = [1, 1]} : vector<2x384xf32> to vector<2x128xf32>
    %36 = vector.extract_strided_slice %27 {offsets = [0, 0], sizes = [2, 128], strides = [1, 1]} : vector<2x384xf32> to vector<2x128xf32>
    %37 = arith.addf %35, %36 : vector<2x128xf32>
    %cst_29 = arith.constant 5.000000e-01 : f32
    %38 = vector.broadcast %cst_29 : f32 to vector<2x128xf32>
    %39 = arith.mulf %38, %37 : vector<2x128xf32>
    %40 = math.tanh %39 : vector<2x128xf32>
    %cst_30 = arith.constant 1.000000e+00 : f32
    %41 = vector.broadcast %cst_30 : f32 to vector<2x128xf32>
    %42 = arith.addf %40, %41 : vector<2x128xf32>
    %cst_31 = arith.constant 5.000000e-01 : f32
    %43 = vector.broadcast %cst_31 : f32 to vector<2x128xf32>
    %44 = arith.mulf %43, %42 : vector<2x128xf32>
    %45 = vector.extract_strided_slice %34 {offsets = [0, 128], sizes = [2, 128], strides = [1, 1]} : vector<2x384xf32> to vector<2x128xf32>
    %46 = vector.extract_strided_slice %27 {offsets = [0, 128], sizes = [2, 128], strides = [1, 1]} : vector<2x384xf32> to vector<2x128xf32>
    %47 = arith.addf %45, %46 : vector<2x128xf32>
    %cst_32 = arith.constant 5.000000e-01 : f32
    %48 = vector.broadcast %cst_32 : f32 to vector<2x128xf32>
    %49 = arith.mulf %48, %47 : vector<2x128xf32>
    %50 = math.tanh %49 : vector<2x128xf32>
    %cst_33 = arith.constant 1.000000e+00 : f32
    %51 = vector.broadcast %cst_33 : f32 to vector<2x128xf32>
    %52 = arith.addf %50, %51 : vector<2x128xf32>
    %cst_34 = arith.constant 5.000000e-01 : f32
    %53 = vector.broadcast %cst_34 : f32 to vector<2x128xf32>
    %54 = arith.mulf %53, %52 : vector<2x128xf32>
    %55 = vector.extract_strided_slice %34 {offsets = [0, 256], sizes = [2, 128], strides = [1, 1]} : vector<2x384xf32> to vector<2x128xf32>
    %56 = vector.extract_strided_slice %27 {offsets = [0, 256], sizes = [2, 128], strides = [1, 1]} : vector<2x384xf32> to vector<2x128xf32>
    %57 = arith.mulf %44, %56 : vector<2x128xf32>
    %58 = arith.addf %55, %57 : vector<2x128xf32>
    %59 = math.tanh %58 : vector<2x128xf32>
    %cst_35 = arith.constant 1.000000e+00 : f32
    %60 = vector.broadcast %cst_35 : f32 to vector<2x128xf32>
    %61 = arith.subf %60, %54 : vector<2x128xf32>
    %62 = arith.mulf %61, %59 : vector<2x128xf32>
    %63 = arith.mulf %54, %21 : vector<2x128xf32>
    %64 = arith.addf %62, %63 : vector<2x128xf32>
    %65 = arith.truncf %64 : vector<2x128xf32> to vector<2x128xbf16>
    %cst_36 = arith.constant dense<0.000000e+00> : vector<2x384xf32>
    %66 = tpu.matmul %65, %5, %cst_36 {dimension_numbers = #tpu.dot_dimension_numbers<[1], [0], [0], [1], [0, 0, 1, 1], [], []>} : vector<2x128xbf16>, vector<128x384xbf16>, vector<2x384xf32> -> vector<2x384xf32>
    %67 = vector.broadcast %8 : vector<1x384xf32> to vector<2x384xf32>
    %68 = arith.addf %66, %67 : vector<2x384xf32>
    %69 = arith.truncf %64 : vector<2x128xf32> to vector<2x128xbf16>
    %cst_37 = arith.constant dense<0.000000e+00> : vector<2x384xf32>
    %70 = tpu.matmul %69, %1, %cst_37 {dimension_numbers = #tpu.dot_dimension_numbers<[1], [0], [0], [1], [0, 0, 1, 1], [], []>} : vector<2x128xbf16>, vector<128x384xbf16>, vector<2x384xf32> -> vector<2x384xf32>
    %71 = vector.broadcast %6 : vector<1x384xf32> to vector<2x384xf32>
    %72 = arith.addf %70, %71 : vector<2x384xf32>
    %73 = vector.extract_strided_slice %68 {offsets = [0, 0], sizes = [2, 128], strides = [1, 1]} : vector<2x384xf32> to vector<2x128xf32>
    %74 = vector.extract_strided_slice %31 {offsets = [0, 0], sizes = [2, 128], strides = [1, 1]} : vector<2x384xf32> to vector<2x128xf32>
    %75 = arith.addf %73, %74 : vector<2x128xf32>
    %cst_38 = arith.constant 5.000000e-01 : f32
    %76 = vector.broadcast %cst_38 : f32 to vector<2x128xf32>
    %77 = arith.mulf %76, %75 : vector<2x128xf32>
    %78 = math.tanh %77 : vector<2x128xf32>
    %cst_39 = arith.constant 1.000000e+00 : f32
    %79 = vector.broadcast %cst_39 : f32 to vector<2x128xf32>
    %80 = arith.addf %78, %79 : vector<2x128xf32>
    %cst_40 = arith.constant 5.000000e-01 : f32
    %81 = vector.broadcast %cst_40 : f32 to vector<2x128xf32>
    %82 = arith.mulf %81, %80 : vector<2x128xf32>
    %83 = vector.extract_strided_slice %68 {offsets = [0, 128], sizes = [2, 128], strides = [1, 1]} : vector<2x384xf32> to vector<2x128xf32>
    %84 = vector.extract_strided_slice %31 {offsets = [0, 128], sizes = [2, 128], strides = [1, 1]} : vector<2x384xf32> to vector<2x128xf32>
    %85 = arith.addf %83, %84 : vector<2x128xf32>
    %cst_41 = arith.constant 5.000000e-01 : f32
    %86 = vector.broadcast %cst_41 : f32 to vector<2x128xf32>
    %87 = arith.mulf %86, %85 : vector<2x128xf32>
    %88 = math.tanh %87 : vector<2x128xf32>
    %cst_42 = arith.constant 1.000000e+00 : f32
    %89 = vector.broadcast %cst_42 : f32 to vector<2x128xf32>
    %90 = arith.addf %88, %89 : vector<2x128xf32>
    %cst_43 = arith.constant 5.000000e-01 : f32
    %91 = vector.broadcast %cst_43 : f32 to vector<2x128xf32>
    %92 = arith.mulf %91, %90 : vector<2x128xf32>
    %93 = vector.extract_strided_slice %68 {offsets = [0, 256], sizes = [2, 128], strides = [1, 1]} : vector<2x384xf32> to vector<2x128xf32>
    %94 = vector.extract_strided_slice %31 {offsets = [0, 256], sizes = [2, 128], strides = [1, 1]} : vector<2x384xf32> to vector<2x128xf32>
    %95 = arith.mulf %82, %94 : vector<2x128xf32>
    %96 = arith.addf %93, %95 : vector<2x128xf32>
    %97 = math.tanh %96 : vector<2x128xf32>
    %cst_44 = arith.constant 1.000000e+00 : f32
    %98 = vector.broadcast %cst_44 : f32 to vector<2x128xf32>
    %99 = arith.subf %98, %92 : vector<2x128xf32>
    %100 = arith.mulf %99, %97 : vector<2x128xf32>
    %101 = arith.mulf %92, %23 : vector<2x128xf32>
    %102 = arith.addf %100, %101 : vector<2x128xf32>
    %103 = arith.truncf %102 : vector<2x128xf32> to vector<2x128xbf16>
    %cst_45 = arith.constant dense<0.000000e+00> : vector<2x384xf32>
    %104 = tpu.matmul %103, %3, %cst_45 {dimension_numbers = #tpu.dot_dimension_numbers<[1], [0], [0], [1], [0, 0, 1, 1], [], []>} : vector<2x128xbf16>, vector<128x384xbf16>, vector<2x384xf32> -> vector<2x384xf32>
    %105 = vector.broadcast %7 : vector<1x384xf32> to vector<2x384xf32>
    %106 = arith.addf %104, %105 : vector<2x384xf32>
    %cst_46 = arith.constant 0.000000e+00 : f32
    %107 = vector.broadcast %cst_46 : f32 to vector<2x128xf32>
    %108 = arith.maximumf %102, %107 : vector<2x128xf32>
    %109 = arith.index_cast %c0_i32 : i32 to index
    %c0_47 = arith.constant 0 : index
    %c0_48 = arith.constant 0 : index
    %110 = vector.load %arg15[%109, %c0_47, %c0_48] : memref<8x2x128xf32, #tpu.memory_space<vmem>>, vector<1x2x128xf32>
    %111 = vector.shape_cast %110 : vector<1x2x128xf32> to vector<2x128xf32>
    %112 = vector.shape_cast %108 : vector<2x128xf32> to vector<1x2x128xf32>
    tpu.vector_store %arg15[%109, %c0_47, %c0_48], %112 {strides = array<i32>} : memref<8x2x128xf32, #tpu.memory_space<vmem>>, vector<1x2x128xf32>,
    %c1_i32 = arith.constant 1 : i32
    %113 = arith.index_cast %c1_i32 : i32 to index
    %c0_49 = arith.constant 0 : index
    %c0_50 = arith.constant 0 : index
    %114 = vector.load %arg14[%113, %c0_49, %c0_50] : memref<8x2x384xf32, #tpu.memory_space<vmem>>, vector<1x2x384xf32>
    %115 = vector.shape_cast %114 : vector<1x2x384xf32> to vector<2x384xf32>
    %116 = vector.extract_strided_slice %115 {offsets = [0, 0], sizes = [2, 128], strides = [1, 1]} : vector<2x384xf32> to vector<2x128xf32>
    %117 = vector.extract_strided_slice %72 {offsets = [0, 0], sizes = [2, 128], strides = [1, 1]} : vector<2x384xf32> to vector<2x128xf32>
    %118 = arith.addf %116, %117 : vector<2x128xf32>
    %cst_51 = arith.constant 5.000000e-01 : f32
    %119 = vector.broadcast %cst_51 : f32 to vector<2x128xf32>
    %120 = arith.mulf %119, %118 : vector<2x128xf32>
    %121 = math.tanh %120 : vector<2x128xf32>
    %cst_52 = arith.constant 1.000000e+00 : f32
    %122 = vector.broadcast %cst_52 : f32 to vector<2x128xf32>
    %123 = arith.addf %121, %122 : vector<2x128xf32>
    %cst_53 = arith.constant 5.000000e-01 : f32
    %124 = vector.broadcast %cst_53 : f32 to vector<2x128xf32>
    %125 = arith.mulf %124, %123 : vector<2x128xf32>
    %126 = vector.extract_strided_slice %115 {offsets = [0, 128], sizes = [2, 128], strides = [1, 1]} : vector<2x384xf32> to vector<2x128xf32>
    %127 = vector.extract_strided_slice %72 {offsets = [0, 128], sizes = [2, 128], strides = [1, 1]} : vector<2x384xf32> to vector<2x128xf32>
    %128 = arith.addf %126, %127 : vector<2x128xf32>
    %cst_54 = arith.constant 5.000000e-01 : f32
    %129 = vector.broadcast %cst_54 : f32 to vector<2x128xf32>
    %130 = arith.mulf %129, %128 : vector<2x128xf32>
    %131 = math.tanh %130 : vector<2x128xf32>
    %cst_55 = arith.constant 1.000000e+00 : f32
    %132 = vector.broadcast %cst_55 : f32 to vector<2x128xf32>
    %133 = arith.addf %131, %132 : vector<2x128xf32>
    %cst_56 = arith.constant 5.000000e-01 : f32
    %134 = vector.broadcast %cst_56 : f32 to vector<2x128xf32>
    %135 = arith.mulf %134, %133 : vector<2x128xf32>
    %136 = vector.extract_strided_slice %115 {offsets = [0, 256], sizes = [2, 128], strides = [1, 1]} : vector<2x384xf32> to vector<2x128xf32>
    %137 = vector.extract_strided_slice %72 {offsets = [0, 256], sizes = [2, 128], strides = [1, 1]} : vector<2x384xf32> to vector<2x128xf32>
    %138 = arith.mulf %125, %137 : vector<2x128xf32>
    %139 = arith.addf %136, %138 : vector<2x128xf32>
    %140 = math.tanh %139 : vector<2x128xf32>
    %cst_57 = arith.constant 1.000000e+00 : f32
    %141 = vector.broadcast %cst_57 : f32 to vector<2x128xf32>
    %142 = arith.subf %141, %135 : vector<2x128xf32>
    %143 = arith.mulf %142, %140 : vector<2x128xf32>
    %144 = arith.mulf %135, %64 : vector<2x128xf32>
    %145 = arith.addf %143, %144 : vector<2x128xf32>
    %146 = arith.truncf %145 : vector<2x128xf32> to vector<2x128xbf16>
    %cst_58 = arith.constant dense<0.000000e+00> : vector<2x384xf32>
    %147 = tpu.matmul %146, %5, %cst_58 {dimension_numbers = #tpu.dot_dimension_numbers<[1], [0], [0], [1], [0, 0, 1, 1], [], []>} : vector<2x128xbf16>, vector<128x384xbf16>, vector<2x384xf32> -> vector<2x384xf32>
    %148 = vector.broadcast %8 : vector<1x384xf32> to vector<2x384xf32>
    %149 = arith.addf %147, %148 : vector<2x384xf32>
    %150 = arith.truncf %145 : vector<2x128xf32> to vector<2x128xbf16>
    %cst_59 = arith.constant dense<0.000000e+00> : vector<2x384xf32>
    %151 = tpu.matmul %150, %1, %cst_59 {dimension_numbers = #tpu.dot_dimension_numbers<[1], [0], [0], [1], [0, 0, 1, 1], [], []>} : vector<2x128xbf16>, vector<128x384xbf16>, vector<2x384xf32> -> vector<2x384xf32>
    %152 = vector.broadcast %6 : vector<1x384xf32> to vector<2x384xf32>
    %153 = arith.addf %151, %152 : vector<2x384xf32>
    %154 = vector.extract_strided_slice %149 {offsets = [0, 0], sizes = [2, 128], strides = [1, 1]} : vector<2x384xf32> to vector<2x128xf32>
    %155 = vector.extract_strided_slice %106 {offsets = [0, 0], sizes = [2, 128], strides = [1, 1]} : vector<2x384xf32> to vector<2x128xf32>
    %156 = arith.addf %154, %155 : vector<2x128xf32>
    %cst_60 = arith.constant 5.000000e-01 : f32
    %157 = vector.broadcast %cst_60 : f32 to vector<2x128xf32>
    %158 = arith.mulf %157, %156 : vector<2x128xf32>
    %159 = math.tanh %158 : vector<2x128xf32>
    %cst_61 = arith.constant 1.000000e+00 : f32
    %160 = vector.broadcast %cst_61 : f32 to vector<2x128xf32>
    %161 = arith.addf %159, %160 : vector<2x128xf32>
    %cst_62 = arith.constant 5.000000e-01 : f32
    %162 = vector.broadcast %cst_62 : f32 to vector<2x128xf32>
    %163 = arith.mulf %162, %161 : vector<2x128xf32>
    %164 = vector.extract_strided_slice %149 {offsets = [0, 128], sizes = [2, 128], strides = [1, 1]} : vector<2x384xf32> to vector<2x128xf32>
    %165 = vector.extract_strided_slice %106 {offsets = [0, 128], sizes = [2, 128], strides = [1, 1]} : vector<2x384xf32> to vector<2x128xf32>
    %166 = arith.addf %164, %165 : vector<2x128xf32>
    %cst_63 = arith.constant 5.000000e-01 : f32
    %167 = vector.broadcast %cst_63 : f32 to vector<2x128xf32>
    %168 = arith.mulf %167, %166 : vector<2x128xf32>
    %169 = math.tanh %168 : vector<2x128xf32>
    %cst_64 = arith.constant 1.000000e+00 : f32
    %170 = vector.broadcast %cst_64 : f32 to vector<2x128xf32>
    %171 = arith.addf %169, %170 : vector<2x128xf32>
    %cst_65 = arith.constant 5.000000e-01 : f32
    %172 = vector.broadcast %cst_65 : f32 to vector<2x128xf32>
    %173 = arith.mulf %172, %171 : vector<2x128xf32>
    %174 = vector.extract_strided_slice %149 {offsets = [0, 256], sizes = [2, 128], strides = [1, 1]} : vector<2x384xf32> to vector<2x128xf32>
    %175 = vector.extract_strided_slice %106 {offsets = [0, 256], sizes = [2, 128], strides = [1, 1]} : vector<2x384xf32> to vector<2x128xf32>
    %176 = arith.mulf %163, %175 : vector<2x128xf32>
    %177 = arith.addf %174, %176 : vector<2x128xf32>
    %178 = math.tanh %177 : vector<2x128xf32>
    %cst_66 = arith.constant 1.000000e+00 : f32
    %179 = vector.broadcast %cst_66 : f32 to vector<2x128xf32>
    %180 = arith.subf %179, %173 : vector<2x128xf32>
    %181 = arith.mulf %180, %178 : vector<2x128xf32>
    %182 = arith.mulf %173, %102 : vector<2x128xf32>
    %183 = arith.addf %181, %182 : vector<2x128xf32>
    %184 = arith.truncf %183 : vector<2x128xf32> to vector<2x128xbf16>
    %cst_67 = arith.constant dense<0.000000e+00> : vector<2x384xf32>
    %185 = tpu.matmul %184, %3, %cst_67 {dimension_numbers = #tpu.dot_dimension_numbers<[1], [0], [0], [1], [0, 0, 1, 1], [], []>} : vector<2x128xbf16>, vector<128x384xbf16>, vector<2x384xf32> -> vector<2x384xf32>
    %186 = vector.broadcast %7 : vector<1x384xf32> to vector<2x384xf32>
    %187 = arith.addf %185, %186 : vector<2x384xf32>
    %cst_68 = arith.constant 0.000000e+00 : f32
    %188 = vector.broadcast %cst_68 : f32 to vector<2x128xf32>
    %189 = arith.maximumf %183, %188 : vector<2x128xf32>
    %190 = arith.index_cast %c1_i32 : i32 to index
    %c0_69 = arith.constant 0 : index
    %c0_70 = arith.constant 0 : index
    %191 = vector.load %arg15[%190, %c0_69, %c0_70] : memref<8x2x128xf32, #tpu.memory_space<vmem>>, vector<1x2x128xf32>
    %192 = vector.shape_cast %191 : vector<1x2x128xf32> to vector<2x128xf32>
    %193 = vector.shape_cast %189 : vector<2x128xf32> to vector<1x2x128xf32>
    tpu.vector_store %arg15[%190, %c0_69, %c0_70], %193 {strides = array<i32>} : memref<8x2x128xf32, #tpu.memory_space<vmem>>, vector<1x2x128xf32>,
    %c2_i32 = arith.constant 2 : i32
    %194 = arith.index_cast %c2_i32 : i32 to index
    %c0_71 = arith.constant 0 : index
    %c0_72 = arith.constant 0 : index
    %195 = vector.load %arg14[%194, %c0_71, %c0_72] : memref<8x2x384xf32, #tpu.memory_space<vmem>>, vector<1x2x384xf32>
    %196 = vector.shape_cast %195 : vector<1x2x384xf32> to vector<2x384xf32>
    %197 = vector.extract_strided_slice %196 {offsets = [0, 0], sizes = [2, 128], strides = [1, 1]} : vector<2x384xf32> to vector<2x128xf32>
    %198 = vector.extract_strided_slice %153 {offsets = [0, 0], sizes = [2, 128], strides = [1, 1]} : vector<2x384xf32> to vector<2x128xf32>
    %199 = arith.addf %197, %198 : vector<2x128xf32>
    %cst_73 = arith.constant 5.000000e-01 : f32
    %200 = vector.broadcast %cst_73 : f32 to vector<2x128xf32>
    %201 = arith.mulf %200, %199 : vector<2x128xf32>
    %202 = math.tanh %201 : vector<2x128xf32>
    %cst_74 = arith.constant 1.000000e+00 : f32
    %203 = vector.broadcast %cst_74 : f32 to vector<2x128xf32>
    %204 = arith.addf %202, %203 : vector<2x128xf32>
    %cst_75 = arith.constant 5.000000e-01 : f32
    %205 = vector.broadcast %cst_75 : f32 to vector<2x128xf32>
    %206 = arith.mulf %205, %204 : vector<2x128xf32>
    %207 = vector.extract_strided_slice %196 {offsets = [0, 128], sizes = [2, 128], strides = [1, 1]} : vector<2x384xf32> to vector<2x128xf32>
    %208 = vector.extract_strided_slice %153 {offsets = [0, 128], sizes = [2, 128], strides = [1, 1]} : vector<2x384xf32> to vector<2x128xf32>
    %209 = arith.addf %207, %208 : vector<2x128xf32>
    %cst_76 = arith.constant 5.000000e-01 : f32
    %210 = vector.broadcast %cst_76 : f32 to vector<2x128xf32>
    %211 = arith.mulf %210, %209 : vector<2x128xf32>
    %212 = math.tanh %211 : vector<2x128xf32>
    %cst_77 = arith.constant 1.000000e+00 : f32
    %213 = vector.broadcast %cst_77 : f32 to vector<2x128xf32>
    %214 = arith.addf %212, %213 : vector<2x128xf32>
    %cst_78 = arith.constant 5.000000e-01 : f32
    %215 = vector.broadcast %cst_78 : f32 to vector<2x128xf32>
    %216 = arith.mulf %215, %214 : vector<2x128xf32>
    %217 = vector.extract_strided_slice %196 {offsets = [0, 256], sizes = [2, 128], strides = [1, 1]} : vector<2x384xf32> to vector<2x128xf32>
    %218 = vector.extract_strided_slice %153 {offsets = [0, 256], sizes = [2, 128], strides = [1, 1]} : vector<2x384xf32> to vector<2x128xf32>
    %219 = arith.mulf %206, %218 : vector<2x128xf32>
    %220 = arith.addf %217, %219 : vector<2x128xf32>
    %221 = math.tanh %220 : vector<2x128xf32>
    %cst_79 = arith.constant 1.000000e+00 : f32
    %222 = vector.broadcast %cst_79 : f32 to vector<2x128xf32>
    %223 = arith.subf %222, %216 : vector<2x128xf32>
    %224 = arith.mulf %223, %221 : vector<2x128xf32>
    %225 = arith.mulf %216, %145 : vector<2x128xf32>
    %226 = arith.addf %224, %225 : vector<2x128xf32>
    %227 = arith.truncf %226 : vector<2x128xf32> to vector<2x128xbf16>
    %cst_80 = arith.constant dense<0.000000e+00> : vector<2x384xf32>
    %228 = tpu.matmul %227, %5, %cst_80 {dimension_numbers = #tpu.dot_dimension_numbers<[1], [0], [0], [1], [0, 0, 1, 1], [], []>} : vector<2x128xbf16>, vector<128x384xbf16>, vector<2x384xf32> -> vector<2x384xf32>
    %229 = vector.broadcast %8 : vector<1x384xf32> to vector<2x384xf32>
    %230 = arith.addf %228, %229 : vector<2x384xf32>
    %231 = arith.truncf %226 : vector<2x128xf32> to vector<2x128xbf16>
    %cst_81 = arith.constant dense<0.000000e+00> : vector<2x384xf32>
    %232 = tpu.matmul %231, %1, %cst_81 {dimension_numbers = #tpu.dot_dimension_numbers<[1], [0], [0], [1], [0, 0, 1, 1], [], []>} : vector<2x128xbf16>, vector<128x384xbf16>, vector<2x384xf32> -> vector<2x384xf32>
    %233 = vector.broadcast %6 : vector<1x384xf32> to vector<2x384xf32>
    %234 = arith.addf %232, %233 : vector<2x384xf32>
    %235 = vector.extract_strided_slice %230 {offsets = [0, 0], sizes = [2, 128], strides = [1, 1]} : vector<2x384xf32> to vector<2x128xf32>
    %236 = vector.extract_strided_slice %187 {offsets = [0, 0], sizes = [2, 128], strides = [1, 1]} : vector<2x384xf32> to vector<2x128xf32>
    %237 = arith.addf %235, %236 : vector<2x128xf32>
    %cst_82 = arith.constant 5.000000e-01 : f32
    %238 = vector.broadcast %cst_82 : f32 to vector<2x128xf32>
    %239 = arith.mulf %238, %237 : vector<2x128xf32>
    %240 = math.tanh %239 : vector<2x128xf32>
    %cst_83 = arith.constant 1.000000e+00 : f32
    %241 = vector.broadcast %cst_83 : f32 to vector<2x128xf32>
    %242 = arith.addf %240, %241 : vector<2x128xf32>
    %cst_84 = arith.constant 5.000000e-01 : f32
    %243 = vector.broadcast %cst_84 : f32 to vector<2x128xf32>
    %244 = arith.mulf %243, %242 : vector<2x128xf32>
    %245 = vector.extract_strided_slice %230 {offsets = [0, 128], sizes = [2, 128], strides = [1, 1]} : vector<2x384xf32> to vector<2x128xf32>
    %246 = vector.extract_strided_slice %187 {offsets = [0, 128], sizes = [2, 128], strides = [1, 1]} : vector<2x384xf32> to vector<2x128xf32>
    %247 = arith.addf %245, %246 : vector<2x128xf32>
    %cst_85 = arith.constant 5.000000e-01 : f32
    %248 = vector.broadcast %cst_85 : f32 to vector<2x128xf32>
    %249 = arith.mulf %248, %247 : vector<2x128xf32>
    %250 = math.tanh %249 : vector<2x128xf32>
    %cst_86 = arith.constant 1.000000e+00 : f32
    %251 = vector.broadcast %cst_86 : f32 to vector<2x128xf32>
    %252 = arith.addf %250, %251 : vector<2x128xf32>
    %cst_87 = arith.constant 5.000000e-01 : f32
    %253 = vector.broadcast %cst_87 : f32 to vector<2x128xf32>
    %254 = arith.mulf %253, %252 : vector<2x128xf32>
    %255 = vector.extract_strided_slice %230 {offsets = [0, 256], sizes = [2, 128], strides = [1, 1]} : vector<2x384xf32> to vector<2x128xf32>
    %256 = vector.extract_strided_slice %187 {offsets = [0, 256], sizes = [2, 128], strides = [1, 1]} : vector<2x384xf32> to vector<2x128xf32>
    %257 = arith.mulf %244, %256 : vector<2x128xf32>
    %258 = arith.addf %255, %257 : vector<2x128xf32>
    %259 = math.tanh %258 : vector<2x128xf32>
    %cst_88 = arith.constant 1.000000e+00 : f32
    %260 = vector.broadcast %cst_88 : f32 to vector<2x128xf32>
    %261 = arith.subf %260, %254 : vector<2x128xf32>
    %262 = arith.mulf %261, %259 : vector<2x128xf32>
    %263 = arith.mulf %254, %183 : vector<2x128xf32>
    %264 = arith.addf %262, %263 : vector<2x128xf32>
    %265 = arith.truncf %264 : vector<2x128xf32> to vector<2x128xbf16>
    %cst_89 = arith.constant dense<0.000000e+00> : vector<2x384xf32>
    %266 = tpu.matmul %265, %3, %cst_89 {dimension_numbers = #tpu.dot_dimension_numbers<[1], [0], [0], [1], [0, 0, 1, 1], [], []>} : vector<2x128xbf16>, vector<128x384xbf16>, vector<2x384xf32> -> vector<2x384xf32>
    %267 = vector.broadcast %7 : vector<1x384xf32> to vector<2x384xf32>
    %268 = arith.addf %266, %267 : vector<2x384xf32>
    %cst_90 = arith.constant 0.000000e+00 : f32
    %269 = vector.broadcast %cst_90 : f32 to vector<2x128xf32>
    %270 = arith.maximumf %264, %269 : vector<2x128xf32>
    %271 = arith.index_cast %c2_i32 : i32 to index
    %c0_91 = arith.constant 0 : index
    %c0_92 = arith.constant 0 : index
    %272 = vector.load %arg15[%271, %c0_91, %c0_92] : memref<8x2x128xf32, #tpu.memory_space<vmem>>, vector<1x2x128xf32>
    %273 = vector.shape_cast %272 : vector<1x2x128xf32> to vector<2x128xf32>
    %274 = vector.shape_cast %270 : vector<2x128xf32> to vector<1x2x128xf32>
    tpu.vector_store %arg15[%271, %c0_91, %c0_92], %274 {strides = array<i32>} : memref<8x2x128xf32, #tpu.memory_space<vmem>>, vector<1x2x128xf32>,
    %c3_i32 = arith.constant 3 : i32
    %275 = arith.index_cast %c3_i32 : i32 to index
    %c0_93 = arith.constant 0 : index
    %c0_94 = arith.constant 0 : index
    %276 = vector.load %arg14[%275, %c0_93, %c0_94] : memref<8x2x384xf32, #tpu.memory_space<vmem>>, vector<1x2x384xf32>
    %277 = vector.shape_cast %276 : vector<1x2x384xf32> to vector<2x384xf32>
    %278 = vector.extract_strided_slice %277 {offsets = [0, 0], sizes = [2, 128], strides = [1, 1]} : vector<2x384xf32> to vector<2x128xf32>
    %279 = vector.extract_strided_slice %234 {offsets = [0, 0], sizes = [2, 128], strides = [1, 1]} : vector<2x384xf32> to vector<2x128xf32>
    %280 = arith.addf %278, %279 : vector<2x128xf32>
    %cst_95 = arith.constant 5.000000e-01 : f32
    %281 = vector.broadcast %cst_95 : f32 to vector<2x128xf32>
    %282 = arith.mulf %281, %280 : vector<2x128xf32>
    %283 = math.tanh %282 : vector<2x128xf32>
    %cst_96 = arith.constant 1.000000e+00 : f32
    %284 = vector.broadcast %cst_96 : f32 to vector<2x128xf32>
    %285 = arith.addf %283, %284 : vector<2x128xf32>
    %cst_97 = arith.constant 5.000000e-01 : f32
    %286 = vector.broadcast %cst_97 : f32 to vector<2x128xf32>
    %287 = arith.mulf %286, %285 : vector<2x128xf32>
    %288 = vector.extract_strided_slice %277 {offsets = [0, 128], sizes = [2, 128], strides = [1, 1]} : vector<2x384xf32> to vector<2x128xf32>
    %289 = vector.extract_strided_slice %234 {offsets = [0, 128], sizes = [2, 128], strides = [1, 1]} : vector<2x384xf32> to vector<2x128xf32>
    %290 = arith.addf %288, %289 : vector<2x128xf32>
    %cst_98 = arith.constant 5.000000e-01 : f32
    %291 = vector.broadcast %cst_98 : f32 to vector<2x128xf32>
    %292 = arith.mulf %291, %290 : vector<2x128xf32>
    %293 = math.tanh %292 : vector<2x128xf32>
    %cst_99 = arith.constant 1.000000e+00 : f32
    %294 = vector.broadcast %cst_99 : f32 to vector<2x128xf32>
    %295 = arith.addf %293, %294 : vector<2x128xf32>
    %cst_100 = arith.constant 5.000000e-01 : f32
    %296 = vector.broadcast %cst_100 : f32 to vector<2x128xf32>
    %297 = arith.mulf %296, %295 : vector<2x128xf32>
    %298 = vector.extract_strided_slice %277 {offsets = [0, 256], sizes = [2, 128], strides = [1, 1]} : vector<2x384xf32> to vector<2x128xf32>
    %299 = vector.extract_strided_slice %234 {offsets = [0, 256], sizes = [2, 128], strides = [1, 1]} : vector<2x384xf32> to vector<2x128xf32>
    %300 = arith.mulf %287, %299 : vector<2x128xf32>
    %301 = arith.addf %298, %300 : vector<2x128xf32>
    %302 = math.tanh %301 : vector<2x128xf32>
    %cst_101 = arith.constant 1.000000e+00 : f32
    %303 = vector.broadcast %cst_101 : f32 to vector<2x128xf32>
    %304 = arith.subf %303, %297 : vector<2x128xf32>
    %305 = arith.mulf %304, %302 : vector<2x128xf32>
    %306 = arith.mulf %297, %226 : vector<2x128xf32>
    %307 = arith.addf %305, %306 : vector<2x128xf32>
    %308 = arith.truncf %307 : vector<2x128xf32> to vector<2x128xbf16>
    %cst_102 = arith.constant dense<0.000000e+00> : vector<2x384xf32>
    %309 = tpu.matmul %308, %5, %cst_102 {dimension_numbers = #tpu.dot_dimension_numbers<[1], [0], [0], [1], [0, 0, 1, 1], [], []>} : vector<2x128xbf16>, vector<128x384xbf16>, vector<2x384xf32> -> vector<2x384xf32>
    %310 = vector.broadcast %8 : vector<1x384xf32> to vector<2x384xf32>
    %311 = arith.addf %309, %310 : vector<2x384xf32>
    %312 = arith.truncf %307 : vector<2x128xf32> to vector<2x128xbf16>
    %cst_103 = arith.constant dense<0.000000e+00> : vector<2x384xf32>
    %313 = tpu.matmul %312, %1, %cst_103 {dimension_numbers = #tpu.dot_dimension_numbers<[1], [0], [0], [1], [0, 0, 1, 1], [], []>} : vector<2x128xbf16>, vector<128x384xbf16>, vector<2x384xf32> -> vector<2x384xf32>
    %314 = vector.broadcast %6 : vector<1x384xf32> to vector<2x384xf32>
    %315 = arith.addf %313, %314 : vector<2x384xf32>
    %316 = vector.extract_strided_slice %311 {offsets = [0, 0], sizes = [2, 128], strides = [1, 1]} : vector<2x384xf32> to vector<2x128xf32>
    %317 = vector.extract_strided_slice %268 {offsets = [0, 0], sizes = [2, 128], strides = [1, 1]} : vector<2x384xf32> to vector<2x128xf32>
    %318 = arith.addf %316, %317 : vector<2x128xf32>
    %cst_104 = arith.constant 5.000000e-01 : f32
    %319 = vector.broadcast %cst_104 : f32 to vector<2x128xf32>
    %320 = arith.mulf %319, %318 : vector<2x128xf32>
    %321 = math.tanh %320 : vector<2x128xf32>
    %cst_105 = arith.constant 1.000000e+00 : f32
    %322 = vector.broadcast %cst_105 : f32 to vector<2x128xf32>
    %323 = arith.addf %321, %322 : vector<2x128xf32>
    %cst_106 = arith.constant 5.000000e-01 : f32
    %324 = vector.broadcast %cst_106 : f32 to vector<2x128xf32>
    %325 = arith.mulf %324, %323 : vector<2x128xf32>
    %326 = vector.extract_strided_slice %311 {offsets = [0, 128], sizes = [2, 128], strides = [1, 1]} : vector<2x384xf32> to vector<2x128xf32>
    %327 = vector.extract_strided_slice %268 {offsets = [0, 128], sizes = [2, 128], strides = [1, 1]} : vector<2x384xf32> to vector<2x128xf32>
    %328 = arith.addf %326, %327 : vector<2x128xf32>
    %cst_107 = arith.constant 5.000000e-01 : f32
    %329 = vector.broadcast %cst_107 : f32 to vector<2x128xf32>
    %330 = arith.mulf %329, %328 : vector<2x128xf32>
    %331 = math.tanh %330 : vector<2x128xf32>
    %cst_108 = arith.constant 1.000000e+00 : f32
    %332 = vector.broadcast %cst_108 : f32 to vector<2x128xf32>
    %333 = arith.addf %331, %332 : vector<2x128xf32>
    %cst_109 = arith.constant 5.000000e-01 : f32
    %334 = vector.broadcast %cst_109 : f32 to vector<2x128xf32>
    %335 = arith.mulf %334, %333 : vector<2x128xf32>
    %336 = vector.extract_strided_slice %311 {offsets = [0, 256], sizes = [2, 128], strides = [1, 1]} : vector<2x384xf32> to vector<2x128xf32>
    %337 = vector.extract_strided_slice %268 {offsets = [0, 256], sizes = [2, 128], strides = [1, 1]} : vector<2x384xf32> to vector<2x128xf32>
    %338 = arith.mulf %325, %337 : vector<2x128xf32>
    %339 = arith.addf %336, %338 : vector<2x128xf32>
    %340 = math.tanh %339 : vector<2x128xf32>
    %cst_110 = arith.constant 1.000000e+00 : f32
    %341 = vector.broadcast %cst_110 : f32 to vector<2x128xf32>
    %342 = arith.subf %341, %335 : vector<2x128xf32>
    %343 = arith.mulf %342, %340 : vector<2x128xf32>
    %344 = arith.mulf %335, %264 : vector<2x128xf32>
    %345 = arith.addf %343, %344 : vector<2x128xf32>
    %346 = arith.truncf %345 : vector<2x128xf32> to vector<2x128xbf16>
    %cst_111 = arith.constant dense<0.000000e+00> : vector<2x384xf32>
    %347 = tpu.matmul %346, %3, %cst_111 {dimension_numbers = #tpu.dot_dimension_numbers<[1], [0], [0], [1], [0, 0, 1, 1], [], []>} : vector<2x128xbf16>, vector<128x384xbf16>, vector<2x384xf32> -> vector<2x384xf32>
    %348 = vector.broadcast %7 : vector<1x384xf32> to vector<2x384xf32>
    %349 = arith.addf %347, %348 : vector<2x384xf32>
    %cst_112 = arith.constant 0.000000e+00 : f32
    %350 = vector.broadcast %cst_112 : f32 to vector<2x128xf32>
    %351 = arith.maximumf %345, %350 : vector<2x128xf32>
    %352 = arith.index_cast %c3_i32 : i32 to index
    %c0_113 = arith.constant 0 : index
    %c0_114 = arith.constant 0 : index
    %353 = vector.load %arg15[%352, %c0_113, %c0_114] : memref<8x2x128xf32, #tpu.memory_space<vmem>>, vector<1x2x128xf32>
    %354 = vector.shape_cast %353 : vector<1x2x128xf32> to vector<2x128xf32>
    %355 = vector.shape_cast %351 : vector<2x128xf32> to vector<1x2x128xf32>
    tpu.vector_store %arg15[%352, %c0_113, %c0_114], %355 {strides = array<i32>} : memref<8x2x128xf32, #tpu.memory_space<vmem>>, vector<1x2x128xf32>,
    %c4_i32 = arith.constant 4 : i32
    %356 = arith.index_cast %c4_i32 : i32 to index
    %c0_115 = arith.constant 0 : index
    %c0_116 = arith.constant 0 : index
    %357 = vector.load %arg14[%356, %c0_115, %c0_116] : memref<8x2x384xf32, #tpu.memory_space<vmem>>, vector<1x2x384xf32>
    %358 = vector.shape_cast %357 : vector<1x2x384xf32> to vector<2x384xf32>
    %359 = vector.extract_strided_slice %358 {offsets = [0, 0], sizes = [2, 128], strides = [1, 1]} : vector<2x384xf32> to vector<2x128xf32>
    %360 = vector.extract_strided_slice %315 {offsets = [0, 0], sizes = [2, 128], strides = [1, 1]} : vector<2x384xf32> to vector<2x128xf32>
    %361 = arith.addf %359, %360 : vector<2x128xf32>
    %cst_117 = arith.constant 5.000000e-01 : f32
    %362 = vector.broadcast %cst_117 : f32 to vector<2x128xf32>
    %363 = arith.mulf %362, %361 : vector<2x128xf32>
    %364 = math.tanh %363 : vector<2x128xf32>
    %cst_118 = arith.constant 1.000000e+00 : f32
    %365 = vector.broadcast %cst_118 : f32 to vector<2x128xf32>
    %366 = arith.addf %364, %365 : vector<2x128xf32>
    %cst_119 = arith.constant 5.000000e-01 : f32
    %367 = vector.broadcast %cst_119 : f32 to vector<2x128xf32>
    %368 = arith.mulf %367, %366 : vector<2x128xf32>
    %369 = vector.extract_strided_slice %358 {offsets = [0, 128], sizes = [2, 128], strides = [1, 1]} : vector<2x384xf32> to vector<2x128xf32>
    %370 = vector.extract_strided_slice %315 {offsets = [0, 128], sizes = [2, 128], strides = [1, 1]} : vector<2x384xf32> to vector<2x128xf32>
    %371 = arith.addf %369, %370 : vector<2x128xf32>
    %cst_120 = arith.constant 5.000000e-01 : f32
    %372 = vector.broadcast %cst_120 : f32 to vector<2x128xf32>
    %373 = arith.mulf %372, %371 : vector<2x128xf32>
    %374 = math.tanh %373 : vector<2x128xf32>
    %cst_121 = arith.constant 1.000000e+00 : f32
    %375 = vector.broadcast %cst_121 : f32 to vector<2x128xf32>
    %376 = arith.addf %374, %375 : vector<2x128xf32>
    %cst_122 = arith.constant 5.000000e-01 : f32
    %377 = vector.broadcast %cst_122 : f32 to vector<2x128xf32>
    %378 = arith.mulf %377, %376 : vector<2x128xf32>
    %379 = vector.extract_strided_slice %358 {offsets = [0, 256], sizes = [2, 128], strides = [1, 1]} : vector<2x384xf32> to vector<2x128xf32>
    %380 = vector.extract_strided_slice %315 {offsets = [0, 256], sizes = [2, 128], strides = [1, 1]} : vector<2x384xf32> to vector<2x128xf32>
    %381 = arith.mulf %368, %380 : vector<2x128xf32>
    %382 = arith.addf %379, %381 : vector<2x128xf32>
    %383 = math.tanh %382 : vector<2x128xf32>
    %cst_123 = arith.constant 1.000000e+00 : f32
    %384 = vector.broadcast %cst_123 : f32 to vector<2x128xf32>
    %385 = arith.subf %384, %378 : vector<2x128xf32>
    %386 = arith.mulf %385, %383 : vector<2x128xf32>
    %387 = arith.mulf %378, %307 : vector<2x128xf32>
    %388 = arith.addf %386, %387 : vector<2x128xf32>
    %389 = arith.truncf %388 : vector<2x128xf32> to vector<2x128xbf16>
    %cst_124 = arith.constant dense<0.000000e+00> : vector<2x384xf32>
    %390 = tpu.matmul %389, %5, %cst_124 {dimension_numbers = #tpu.dot_dimension_numbers<[1], [0], [0], [1], [0, 0, 1, 1], [], []>} : vector<2x128xbf16>, vector<128x384xbf16>, vector<2x384xf32> -> vector<2x384xf32>
    %391 = vector.broadcast %8 : vector<1x384xf32> to vector<2x384xf32>
    %392 = arith.addf %390, %391 : vector<2x384xf32>
    %393 = arith.truncf %388 : vector<2x128xf32> to vector<2x128xbf16>
    %cst_125 = arith.constant dense<0.000000e+00> : vector<2x384xf32>
    %394 = tpu.matmul %393, %1, %cst_125 {dimension_numbers = #tpu.dot_dimension_numbers<[1], [0], [0], [1], [0, 0, 1, 1], [], []>} : vector<2x128xbf16>, vector<128x384xbf16>, vector<2x384xf32> -> vector<2x384xf32>
    %395 = vector.broadcast %6 : vector<1x384xf32> to vector<2x384xf32>
    %396 = arith.addf %394, %395 : vector<2x384xf32>
    %397 = vector.extract_strided_slice %392 {offsets = [0, 0], sizes = [2, 128], strides = [1, 1]} : vector<2x384xf32> to vector<2x128xf32>
    %398 = vector.extract_strided_slice %349 {offsets = [0, 0], sizes = [2, 128], strides = [1, 1]} : vector<2x384xf32> to vector<2x128xf32>
    %399 = arith.addf %397, %398 : vector<2x128xf32>
    %cst_126 = arith.constant 5.000000e-01 : f32
    %400 = vector.broadcast %cst_126 : f32 to vector<2x128xf32>
    %401 = arith.mulf %400, %399 : vector<2x128xf32>
    %402 = math.tanh %401 : vector<2x128xf32>
    %cst_127 = arith.constant 1.000000e+00 : f32
    %403 = vector.broadcast %cst_127 : f32 to vector<2x128xf32>
    %404 = arith.addf %402, %403 : vector<2x128xf32>
    %cst_128 = arith.constant 5.000000e-01 : f32
    %405 = vector.broadcast %cst_128 : f32 to vector<2x128xf32>
    %406 = arith.mulf %405, %404 : vector<2x128xf32>
    %407 = vector.extract_strided_slice %392 {offsets = [0, 128], sizes = [2, 128], strides = [1, 1]} : vector<2x384xf32> to vector<2x128xf32>
    %408 = vector.extract_strided_slice %349 {offsets = [0, 128], sizes = [2, 128], strides = [1, 1]} : vector<2x384xf32> to vector<2x128xf32>
    %409 = arith.addf %407, %408 : vector<2x128xf32>
    %cst_129 = arith.constant 5.000000e-01 : f32
    %410 = vector.broadcast %cst_129 : f32 to vector<2x128xf32>
    %411 = arith.mulf %410, %409 : vector<2x128xf32>
    %412 = math.tanh %411 : vector<2x128xf32>
    %cst_130 = arith.constant 1.000000e+00 : f32
    %413 = vector.broadcast %cst_130 : f32 to vector<2x128xf32>
    %414 = arith.addf %412, %413 : vector<2x128xf32>
    %cst_131 = arith.constant 5.000000e-01 : f32
    %415 = vector.broadcast %cst_131 : f32 to vector<2x128xf32>
    %416 = arith.mulf %415, %414 : vector<2x128xf32>
    %417 = vector.extract_strided_slice %392 {offsets = [0, 256], sizes = [2, 128], strides = [1, 1]} : vector<2x384xf32> to vector<2x128xf32>
    %418 = vector.extract_strided_slice %349 {offsets = [0, 256], sizes = [2, 128], strides = [1, 1]} : vector<2x384xf32> to vector<2x128xf32>
    %419 = arith.mulf %406, %418 : vector<2x128xf32>
    %420 = arith.addf %417, %419 : vector<2x128xf32>
    %421 = math.tanh %420 : vector<2x128xf32>
    %cst_132 = arith.constant 1.000000e+00 : f32
    %422 = vector.broadcast %cst_132 : f32 to vector<2x128xf32>
    %423 = arith.subf %422, %416 : vector<2x128xf32>
    %424 = arith.mulf %423, %421 : vector<2x128xf32>
    %425 = arith.mulf %416, %345 : vector<2x128xf32>
    %426 = arith.addf %424, %425 : vector<2x128xf32>
    %427 = arith.truncf %426 : vector<2x128xf32> to vector<2x128xbf16>
    %cst_133 = arith.constant dense<0.000000e+00> : vector<2x384xf32>
    %428 = tpu.matmul %427, %3, %cst_133 {dimension_numbers = #tpu.dot_dimension_numbers<[1], [0], [0], [1], [0, 0, 1, 1], [], []>} : vector<2x128xbf16>, vector<128x384xbf16>, vector<2x384xf32> -> vector<2x384xf32>
    %429 = vector.broadcast %7 : vector<1x384xf32> to vector<2x384xf32>
    %430 = arith.addf %428, %429 : vector<2x384xf32>
    %cst_134 = arith.constant 0.000000e+00 : f32
    %431 = vector.broadcast %cst_134 : f32 to vector<2x128xf32>
    %432 = arith.maximumf %426, %431 : vector<2x128xf32>
    %433 = arith.index_cast %c4_i32 : i32 to index
    %c0_135 = arith.constant 0 : index
    %c0_136 = arith.constant 0 : index
    %434 = vector.load %arg15[%433, %c0_135, %c0_136] : memref<8x2x128xf32, #tpu.memory_space<vmem>>, vector<1x2x128xf32>
    %435 = vector.shape_cast %434 : vector<1x2x128xf32> to vector<2x128xf32>
    %436 = vector.shape_cast %432 : vector<2x128xf32> to vector<1x2x128xf32>
    tpu.vector_store %arg15[%433, %c0_135, %c0_136], %436 {strides = array<i32>} : memref<8x2x128xf32, #tpu.memory_space<vmem>>, vector<1x2x128xf32>,
    %c5_i32 = arith.constant 5 : i32
    %437 = arith.index_cast %c5_i32 : i32 to index
    %c0_137 = arith.constant 0 : index
    %c0_138 = arith.constant 0 : index
    %438 = vector.load %arg14[%437, %c0_137, %c0_138] : memref<8x2x384xf32, #tpu.memory_space<vmem>>, vector<1x2x384xf32>
    %439 = vector.shape_cast %438 : vector<1x2x384xf32> to vector<2x384xf32>
    %440 = vector.extract_strided_slice %439 {offsets = [0, 0], sizes = [2, 128], strides = [1, 1]} : vector<2x384xf32> to vector<2x128xf32>
    %441 = vector.extract_strided_slice %396 {offsets = [0, 0], sizes = [2, 128], strides = [1, 1]} : vector<2x384xf32> to vector<2x128xf32>
    %442 = arith.addf %440, %441 : vector<2x128xf32>
    %cst_139 = arith.constant 5.000000e-01 : f32
    %443 = vector.broadcast %cst_139 : f32 to vector<2x128xf32>
    %444 = arith.mulf %443, %442 : vector<2x128xf32>
    %445 = math.tanh %444 : vector<2x128xf32>
    %cst_140 = arith.constant 1.000000e+00 : f32
    %446 = vector.broadcast %cst_140 : f32 to vector<2x128xf32>
    %447 = arith.addf %445, %446 : vector<2x128xf32>
    %cst_141 = arith.constant 5.000000e-01 : f32
    %448 = vector.broadcast %cst_141 : f32 to vector<2x128xf32>
    %449 = arith.mulf %448, %447 : vector<2x128xf32>
    %450 = vector.extract_strided_slice %439 {offsets = [0, 128], sizes = [2, 128], strides = [1, 1]} : vector<2x384xf32> to vector<2x128xf32>
    %451 = vector.extract_strided_slice %396 {offsets = [0, 128], sizes = [2, 128], strides = [1, 1]} : vector<2x384xf32> to vector<2x128xf32>
    %452 = arith.addf %450, %451 : vector<2x128xf32>
    %cst_142 = arith.constant 5.000000e-01 : f32
    %453 = vector.broadcast %cst_142 : f32 to vector<2x128xf32>
    %454 = arith.mulf %453, %452 : vector<2x128xf32>
    %455 = math.tanh %454 : vector<2x128xf32>
    %cst_143 = arith.constant 1.000000e+00 : f32
    %456 = vector.broadcast %cst_143 : f32 to vector<2x128xf32>
    %457 = arith.addf %455, %456 : vector<2x128xf32>
    %cst_144 = arith.constant 5.000000e-01 : f32
    %458 = vector.broadcast %cst_144 : f32 to vector<2x128xf32>
    %459 = arith.mulf %458, %457 : vector<2x128xf32>
    %460 = vector.extract_strided_slice %439 {offsets = [0, 256], sizes = [2, 128], strides = [1, 1]} : vector<2x384xf32> to vector<2x128xf32>
    %461 = vector.extract_strided_slice %396 {offsets = [0, 256], sizes = [2, 128], strides = [1, 1]} : vector<2x384xf32> to vector<2x128xf32>
    %462 = arith.mulf %449, %461 : vector<2x128xf32>
    %463 = arith.addf %460, %462 : vector<2x128xf32>
    %464 = math.tanh %463 : vector<2x128xf32>
    %cst_145 = arith.constant 1.000000e+00 : f32
    %465 = vector.broadcast %cst_145 : f32 to vector<2x128xf32>
    %466 = arith.subf %465, %459 : vector<2x128xf32>
    %467 = arith.mulf %466, %464 : vector<2x128xf32>
    %468 = arith.mulf %459, %388 : vector<2x128xf32>
    %469 = arith.addf %467, %468 : vector<2x128xf32>
    %470 = arith.truncf %469 : vector<2x128xf32> to vector<2x128xbf16>
    %cst_146 = arith.constant dense<0.000000e+00> : vector<2x384xf32>
    %471 = tpu.matmul %470, %5, %cst_146 {dimension_numbers = #tpu.dot_dimension_numbers<[1], [0], [0], [1], [0, 0, 1, 1], [], []>} : vector<2x128xbf16>, vector<128x384xbf16>, vector<2x384xf32> -> vector<2x384xf32>
    %472 = vector.broadcast %8 : vector<1x384xf32> to vector<2x384xf32>
    %473 = arith.addf %471, %472 : vector<2x384xf32>
    %474 = arith.truncf %469 : vector<2x128xf32> to vector<2x128xbf16>
    %cst_147 = arith.constant dense<0.000000e+00> : vector<2x384xf32>
    %475 = tpu.matmul %474, %1, %cst_147 {dimension_numbers = #tpu.dot_dimension_numbers<[1], [0], [0], [1], [0, 0, 1, 1], [], []>} : vector<2x128xbf16>, vector<128x384xbf16>, vector<2x384xf32> -> vector<2x384xf32>
    %476 = vector.broadcast %6 : vector<1x384xf32> to vector<2x384xf32>
    %477 = arith.addf %475, %476 : vector<2x384xf32>
    %478 = vector.extract_strided_slice %473 {offsets = [0, 0], sizes = [2, 128], strides = [1, 1]} : vector<2x384xf32> to vector<2x128xf32>
    %479 = vector.extract_strided_slice %430 {offsets = [0, 0], sizes = [2, 128], strides = [1, 1]} : vector<2x384xf32> to vector<2x128xf32>
    %480 = arith.addf %478, %479 : vector<2x128xf32>
    %cst_148 = arith.constant 5.000000e-01 : f32
    %481 = vector.broadcast %cst_148 : f32 to vector<2x128xf32>
    %482 = arith.mulf %481, %480 : vector<2x128xf32>
    %483 = math.tanh %482 : vector<2x128xf32>
    %cst_149 = arith.constant 1.000000e+00 : f32
    %484 = vector.broadcast %cst_149 : f32 to vector<2x128xf32>
    %485 = arith.addf %483, %484 : vector<2x128xf32>
    %cst_150 = arith.constant 5.000000e-01 : f32
    %486 = vector.broadcast %cst_150 : f32 to vector<2x128xf32>
    %487 = arith.mulf %486, %485 : vector<2x128xf32>
    %488 = vector.extract_strided_slice %473 {offsets = [0, 128], sizes = [2, 128], strides = [1, 1]} : vector<2x384xf32> to vector<2x128xf32>
    %489 = vector.extract_strided_slice %430 {offsets = [0, 128], sizes = [2, 128], strides = [1, 1]} : vector<2x384xf32> to vector<2x128xf32>
    %490 = arith.addf %488, %489 : vector<2x128xf32>
    %cst_151 = arith.constant 5.000000e-01 : f32
    %491 = vector.broadcast %cst_151 : f32 to vector<2x128xf32>
    %492 = arith.mulf %491, %490 : vector<2x128xf32>
    %493 = math.tanh %492 : vector<2x128xf32>
    %cst_152 = arith.constant 1.000000e+00 : f32
    %494 = vector.broadcast %cst_152 : f32 to vector<2x128xf32>
    %495 = arith.addf %493, %494 : vector<2x128xf32>
    %cst_153 = arith.constant 5.000000e-01 : f32
    %496 = vector.broadcast %cst_153 : f32 to vector<2x128xf32>
    %497 = arith.mulf %496, %495 : vector<2x128xf32>
    %498 = vector.extract_strided_slice %473 {offsets = [0, 256], sizes = [2, 128], strides = [1, 1]} : vector<2x384xf32> to vector<2x128xf32>
    %499 = vector.extract_strided_slice %430 {offsets = [0, 256], sizes = [2, 128], strides = [1, 1]} : vector<2x384xf32> to vector<2x128xf32>
    %500 = arith.mulf %487, %499 : vector<2x128xf32>
    %501 = arith.addf %498, %500 : vector<2x128xf32>
    %502 = math.tanh %501 : vector<2x128xf32>
    %cst_154 = arith.constant 1.000000e+00 : f32
    %503 = vector.broadcast %cst_154 : f32 to vector<2x128xf32>
    %504 = arith.subf %503, %497 : vector<2x128xf32>
    %505 = arith.mulf %504, %502 : vector<2x128xf32>
    %506 = arith.mulf %497, %426 : vector<2x128xf32>
    %507 = arith.addf %505, %506 : vector<2x128xf32>
    %508 = arith.truncf %507 : vector<2x128xf32> to vector<2x128xbf16>
    %cst_155 = arith.constant dense<0.000000e+00> : vector<2x384xf32>
    %509 = tpu.matmul %508, %3, %cst_155 {dimension_numbers = #tpu.dot_dimension_numbers<[1], [0], [0], [1], [0, 0, 1, 1], [], []>} : vector<2x128xbf16>, vector<128x384xbf16>, vector<2x384xf32> -> vector<2x384xf32>
    %510 = vector.broadcast %7 : vector<1x384xf32> to vector<2x384xf32>
    %511 = arith.addf %509, %510 : vector<2x384xf32>
    %cst_156 = arith.constant 0.000000e+00 : f32
    %512 = vector.broadcast %cst_156 : f32 to vector<2x128xf32>
    %513 = arith.maximumf %507, %512 : vector<2x128xf32>
    %514 = arith.index_cast %c5_i32 : i32 to index
    %c0_157 = arith.constant 0 : index
    %c0_158 = arith.constant 0 : index
    %515 = vector.load %arg15[%514, %c0_157, %c0_158] : memref<8x2x128xf32, #tpu.memory_space<vmem>>, vector<1x2x128xf32>
    %516 = vector.shape_cast %515 : vector<1x2x128xf32> to vector<2x128xf32>
    %517 = vector.shape_cast %513 : vector<2x128xf32> to vector<1x2x128xf32>
    tpu.vector_store %arg15[%514, %c0_157, %c0_158], %517 {strides = array<i32>} : memref<8x2x128xf32, #tpu.memory_space<vmem>>, vector<1x2x128xf32>,
    %c6_i32 = arith.constant 6 : i32
    %518 = arith.index_cast %c6_i32 : i32 to index
    %c0_159 = arith.constant 0 : index
    %c0_160 = arith.constant 0 : index
    %519 = vector.load %arg14[%518, %c0_159, %c0_160] : memref<8x2x384xf32, #tpu.memory_space<vmem>>, vector<1x2x384xf32>
    %520 = vector.shape_cast %519 : vector<1x2x384xf32> to vector<2x384xf32>
    %521 = vector.extract_strided_slice %520 {offsets = [0, 0], sizes = [2, 128], strides = [1, 1]} : vector<2x384xf32> to vector<2x128xf32>
    %522 = vector.extract_strided_slice %477 {offsets = [0, 0], sizes = [2, 128], strides = [1, 1]} : vector<2x384xf32> to vector<2x128xf32>
    %523 = arith.addf %521, %522 : vector<2x128xf32>
    %cst_161 = arith.constant 5.000000e-01 : f32
    %524 = vector.broadcast %cst_161 : f32 to vector<2x128xf32>
    %525 = arith.mulf %524, %523 : vector<2x128xf32>
    %526 = math.tanh %525 : vector<2x128xf32>
    %cst_162 = arith.constant 1.000000e+00 : f32
    %527 = vector.broadcast %cst_162 : f32 to vector<2x128xf32>
    %528 = arith.addf %526, %527 : vector<2x128xf32>
    %cst_163 = arith.constant 5.000000e-01 : f32
    %529 = vector.broadcast %cst_163 : f32 to vector<2x128xf32>
    %530 = arith.mulf %529, %528 : vector<2x128xf32>
    %531 = vector.extract_strided_slice %520 {offsets = [0, 128], sizes = [2, 128], strides = [1, 1]} : vector<2x384xf32> to vector<2x128xf32>
    %532 = vector.extract_strided_slice %477 {offsets = [0, 128], sizes = [2, 128], strides = [1, 1]} : vector<2x384xf32> to vector<2x128xf32>
    %533 = arith.addf %531, %532 : vector<2x128xf32>
    %cst_164 = arith.constant 5.000000e-01 : f32
    %534 = vector.broadcast %cst_164 : f32 to vector<2x128xf32>
    %535 = arith.mulf %534, %533 : vector<2x128xf32>
    %536 = math.tanh %535 : vector<2x128xf32>
    %cst_165 = arith.constant 1.000000e+00 : f32
    %537 = vector.broadcast %cst_165 : f32 to vector<2x128xf32>
    %538 = arith.addf %536, %537 : vector<2x128xf32>
    %cst_166 = arith.constant 5.000000e-01 : f32
    %539 = vector.broadcast %cst_166 : f32 to vector<2x128xf32>
    %540 = arith.mulf %539, %538 : vector<2x128xf32>
    %541 = vector.extract_strided_slice %520 {offsets = [0, 256], sizes = [2, 128], strides = [1, 1]} : vector<2x384xf32> to vector<2x128xf32>
    %542 = vector.extract_strided_slice %477 {offsets = [0, 256], sizes = [2, 128], strides = [1, 1]} : vector<2x384xf32> to vector<2x128xf32>
    %543 = arith.mulf %530, %542 : vector<2x128xf32>
    %544 = arith.addf %541, %543 : vector<2x128xf32>
    %545 = math.tanh %544 : vector<2x128xf32>
    %cst_167 = arith.constant 1.000000e+00 : f32
    %546 = vector.broadcast %cst_167 : f32 to vector<2x128xf32>
    %547 = arith.subf %546, %540 : vector<2x128xf32>
    %548 = arith.mulf %547, %545 : vector<2x128xf32>
    %549 = arith.mulf %540, %469 : vector<2x128xf32>
    %550 = arith.addf %548, %549 : vector<2x128xf32>
    %551 = arith.truncf %550 : vector<2x128xf32> to vector<2x128xbf16>
    %cst_168 = arith.constant dense<0.000000e+00> : vector<2x384xf32>
    %552 = tpu.matmul %551, %5, %cst_168 {dimension_numbers = #tpu.dot_dimension_numbers<[1], [0], [0], [1], [0, 0, 1, 1], [], []>} : vector<2x128xbf16>, vector<128x384xbf16>, vector<2x384xf32> -> vector<2x384xf32>
    %553 = vector.broadcast %8 : vector<1x384xf32> to vector<2x384xf32>
    %554 = arith.addf %552, %553 : vector<2x384xf32>
    %555 = arith.truncf %550 : vector<2x128xf32> to vector<2x128xbf16>
    %cst_169 = arith.constant dense<0.000000e+00> : vector<2x384xf32>
    %556 = tpu.matmul %555, %1, %cst_169 {dimension_numbers = #tpu.dot_dimension_numbers<[1], [0], [0], [1], [0, 0, 1, 1], [], []>} : vector<2x128xbf16>, vector<128x384xbf16>, vector<2x384xf32> -> vector<2x384xf32>
    %557 = vector.broadcast %6 : vector<1x384xf32> to vector<2x384xf32>
    %558 = arith.addf %556, %557 : vector<2x384xf32>
    %559 = vector.extract_strided_slice %554 {offsets = [0, 0], sizes = [2, 128], strides = [1, 1]} : vector<2x384xf32> to vector<2x128xf32>
    %560 = vector.extract_strided_slice %511 {offsets = [0, 0], sizes = [2, 128], strides = [1, 1]} : vector<2x384xf32> to vector<2x128xf32>
    %561 = arith.addf %559, %560 : vector<2x128xf32>
    %cst_170 = arith.constant 5.000000e-01 : f32
    %562 = vector.broadcast %cst_170 : f32 to vector<2x128xf32>
    %563 = arith.mulf %562, %561 : vector<2x128xf32>
    %564 = math.tanh %563 : vector<2x128xf32>
    %cst_171 = arith.constant 1.000000e+00 : f32
    %565 = vector.broadcast %cst_171 : f32 to vector<2x128xf32>
    %566 = arith.addf %564, %565 : vector<2x128xf32>
    %cst_172 = arith.constant 5.000000e-01 : f32
    %567 = vector.broadcast %cst_172 : f32 to vector<2x128xf32>
    %568 = arith.mulf %567, %566 : vector<2x128xf32>
    %569 = vector.extract_strided_slice %554 {offsets = [0, 128], sizes = [2, 128], strides = [1, 1]} : vector<2x384xf32> to vector<2x128xf32>
    %570 = vector.extract_strided_slice %511 {offsets = [0, 128], sizes = [2, 128], strides = [1, 1]} : vector<2x384xf32> to vector<2x128xf32>
    %571 = arith.addf %569, %570 : vector<2x128xf32>
    %cst_173 = arith.constant 5.000000e-01 : f32
    %572 = vector.broadcast %cst_173 : f32 to vector<2x128xf32>
    %573 = arith.mulf %572, %571 : vector<2x128xf32>
    %574 = math.tanh %573 : vector<2x128xf32>
    %cst_174 = arith.constant 1.000000e+00 : f32
    %575 = vector.broadcast %cst_174 : f32 to vector<2x128xf32>
    %576 = arith.addf %574, %575 : vector<2x128xf32>
    %cst_175 = arith.constant 5.000000e-01 : f32
    %577 = vector.broadcast %cst_175 : f32 to vector<2x128xf32>
    %578 = arith.mulf %577, %576 : vector<2x128xf32>
    %579 = vector.extract_strided_slice %554 {offsets = [0, 256], sizes = [2, 128], strides = [1, 1]} : vector<2x384xf32> to vector<2x128xf32>
    %580 = vector.extract_strided_slice %511 {offsets = [0, 256], sizes = [2, 128], strides = [1, 1]} : vector<2x384xf32> to vector<2x128xf32>
    %581 = arith.mulf %568, %580 : vector<2x128xf32>
    %582 = arith.addf %579, %581 : vector<2x128xf32>
    %583 = math.tanh %582 : vector<2x128xf32>
    %cst_176 = arith.constant 1.000000e+00 : f32
    %584 = vector.broadcast %cst_176 : f32 to vector<2x128xf32>
    %585 = arith.subf %584, %578 : vector<2x128xf32>
    %586 = arith.mulf %585, %583 : vector<2x128xf32>
    %587 = arith.mulf %578, %507 : vector<2x128xf32>
    %588 = arith.addf %586, %587 : vector<2x128xf32>
    %589 = arith.truncf %588 : vector<2x128xf32> to vector<2x128xbf16>
    %cst_177 = arith.constant dense<0.000000e+00> : vector<2x384xf32>
    %590 = tpu.matmul %589, %3, %cst_177 {dimension_numbers = #tpu.dot_dimension_numbers<[1], [0], [0], [1], [0, 0, 1, 1], [], []>} : vector<2x128xbf16>, vector<128x384xbf16>, vector<2x384xf32> -> vector<2x384xf32>
    %591 = vector.broadcast %7 : vector<1x384xf32> to vector<2x384xf32>
    %592 = arith.addf %590, %591 : vector<2x384xf32>
    %cst_178 = arith.constant 0.000000e+00 : f32
    %593 = vector.broadcast %cst_178 : f32 to vector<2x128xf32>
    %594 = arith.maximumf %588, %593 : vector<2x128xf32>
    %595 = arith.index_cast %c6_i32 : i32 to index
    %c0_179 = arith.constant 0 : index
    %c0_180 = arith.constant 0 : index
    %596 = vector.load %arg15[%595, %c0_179, %c0_180] : memref<8x2x128xf32, #tpu.memory_space<vmem>>, vector<1x2x128xf32>
    %597 = vector.shape_cast %596 : vector<1x2x128xf32> to vector<2x128xf32>
    %598 = vector.shape_cast %594 : vector<2x128xf32> to vector<1x2x128xf32>
    tpu.vector_store %arg15[%595, %c0_179, %c0_180], %598 {strides = array<i32>} : memref<8x2x128xf32, #tpu.memory_space<vmem>>, vector<1x2x128xf32>,
    %c7_i32 = arith.constant 7 : i32
    %599 = arith.index_cast %c7_i32 : i32 to index
    %c0_181 = arith.constant 0 : index
    %c0_182 = arith.constant 0 : index
    %600 = vector.load %arg14[%599, %c0_181, %c0_182] : memref<8x2x384xf32, #tpu.memory_space<vmem>>, vector<1x2x384xf32>
    %601 = vector.shape_cast %600 : vector<1x2x384xf32> to vector<2x384xf32>
    %602 = vector.extract_strided_slice %601 {offsets = [0, 0], sizes = [2, 128], strides = [1, 1]} : vector<2x384xf32> to vector<2x128xf32>
    %603 = vector.extract_strided_slice %558 {offsets = [0, 0], sizes = [2, 128], strides = [1, 1]} : vector<2x384xf32> to vector<2x128xf32>
    %604 = arith.addf %602, %603 : vector<2x128xf32>
    %cst_183 = arith.constant 5.000000e-01 : f32
    %605 = vector.broadcast %cst_183 : f32 to vector<2x128xf32>
    %606 = arith.mulf %605, %604 : vector<2x128xf32>
    %607 = math.tanh %606 : vector<2x128xf32>
    %cst_184 = arith.constant 1.000000e+00 : f32
    %608 = vector.broadcast %cst_184 : f32 to vector<2x128xf32>
    %609 = arith.addf %607, %608 : vector<2x128xf32>
    %cst_185 = arith.constant 5.000000e-01 : f32
    %610 = vector.broadcast %cst_185 : f32 to vector<2x128xf32>
    %611 = arith.mulf %610, %609 : vector<2x128xf32>
    %612 = vector.extract_strided_slice %601 {offsets = [0, 128], sizes = [2, 128], strides = [1, 1]} : vector<2x384xf32> to vector<2x128xf32>
    %613 = vector.extract_strided_slice %558 {offsets = [0, 128], sizes = [2, 128], strides = [1, 1]} : vector<2x384xf32> to vector<2x128xf32>
    %614 = arith.addf %612, %613 : vector<2x128xf32>
    %cst_186 = arith.constant 5.000000e-01 : f32
    %615 = vector.broadcast %cst_186 : f32 to vector<2x128xf32>
    %616 = arith.mulf %615, %614 : vector<2x128xf32>
    %617 = math.tanh %616 : vector<2x128xf32>
    %cst_187 = arith.constant 1.000000e+00 : f32
    %618 = vector.broadcast %cst_187 : f32 to vector<2x128xf32>
    %619 = arith.addf %617, %618 : vector<2x128xf32>
    %cst_188 = arith.constant 5.000000e-01 : f32
    %620 = vector.broadcast %cst_188 : f32 to vector<2x128xf32>
    %621 = arith.mulf %620, %619 : vector<2x128xf32>
    %622 = vector.extract_strided_slice %601 {offsets = [0, 256], sizes = [2, 128], strides = [1, 1]} : vector<2x384xf32> to vector<2x128xf32>
    %623 = vector.extract_strided_slice %558 {offsets = [0, 256], sizes = [2, 128], strides = [1, 1]} : vector<2x384xf32> to vector<2x128xf32>
    %624 = arith.mulf %611, %623 : vector<2x128xf32>
    %625 = arith.addf %622, %624 : vector<2x128xf32>
    %626 = math.tanh %625 : vector<2x128xf32>
    %cst_189 = arith.constant 1.000000e+00 : f32
    %627 = vector.broadcast %cst_189 : f32 to vector<2x128xf32>
    %628 = arith.subf %627, %621 : vector<2x128xf32>
    %629 = arith.mulf %628, %626 : vector<2x128xf32>
    %630 = arith.mulf %621, %550 : vector<2x128xf32>
    %631 = arith.addf %629, %630 : vector<2x128xf32>
    %632 = arith.truncf %631 : vector<2x128xf32> to vector<2x128xbf16>
    %cst_190 = arith.constant dense<0.000000e+00> : vector<2x384xf32>
    %633 = tpu.matmul %632, %5, %cst_190 {dimension_numbers = #tpu.dot_dimension_numbers<[1], [0], [0], [1], [0, 0, 1, 1], [], []>} : vector<2x128xbf16>, vector<128x384xbf16>, vector<2x384xf32> -> vector<2x384xf32>
    %634 = vector.broadcast %8 : vector<1x384xf32> to vector<2x384xf32>
    %635 = arith.addf %633, %634 : vector<2x384xf32>
    %636 = arith.truncf %631 : vector<2x128xf32> to vector<2x128xbf16>
    %cst_191 = arith.constant dense<0.000000e+00> : vector<2x384xf32>
    %637 = tpu.matmul %636, %1, %cst_191 {dimension_numbers = #tpu.dot_dimension_numbers<[1], [0], [0], [1], [0, 0, 1, 1], [], []>} : vector<2x128xbf16>, vector<128x384xbf16>, vector<2x384xf32> -> vector<2x384xf32>
    %638 = vector.broadcast %6 : vector<1x384xf32> to vector<2x384xf32>
    %639 = arith.addf %637, %638 : vector<2x384xf32>
    %640 = vector.extract_strided_slice %635 {offsets = [0, 0], sizes = [2, 128], strides = [1, 1]} : vector<2x384xf32> to vector<2x128xf32>
    %641 = vector.extract_strided_slice %592 {offsets = [0, 0], sizes = [2, 128], strides = [1, 1]} : vector<2x384xf32> to vector<2x128xf32>
    %642 = arith.addf %640, %641 : vector<2x128xf32>
    %cst_192 = arith.constant 5.000000e-01 : f32
    %643 = vector.broadcast %cst_192 : f32 to vector<2x128xf32>
    %644 = arith.mulf %643, %642 : vector<2x128xf32>
    %645 = math.tanh %644 : vector<2x128xf32>
    %cst_193 = arith.constant 1.000000e+00 : f32
    %646 = vector.broadcast %cst_193 : f32 to vector<2x128xf32>
    %647 = arith.addf %645, %646 : vector<2x128xf32>
    %cst_194 = arith.constant 5.000000e-01 : f32
    %648 = vector.broadcast %cst_194 : f32 to vector<2x128xf32>
    %649 = arith.mulf %648, %647 : vector<2x128xf32>
    %650 = vector.extract_strided_slice %635 {offsets = [0, 128], sizes = [2, 128], strides = [1, 1]} : vector<2x384xf32> to vector<2x128xf32>
    %651 = vector.extract_strided_slice %592 {offsets = [0, 128], sizes = [2, 128], strides = [1, 1]} : vector<2x384xf32> to vector<2x128xf32>
    %652 = arith.addf %650, %651 : vector<2x128xf32>
    %cst_195 = arith.constant 5.000000e-01 : f32
    %653 = vector.broadcast %cst_195 : f32 to vector<2x128xf32>
    %654 = arith.mulf %653, %652 : vector<2x128xf32>
    %655 = math.tanh %654 : vector<2x128xf32>
    %cst_196 = arith.constant 1.000000e+00 : f32
    %656 = vector.broadcast %cst_196 : f32 to vector<2x128xf32>
    %657 = arith.addf %655, %656 : vector<2x128xf32>
    %cst_197 = arith.constant 5.000000e-01 : f32
    %658 = vector.broadcast %cst_197 : f32 to vector<2x128xf32>
    %659 = arith.mulf %658, %657 : vector<2x128xf32>
    %660 = vector.extract_strided_slice %635 {offsets = [0, 256], sizes = [2, 128], strides = [1, 1]} : vector<2x384xf32> to vector<2x128xf32>
    %661 = vector.extract_strided_slice %592 {offsets = [0, 256], sizes = [2, 128], strides = [1, 1]} : vector<2x384xf32> to vector<2x128xf32>
    %662 = arith.mulf %649, %661 : vector<2x128xf32>
    %663 = arith.addf %660, %662 : vector<2x128xf32>
    %664 = math.tanh %663 : vector<2x128xf32>
    %cst_198 = arith.constant 1.000000e+00 : f32
    %665 = vector.broadcast %cst_198 : f32 to vector<2x128xf32>
    %666 = arith.subf %665, %659 : vector<2x128xf32>
    %667 = arith.mulf %666, %664 : vector<2x128xf32>
    %668 = arith.mulf %659, %588 : vector<2x128xf32>
    %669 = arith.addf %667, %668 : vector<2x128xf32>
    %670 = arith.truncf %669 : vector<2x128xf32> to vector<2x128xbf16>
    %cst_199 = arith.constant dense<0.000000e+00> : vector<2x384xf32>
    %671 = tpu.matmul %670, %3, %cst_199 {dimension_numbers = #tpu.dot_dimension_numbers<[1], [0], [0], [1], [0, 0, 1, 1], [], []>} : vector<2x128xbf16>, vector<128x384xbf16>, vector<2x384xf32> -> vector<2x384xf32>
    %672 = vector.broadcast %7 : vector<1x384xf32> to vector<2x384xf32>
    %673 = arith.addf %671, %672 : vector<2x384xf32>
    %cst_200 = arith.constant 0.000000e+00 : f32
    %674 = vector.broadcast %cst_200 : f32 to vector<2x128xf32>
    %675 = arith.maximumf %669, %674 : vector<2x128xf32>
    %676 = arith.index_cast %c7_i32 : i32 to index
    %c0_201 = arith.constant 0 : index
    %c0_202 = arith.constant 0 : index
    %677 = vector.load %arg15[%676, %c0_201, %c0_202] : memref<8x2x128xf32, #tpu.memory_space<vmem>>, vector<1x2x128xf32>
    %678 = vector.shape_cast %677 : vector<1x2x128xf32> to vector<2x128xf32>
    %679 = vector.shape_cast %675 : vector<2x128xf32> to vector<1x2x128xf32>
    tpu.vector_store %arg15[%676, %c0_201, %c0_202], %679 {strides = array<i32>} : memref<8x2x128xf32, #tpu.memory_space<vmem>>, vector<1x2x128xf32>,
    %c8_i32 = arith.constant 8 : i32
    %c0_203 = arith.constant 0 : index
    %c0_204 = arith.constant 0 : index
    %c0_205 = arith.constant 0 : index
    %680 = vector.load %arg13[%c0_203, %c0_204, %c0_205] : memref<2x2x128xf32, #tpu.memory_space<vmem>>, vector<1x2x128xf32>
    %681 = vector.shape_cast %680 : vector<1x2x128xf32> to vector<2x128xf32>
    %682 = vector.shape_cast %631 : vector<2x128xf32> to vector<1x2x128xf32>
    tpu.vector_store %arg13[%c0_203, %c0_204, %c0_205], %682 {strides = array<i32>} : memref<2x2x128xf32, #tpu.memory_space<vmem>>, vector<1x2x128xf32>,
    %c1_206 = arith.constant 1 : index
    %c0_207 = arith.constant 0 : index
    %c0_208 = arith.constant 0 : index
    %683 = vector.load %arg13[%c1_206, %c0_207, %c0_208] : memref<2x2x128xf32, #tpu.memory_space<vmem>>, vector<1x2x128xf32>
    %684 = vector.shape_cast %683 : vector<1x2x128xf32> to vector<2x128xf32>
    %685 = vector.shape_cast %669 : vector<2x128xf32> to vector<1x2x128xf32>
    tpu.vector_store %arg13[%c1_206, %c0_207, %c0_208], %685 {strides = array<i32>} : memref<2x2x128xf32, #tpu.memory_space<vmem>>, vector<1x2x128xf32>,
    %c0_209 = arith.constant 0 : index
    %c0_210 = arith.constant 0 : index
    %c0_211 = arith.constant 0 : index
    %686 = vector.load %arg15[%c0_209, %c0_210, %c0_211] : memref<8x2x128xf32, #tpu.memory_space<vmem>>, vector<8x2x128xf32>
    %c0_212 = arith.constant 0 : index
    %c0_213 = arith.constant 0 : index
    %687 = vector.load %arg10[%c0_212, %c0_213] : memref<1x128xf32, #tpu.memory_space<vmem>>, vector<1x128xf32>
    %688 = vector.shape_cast %687 : vector<1x128xf32> to vector<1x1x128xf32>
    %689 = vector.broadcast %688 : vector<1x1x128xf32> to vector<8x2x128xf32>
    %690 = arith.mulf %686, %689 : vector<8x2x128xf32>
    %cst_214 = arith.constant dense<0.000000e+00> : vector<8x2xf32>
    %691 = vector.multi_reduction <add>, %690, %cst_214 [2] : vector<8x2x128xf32> to vector<8x2xf32>
    %692 = vector.shape_cast %691 : vector<8x2xf32> to vector<8x2x1xf32>
    %c0_215 = arith.constant 0 : index
    %c0_216 = arith.constant 0 : index
    %693 = vector.load %arg11[%c0_215, %c0_216] : memref<1x1xf32, #tpu.memory_space<vmem>>, vector<1x1xf32>
    %694 = vector.shape_cast %693 : vector<1x1xf32> to vector<1x1x1xf32>
    %695 = vector.broadcast %694 : vector<1x1x1xf32> to vector<8x2x1xf32>
    %696 = arith.addf %692, %695 : vector<8x2x1xf32>
    %c0_217 = arith.constant 0 : index
    %c0_218 = arith.constant 0 : index
    %c0_219 = arith.constant 0 : index
    %697 = vector.load %arg12[%c0_217, %c0_218, %c0_219] : memref<8x2x1xf32, #tpu.memory_space<vmem>>, vector<8x2x1xf32>
    tpu.vector_store %arg12[%c0_217, %c0_218, %c0_219], %696 {strides = array<i32>} : memref<8x2x1xf32, #tpu.memory_space<vmem>>, vector<8x2x1xf32>,
    return
  }
}

</mosaic_0001>

<llo_original>
// kernel: tpu_custom_call.1
$region0: #{tpu_custom_call.1}
  #allocation0 [shape = 'u32[]', space=smem, size = 0x4, offset = 0x4, fixed_abs, tag = 'smem constant byte address 0x4 - core index']
  #allocation1 [shape = 'u32[72,128]{1,0:T(1,128)}', space=vmem, size = 0x9000, scoped, tag = 'internal scratch']
  #allocation2 [shape = 'f32[8,2,384]{2,1,0:T(2,128)}', space=vmem, size = 0x6000, scoped, tag = 'scratch operand']
  #allocation3 [shape = 'f32[8,2,128]{2,1,0:T(2,128)}', space=vmem, size = 0x2000, scoped, tag = 'scratch operand']
  #allocation4 [shape = 'f32[1,1]{1,0:T(1,128)S(1)}', space=vmem, size = 0x200, scoped, tag = 'scoped memory for tpu_custom_call.1']
  %s0 = inlined_call_operand.vmem [shape: f32[8,2,1], index: 0, kind: input, shape index: {}]
  %s1 = inlined_call_operand.vmem [shape: f32[2,2,128], index: 1, kind: input, shape index: {}]
  %s2 = inlined_call_operand.vmem [shape: f32[1,384], index: 2, kind: input, shape index: {}]
  %s3 = inlined_call_operand.vmem [shape: f32[1,384], index: 3, kind: input, shape index: {}]
  %s4 = inlined_call_operand.hbm [shape: f32[128,384], index: 4, kind: input, shape index: {}]
  %s5 = inlined_call_operand.vmem [shape: f32[1,384], index: 5, kind: input, shape index: {}]
  %s6 = inlined_call_operand.hbm [shape: f32[128,384], index: 6, kind: input, shape index: {}]
  %s7 = inlined_call_operand.vmem [shape: f32[1,384], index: 7, kind: input, shape index: {}]
  %s8 = inlined_call_operand.hbm [shape: f32[128,384], index: 8, kind: input, shape index: {}]
  %s9 = inlined_call_operand.vmem [shape: f32[1,384], index: 9, kind: input, shape index: {}]
  %s10 = inlined_call_operand.vmem [shape: f32[1,128], index: 10, kind: input, shape index: {}]
  %s11 = inlined_call_operand.<no memory space> [shape: f32[1,1], index: 11, kind: input, shape index: {}]
  %s12 = inlined_call_operand.vmem [shape: f32[8,2,1], index: 12, kind: output, shape index: {0}]
  %s13 = inlined_call_operand.hbm [shape: f32[2,2,128], index: 13, kind: output, shape index: {1}]
  %14 = xla_tuple %s12, %s13
  %s15 = sld [smem:[#allocation0]]
  $region78: #{tpu_custom_call.1} parent=0
    _
  %s17 = ssub.s32 1, %s15
  %s18 = scalar_select 0, %s17, %s15
  %v19 = vstv %s11
  %20 = vst [vmem:[#allocation4] sm:$0x1] %v19
  $region1: #{tpu_custom_call.1} parent=0
    #allocation5 [shape = 'u8[196608]{0}', space=vmem, size = 0x30000, scoped, tag = 'input window, operand 4, single buffered']
    #allocation6 [shape = 's32[1]{0}', space=sflag, size = 0x4, scoped, tag = 'scoped memory for tpu_custom_call.1']
    #allocation7 [shape = 's32[1]{0}', space=sflag, size = 0x4, scoped, tag = 'scoped memory for tpu_custom_call.1']
    #allocation8 [shape = 'u8[196608]{0}', space=vmem, size = 0x30000, scoped, tag = 'input window, operand 6, single buffered']
    #allocation9 [shape = 's32[1]{0}', space=sflag, size = 0x4, scoped, tag = 'scoped memory for tpu_custom_call.1']
    #allocation10 [shape = 'u8[196608]{0}', space=vmem, size = 0x30000, scoped, tag = 'input window, operand 8, single buffered']
    #allocation11 [shape = 'u8[2048]{0}', space=vmem, size = 0x800, scoped, tag = 'output window, operand 1, single buffered']
    %21 = vsyncpa [#allocation6], 0
    %22 = vsyncpa [#allocation9], 0
    %23 = vsyncpa [#allocation7], 0
    // Predicated region
    $region2: #{tpu_custom_call.1} parent=1 // pred_check
      _
    $region3: #{tpu_custom_call.1} parent=1 // pred_check_branch
      %25 = sbr.rel (0) target = $region5
    $region4: #{tpu_custom_call.1} parent=1 // pred_region
      _
    $region5: #{tpu_custom_call.1} parent=1 // pred_fallthru
      _
    // Predicated region
    $region6: #{tpu_custom_call.1} parent=1 // pred_check
      _
    $region7: #{tpu_custom_call.1} parent=1 // pred_check_branch
      %27 = sbr.rel (0) target = $region9
    $region8: #{tpu_custom_call.1} parent=1 // pred_region
      _
    $region9: #{tpu_custom_call.1} parent=1 // pred_fallthru
      _
    // Predicated region
    $region10: #{tpu_custom_call.1} parent=1 // pred_check
      _
    $region11: #{tpu_custom_call.1} parent=1 // pred_check_branch
      %29 = sbr.rel (0) target = $region13
    $region12: #{tpu_custom_call.1} parent=1 // pred_region
      _
    $region13: #{tpu_custom_call.1} parent=1 // pred_fallthru
      _
    // Predicated region
    $region14: #{tpu_custom_call.1} parent=1 // pred_check
      _
    $region15: #{tpu_custom_call.1} parent=1 // pred_check_branch
      %31 = sbr.rel (0) target = $region17
    $region16: #{tpu_custom_call.1} parent=1 // pred_region
      _
    $region17: #{tpu_custom_call.1} parent=1 // pred_fallthru
      _
    // Predicated region
    $region18: #{tpu_custom_call.1} parent=1 // pred_check
      _
    $region19: #{tpu_custom_call.1} parent=1 // pred_check_branch
      %33 = sbr.rel (0) target = $region21
    $region20: #{tpu_custom_call.1} parent=1 // pred_region
      %35 = vsyncadd [#allocation6], 0
      %s36 = sshll.u32 %s4, 4
      %s37 = int_to_ptr.hbm [resolvable:$true] %s36
      %s38 = sshll.u32 [#allocation5], 4
      %s39 = int_to_ptr.vmem [resolvable:$true] %s38
      %44 = dma.hbm_to_vmem [thread:$0]  %s37, 6144, %s39, [#allocation6], 384, 384, 24
    $region21: #{tpu_custom_call.1} parent=1 // pred_fallthru
      _
    // Predicated region
    $region22: #{tpu_custom_call.1} parent=1 // pred_check
      _
    $region23: #{tpu_custom_call.1} parent=1 // pred_check_branch
      %46 = sbr.rel (0) target = $region25
    $region24: #{tpu_custom_call.1} parent=1 // pred_region
      _
    $region25: #{tpu_custom_call.1} parent=1 // pred_fallthru
      _
    // Predicated region
    $region26: #{tpu_custom_call.1} parent=1 // pred_check
      _
    $region27: #{tpu_custom_call.1} parent=1 // pred_check_branch
      %48 = sbr.rel (0) target = $region29
    $region28: #{tpu_custom_call.1} parent=1 // pred_region
      %50 = vsyncadd [#allocation9], 0
      %s51 = sshll.u32 %s6, 4
      %s52 = int_to_ptr.hbm [resolvable:$true] %s51
      %s53 = sshll.u32 [#allocation8], 4
      %s54 = int_to_ptr.vmem [resolvable:$true] %s53
      %59 = dma.hbm_to_vmem [thread:$0]  %s52, 6144, %s54, [#allocation9], 384, 384, 24
    $region29: #{tpu_custom_call.1} parent=1 // pred_fallthru
      _
    // Predicated region
    $region30: #{tpu_custom_call.1} parent=1 // pred_check
      _
    $region31: #{tpu_custom_call.1} parent=1 // pred_check_branch
      %61 = sbr.rel (0) target = $region33
    $region32: #{tpu_custom_call.1} parent=1 // pred_region
      _
    $region33: #{tpu_custom_call.1} parent=1 // pred_fallthru
      _
    // Predicated region
    $region34: #{tpu_custom_call.1} parent=1 // pred_check
      _
    $region35: #{tpu_custom_call.1} parent=1 // pred_check_branch
      %63 = sbr.rel (0) target = $region37
    $region36: #{tpu_custom_call.1} parent=1 // pred_region
      %65 = vsyncadd [#allocation9], 0
      %s66 = sshll.u32 %s8, 4
      %s67 = int_to_ptr.hbm [resolvable:$true] %s66
      %s68 = sshll.u32 [#allocation10], 4
      %s69 = int_to_ptr.vmem [resolvable:$true] %s68
      %74 = dma.hbm_to_vmem [thread:$0]  %s67, 6144, %s69, [#allocation9], 384, 384, 24
    $region37: #{tpu_custom_call.1} parent=1 // pred_fallthru
      _
    // Predicated region
    $region38: #{tpu_custom_call.1} parent=1 // pred_check
      _
    $region39: #{tpu_custom_call.1} parent=1 // pred_check_branch
      %76 = sbr.rel (0) target = $region41
    $region40: #{tpu_custom_call.1} parent=1 // pred_region
      _
    $region41: #{tpu_custom_call.1} parent=1 // pred_fallthru
      _
    // Predicated region
    $region42: #{tpu_custom_call.1} parent=1 // pred_check
      _
    $region43: #{tpu_custom_call.1} parent=1 // pred_check_branch
      %78 = sbr.rel (0) target = $region45
    $region44: #{tpu_custom_call.1} parent=1 // pred_region
      _
    $region45: #{tpu_custom_call.1} parent=1 // pred_fallthru
      _
    // Predicated region
    $region46: #{tpu_custom_call.1} parent=1 // pred_check
      _
    $region47: #{tpu_custom_call.1} parent=1 // pred_check_branch
      %80 = sbr.rel (0) target = $region49
    $region48: #{tpu_custom_call.1} parent=1 // pred_region
      _
    $region49: #{tpu_custom_call.1} parent=1 // pred_fallthru
      _
    // Predicated region
    $region50: #{tpu_custom_call.1} parent=1 // pred_check
      _
    $region51: #{tpu_custom_call.1} parent=1 // pred_check_branch
      %82 = sbr.rel (0) target = $region53
    $region52: #{tpu_custom_call.1} parent=1 // pred_region
      %84 = dma.done [#allocation6], 6144
    $region53: #{tpu_custom_call.1} parent=1 // pred_fallthru
      _
    // Predicated region
    $region54: #{tpu_custom_call.1} parent=1 // pred_check
      _
    $region55: #{tpu_custom_call.1} parent=1 // pred_check_branch
      %86 = sbr.rel (0) target = $region57
    $region56: #{tpu_custom_call.1} parent=1 // pred_region
      %88 = dma.done [#allocation9], 6144
    $region57: #{tpu_custom_call.1} parent=1 // pred_fallthru
      _
    // Predicated region
    $region58: #{tpu_custom_call.1} parent=1 // pred_check
      _
    $region59: #{tpu_custom_call.1} parent=1 // pred_check_branch
      %90 = sbr.rel (0) target = $region61
    $region60: #{tpu_custom_call.1} parent=1 // pred_region
      %92 = dma.done [#allocation9], 6144
    $region61: #{tpu_custom_call.1} parent=1 // pred_fallthru
      _
    %v93 = vld [vmem:[#allocation5] sm:$0xff]
    %v94 = vld [vmem:[#allocation5 + $0x8] sm:$0xff]
    %v95 = vld [vmem:[#allocation5 + $0x10] sm:$0xff]
    %v96 = vld [vmem:[#allocation5 + $0x18] sm:$0xff]
    %v97 = vld [vmem:[#allocation5 + $0x20] sm:$0xff]
    %v98 = vld [vmem:[#allocation5 + $0x28] sm:$0xff]
    %v99 = vld [vmem:[#allocation5 + $0x30] sm:$0xff]
    %v100 = vld [vmem:[#allocation5 + $0x38] sm:$0xff]
    %v101 = vld [vmem:[#allocation5 + $0x40] sm:$0xff]
    %v102 = vld [vmem:[#allocation5 + $0x48] sm:$0xff]
    %v103 = vld [vmem:[#allocation5 + $0x50] sm:$0xff]
    %v104 = vld [vmem:[#allocation5 + $0x58] sm:$0xff]
    %v105 = vld [vmem:[#allocation5 + $0x60] sm:$0xff]
    %v106 = vld [vmem:[#allocation5 + $0x68] sm:$0xff]
    %v107 = vld [vmem:[#allocation5 + $0x70] sm:$0xff]
    %v108 = vld [vmem:[#allocation5 + $0x78] sm:$0xff]
    %v109 = vld [vmem:[#allocation5 + $0x80] sm:$0xff]
    %v110 = vld [vmem:[#allocation5 + $0x88] sm:$0xff]
    %v111 = vld [vmem:[#allocation5 + $0x90] sm:$0xff]
    %v112 = vld [vmem:[#allocation5 + $0x98] sm:$0xff]
    %v113 = vld [vmem:[#allocation5 + $0xa0] sm:$0xff]
    %v114 = vld [vmem:[#allocation5 + $0xa8] sm:$0xff]
    %v115 = vld [vmem:[#allocation5 + $0xb0] sm:$0xff]
    %v116 = vld [vmem:[#allocation5 + $0xb8] sm:$0xff]
    %v117 = vld [vmem:[#allocation5 + $0xc0] sm:$0xff]
    %v118 = vld [vmem:[#allocation5 + $0xc8] sm:$0xff]
    %v119 = vld [vmem:[#allocation5 + $0xd0] sm:$0xff]
    %v120 = vld [vmem:[#allocation5 + $0xd8] sm:$0xff]
    %v121 = vld [vmem:[#allocation5 + $0xe0] sm:$0xff]
    %v122 = vld [vmem:[#allocation5 + $0xe8] sm:$0xff]
    %v123 = vld [vmem:[#allocation5 + $0xf0] sm:$0xff]
    %v124 = vld [vmem:[#allocation5 + $0xf8] sm:$0xff]
    %v125 = vld [vmem:[#allocation5 + $0x100] sm:$0xff]
    %v126 = vld [vmem:[#allocation5 + $0x108] sm:$0xff]
    %v127 = vld [vmem:[#allocation5 + $0x110] sm:$0xff]
    %v128 = vld [vmem:[#allocation5 + $0x118] sm:$0xff]
    %v129 = vld [vmem:[#allocation5 + $0x120] sm:$0xff]
    %v130 = vld [vmem:[#allocation5 + $0x128] sm:$0xff]
    %v131 = vld [vmem:[#allocation5 + $0x130] sm:$0xff]
    %v132 = vld [vmem:[#allocation5 + $0x138] sm:$0xff]
    %v133 = vld [vmem:[#allocation5 + $0x140] sm:$0xff]
    %v134 = vld [vmem:[#allocation5 + $0x148] sm:$0xff]
    %v135 = vld [vmem:[#allocation5 + $0x150] sm:$0xff]
    %v136 = vld [vmem:[#allocation5 + $0x158] sm:$0xff]
    %v137 = vld [vmem:[#allocation5 + $0x160] sm:$0xff]
    %v138 = vld [vmem:[#allocation5 + $0x168] sm:$0xff]
    %v139 = vld [vmem:[#allocation5 + $0x170] sm:$0xff]
    %v140 = vld [vmem:[#allocation5 + $0x178] sm:$0xff]
    %v141 = vpack.c.bf16 %v96, %v93
    %v142 = vpack.c.bf16 %v97, %v94
    %v143 = vpack.c.bf16 %v98, %v95
    %v144 = vpack.c.bf16 %v102, %v99
    %v145 = vpack.c.bf16 %v103, %v100
    %v146 = vpack.c.bf16 %v104, %v101
    %v147 = vpack.c.bf16 %v108, %v105
    %v148 = vpack.c.bf16 %v109, %v106
    %v149 = vpack.c.bf16 %v110, %v107
    %v150 = vpack.c.bf16 %v114, %v111
    %v151 = vpack.c.bf16 %v115, %v112
    %v152 = vpack.c.bf16 %v116, %v113
    %v153 = vpack.c.bf16 %v120, %v117
    %v154 = vpack.c.bf16 %v121, %v118
    %v155 = vpack.c.bf16 %v122, %v119
    %v156 = vpack.c.bf16 %v126, %v123
    %v157 = vpack.c.bf16 %v127, %v124
    %v158 = vpack.c.bf16 %v128, %v125
    %v159 = vpack.c.bf16 %v132, %v129
    %v160 = vpack.c.bf16 %v133, %v130
    %v161 = vpack.c.bf16 %v134, %v131
    %v162 = vpack.c.bf16 %v138, %v135
    %v163 = vpack.c.bf16 %v139, %v136
    %v164 = vpack.c.bf16 %v140, %v137
    %v165 = vld [vmem:[#allocation10] sm:$0xff]
    %v166 = vld [vmem:[#allocation10 + $0x8] sm:$0xff]
    %v167 = vld [vmem:[#allocation10 + $0x10] sm:$0xff]
    %v168 = vld [vmem:[#allocation10 + $0x18] sm:$0xff]
    %v169 = vld [vmem:[#allocation10 + $0x20] sm:$0xff]
    %v170 = vld [vmem:[#allocation10 + $0x28] sm:$0xff]
    %v171 = vld [vmem:[#allocation10 + $0x30] sm:$0xff]
    %v172 = vld [vmem:[#allocation10 + $0x38] sm:$0xff]
    %v173 = vld [vmem:[#allocation10 + $0x40] sm:$0xff]
    %v174 = vld [vmem:[#allocation10 + $0x48] sm:$0xff]
    %v175 = vld [vmem:[#allocation10 + $0x50] sm:$0xff]
    %v176 = vld [vmem:[#allocation10 + $0x58] sm:$0xff]
    %v177 = vld [vmem:[#allocation10 + $0x60] sm:$0xff]
    %v178 = vld [vmem:[#allocation10 + $0x68] sm:$0xff]
    %v179 = vld [vmem:[#allocation10 + $0x70] sm:$0xff]
    %v180 = vld [vmem:[#allocation10 + $0x78] sm:$0xff]
    %v181 = vld [vmem:[#allocation10 + $0x80] sm:$0xff]
    %v182 = vld [vmem:[#allocation10 + $0x88] sm:$0xff]
    %v183 = vld [vmem:[#allocation10 + $0x90] sm:$0xff]
    %v184 = vld [vmem:[#allocation10 + $0x98] sm:$0xff]
    %v185 = vld [vmem:[#allocation10 + $0xa0] sm:$0xff]
    %v186 = vld [vmem:[#allocation10 + $0xa8] sm:$0xff]
    %v187 = vld [vmem:[#allocation10 + $0xb0] sm:$0xff]
    %v188 = vld [vmem:[#allocation10 + $0xb8] sm:$0xff]
    %v189 = vld [vmem:[#allocation10 + $0xc0] sm:$0xff]
    %v190 = vld [vmem:[#allocation10 + $0xc8] sm:$0xff]
    %v191 = vld [vmem:[#allocation10 + $0xd0] sm:$0xff]
    %v192 = vld [vmem:[#allocation10 + $0xd8] sm:$0xff]
    %v193 = vld [vmem:[#allocation10 + $0xe0] sm:$0xff]
    %v194 = vld [vmem:[#allocation10 + $0xe8] sm:$0xff]
    %v195 = vld [vmem:[#allocation10 + $0xf0] sm:$0xff]
    %v196 = vld [vmem:[#allocation10 + $0xf8] sm:$0xff]
    %v197 = vld [vmem:[#allocation10 + $0x100] sm:$0xff]
    %v198 = vld [vmem:[#allocation10 + $0x108] sm:$0xff]
    %v199 = vld [vmem:[#allocation10 + $0x110] sm:$0xff]
    %v200 = vld [vmem:[#allocation10 + $0x118] sm:$0xff]
    %v201 = vld [vmem:[#allocation10 + $0x120] sm:$0xff]
    %v202 = vld [vmem:[#allocation10 + $0x128] sm:$0xff]
    %v203 = vld [vmem:[#allocation10 + $0x130] sm:$0xff]
    %v204 = vld [vmem:[#allocation10 + $0x138] sm:$0xff]
    %v205 = vld [vmem:[#allocation10 + $0x140] sm:$0xff]
    %v206 = vld [vmem:[#allocation10 + $0x148] sm:$0xff]
    %v207 = vld [vmem:[#allocation10 + $0x150] sm:$0xff]
    %v208 = vld [vmem:[#allocation10 + $0x158] sm:$0xff]
    %v209 = vld [vmem:[#allocation10 + $0x160] sm:$0xff]
    %v210 = vld [vmem:[#allocation10 + $0x168] sm:$0xff]
    %v211 = vld [vmem:[#allocation10 + $0x170] sm:$0xff]
    %v212 = vld [vmem:[#allocation10 + $0x178] sm:$0xff]
    %v213 = vpack.c.bf16 %v168, %v165
    %v214 = vpack.c.bf16 %v169, %v166
    %v215 = vpack.c.bf16 %v170, %v167
    %v216 = vpack.c.bf16 %v174, %v171
    %v217 = vpack.c.bf16 %v175, %v172
    %v218 = vpack.c.bf16 %v176, %v173
    %v219 = vpack.c.bf16 %v180, %v177
    %v220 = vpack.c.bf16 %v181, %v178
    %v221 = vpack.c.bf16 %v182, %v179
    %v222 = vpack.c.bf16 %v186, %v183
    %v223 = vpack.c.bf16 %v187, %v184
    %v224 = vpack.c.bf16 %v188, %v185
    %v225 = vpack.c.bf16 %v192, %v189
    %v226 = vpack.c.bf16 %v193, %v190
    %v227 = vpack.c.bf16 %v194, %v191
    %v228 = vpack.c.bf16 %v198, %v195
    %v229 = vpack.c.bf16 %v199, %v196
    %v230 = vpack.c.bf16 %v200, %v197
    %v231 = vpack.c.bf16 %v204, %v201
    %v232 = vpack.c.bf16 %v205, %v202
    %v233 = vpack.c.bf16 %v206, %v203
    %v234 = vpack.c.bf16 %v210, %v207
    %v235 = vpack.c.bf16 %v211, %v208
    %v236 = vpack.c.bf16 %v212, %v209
    %v237 = vld [vmem:[#allocation8] sm:$0xff]
    %v238 = vld [vmem:[#allocation8 + $0x8] sm:$0xff]
    %v239 = vld [vmem:[#allocation8 + $0x10] sm:$0xff]
    %v240 = vld [vmem:[#allocation8 + $0x18] sm:$0xff]
    %v241 = vld [vmem:[#allocation8 + $0x20] sm:$0xff]
    %v242 = vld [vmem:[#allocation8 + $0x28] sm:$0xff]
    %v243 = vld [vmem:[#allocation8 + $0x30] sm:$0xff]
    %v244 = vld [vmem:[#allocation8 + $0x38] sm:$0xff]
    %v245 = vld [vmem:[#allocation8 + $0x40] sm:$0xff]
    %v246 = vld [vmem:[#allocation8 + $0x48] sm:$0xff]
    %v247 = vld [vmem:[#allocation8 + $0x50] sm:$0xff]
    %v248 = vld [vmem:[#allocation8 + $0x58] sm:$0xff]
    %v249 = vld [vmem:[#allocation8 + $0x60] sm:$0xff]
    %v250 = vld [vmem:[#allocation8 + $0x68] sm:$0xff]
    %v251 = vld [vmem:[#allocation8 + $0x70] sm:$0xff]
    %v252 = vld [vmem:[#allocation8 + $0x78] sm:$0xff]
    %v253 = vld [vmem:[#allocation8 + $0x80] sm:$0xff]
    %v254 = vld [vmem:[#allocation8 + $0x88] sm:$0xff]
    %v255 = vld [vmem:[#allocation8 + $0x90] sm:$0xff]
    %v256 = vld [vmem:[#allocation8 + $0x98] sm:$0xff]
    %v257 = vld [vmem:[#allocation8 + $0xa0] sm:$0xff]
    %v258 = vld [vmem:[#allocation8 + $0xa8] sm:$0xff]
    %v259 = vld [vmem:[#allocation8 + $0xb0] sm:$0xff]
    %v260 = vld [vmem:[#allocation8 + $0xb8] sm:$0xff]
    %v261 = vld [vmem:[#allocation8 + $0xc0] sm:$0xff]
    %v262 = vld [vmem:[#allocation8 + $0xc8] sm:$0xff]
    %v263 = vld [vmem:[#allocation8 + $0xd0] sm:$0xff]
    %v264 = vld [vmem:[#allocation8 + $0xd8] sm:$0xff]
    %v265 = vld [vmem:[#allocation8 + $0xe0] sm:$0xff]
    %v266 = vld [vmem:[#allocation8 + $0xe8] sm:$0xff]
    %v267 = vld [vmem:[#allocation8 + $0xf0] sm:$0xff]
    %v268 = vld [vmem:[#allocation8 + $0xf8] sm:$0xff]
    %v269 = vld [vmem:[#allocation8 + $0x100] sm:$0xff]
    %v270 = vld [vmem:[#allocation8 + $0x108] sm:$0xff]
    %v271 = vld [vmem:[#allocation8 + $0x110] sm:$0xff]
    %v272 = vld [vmem:[#allocation8 + $0x118] sm:$0xff]
    %v273 = vld [vmem:[#allocation8 + $0x120] sm:$0xff]
    %v274 = vld [vmem:[#allocation8 + $0x128] sm:$0xff]
    %v275 = vld [vmem:[#allocation8 + $0x130] sm:$0xff]
    %v276 = vld [vmem:[#allocation8 + $0x138] sm:$0xff]
    %v277 = vld [vmem:[#allocation8 + $0x140] sm:$0xff]
    %v278 = vld [vmem:[#allocation8 + $0x148] sm:$0xff]
    %v279 = vld [vmem:[#allocation8 + $0x150] sm:$0xff]
    %v280 = vld [vmem:[#allocation8 + $0x158] sm:$0xff]
    %v281 = vld [vmem:[#allocation8 + $0x160] sm:$0xff]
    %v282 = vld [vmem:[#allocation8 + $0x168] sm:$0xff]
    %v283 = vld [vmem:[#allocation8 + $0x170] sm:$0xff]
    %v284 = vld [vmem:[#allocation8 + $0x178] sm:$0xff]
    %v285 = vpack.c.bf16 %v240, %v237
    %v286 = vpack.c.bf16 %v241, %v238
    %v287 = vpack.c.bf16 %v242, %v239
    %v288 = vpack.c.bf16 %v246, %v243
    %v289 = vpack.c.bf16 %v247, %v244
    %v290 = vpack.c.bf16 %v248, %v245
    %v291 = vpack.c.bf16 %v252, %v249
    %v292 = vpack.c.bf16 %v253, %v250
    %v293 = vpack.c.bf16 %v254, %v251
    %v294 = vpack.c.bf16 %v258, %v255
    %v295 = vpack.c.bf16 %v259, %v256
    %v296 = vpack.c.bf16 %v260, %v257
    %v297 = vpack.c.bf16 %v264, %v261
    %v298 = vpack.c.bf16 %v265, %v262
    %v299 = vpack.c.bf16 %v266, %v263
    %v300 = vpack.c.bf16 %v270, %v267
    %v301 = vpack.c.bf16 %v271, %v268
    %v302 = vpack.c.bf16 %v272, %v269
    %v303 = vpack.c.bf16 %v276, %v273
    %v304 = vpack.c.bf16 %v277, %v274
    %v305 = vpack.c.bf16 %v278, %v275
    %v306 = vpack.c.bf16 %v282, %v279
    %v307 = vpack.c.bf16 %v283, %v280
    %v308 = vpack.c.bf16 %v284, %v281
    %v309 = vld [vmem:[%s5] sm:$0x7]
    %v310 = vld [vmem:[%s9] sm:$0x7]
    %v311 = vld [vmem:[%s7] sm:$0x7]
    %v312 = vld [vmem:[%s0] sm:$0x3]
    %v313 = vld [vmem:[%s0 + $0x2] sm:$0x3]
    %v314 = vld [vmem:[%s0 + $0x4] sm:$0x3]
    %v315 = vld [vmem:[%s0 + $0x6] sm:$0x3]
    %v316 = vld [vmem:[%s0 + $0x8] sm:$0x3]
    %v317 = vld [vmem:[%s0 + $0xa] sm:$0x3]
    %v318 = vld [vmem:[%s0 + $0xc] sm:$0x3]
    %v319 = vld [vmem:[%s0 + $0xe] sm:$0x3]
    %v320 = vld [vmem:[%s2] sm:$0x7]
    %322 = vset.pattern.permute.xlu0 0
    %323 = vperm.xlu0 %322, %v312
    %v324 = vpop.permute.xlu0 %323
    %327 = vset.pattern.permute.xlu0 0
    %328 = vperm.xlu0 %327, %v313
    %v329 = vpop.permute.xlu0 %328
    %332 = vset.pattern.permute.xlu0 0
    %333 = vperm.xlu0 %332, %v314
    %v334 = vpop.permute.xlu0 %333
    %337 = vset.pattern.permute.xlu0 0
    %338 = vperm.xlu0 %337, %v315
    %v339 = vpop.permute.xlu0 %338
    %342 = vset.pattern.permute.xlu0 0
    %343 = vperm.xlu0 %342, %v316
    %v344 = vpop.permute.xlu0 %343
    %347 = vset.pattern.permute.xlu0 0
    %348 = vperm.xlu0 %347, %v317
    %v349 = vpop.permute.xlu0 %348
    %352 = vset.pattern.permute.xlu0 0
    %353 = vperm.xlu0 %352, %v318
    %v354 = vpop.permute.xlu0 %353
    %357 = vset.pattern.permute.xlu0 0
    %358 = vperm.xlu0 %357, %v319
    %v359 = vpop.permute.xlu0 %358
    %v362 = vperm.slane %v320, 0
    %v363 = vperm.slane %v320, 1
    %v364 = vperm.slane %v320, 2
    %v368 = vmul.f32 %v324, %v362
    %v369 = vmul.f32 %v324, %v363
    %v370 = vmul.f32 %v324, %v364
    %v371 = vmul.f32 %v329, %v362
    %v372 = vmul.f32 %v329, %v363
    %v373 = vmul.f32 %v329, %v364
    %v374 = vmul.f32 %v334, %v362
    %v375 = vmul.f32 %v334, %v363
    %v376 = vmul.f32 %v334, %v364
    %v377 = vmul.f32 %v339, %v362
    %v378 = vmul.f32 %v339, %v363
    %v379 = vmul.f32 %v339, %v364
    %v380 = vmul.f32 %v344, %v362
    %v381 = vmul.f32 %v344, %v363
    %v382 = vmul.f32 %v344, %v364
    %v383 = vmul.f32 %v349, %v362
    %v384 = vmul.f32 %v349, %v363
    %v385 = vmul.f32 %v349, %v364
    %v386 = vmul.f32 %v354, %v362
    %v387 = vmul.f32 %v354, %v363
    %v388 = vmul.f32 %v354, %v364
    %v389 = vmul.f32 %v359, %v362
    %v390 = vmul.f32 %v359, %v363
    %v391 = vmul.f32 %v359, %v364
    %v392 = vld [vmem:[%s3] sm:$0x7]
    %v394 = vperm.slane %v392, 0
    %v395 = vperm.slane %v392, 1
    %v396 = vperm.slane %v392, 2
    %v400 = vadd.f32 %v368, %v394
    %v401 = vadd.f32 %v369, %v395
    %v402 = vadd.f32 %v370, %v396
    %v403 = vadd.f32 %v371, %v394
    %v404 = vadd.f32 %v372, %v395
    %v405 = vadd.f32 %v373, %v396
    %v406 = vadd.f32 %v374, %v394
    %v407 = vadd.f32 %v375, %v395
    %v408 = vadd.f32 %v376, %v396
    %v409 = vadd.f32 %v377, %v394
    %v410 = vadd.f32 %v378, %v395
    %v411 = vadd.f32 %v379, %v396
    %v412 = vadd.f32 %v380, %v394
    %v413 = vadd.f32 %v381, %v395
    %v414 = vadd.f32 %v382, %v396
    %v415 = vadd.f32 %v383, %v394
    %v416 = vadd.f32 %v384, %v395
    %v417 = vadd.f32 %v385, %v396
    %v418 = vadd.f32 %v386, %v394
    %v419 = vadd.f32 %v387, %v395
    %v420 = vadd.f32 %v388, %v396
    %v421 = vadd.f32 %v389, %v394
    %v422 = vadd.f32 %v390, %v395
    %v423 = vadd.f32 %v391, %v396
    %v448 = vrot.slane %v401, 6
    %v449 = vrot.slane %v402, 4
    %v450 = vrot.slane %v404, 6
    %v451 = vrot.slane %v405, 4
    %v452 = vrot.slane %v407, 6
    %v453 = vrot.slane %v408, 4
    %v454 = vrot.slane %v410, 6
    %v455 = vrot.slane %v411, 4
    %v456 = vrot.slane %v413, 6
    %v457 = vrot.slane %v414, 4
    %v458 = vrot.slane %v416, 6
    %v459 = vrot.slane %v417, 4
    %v460 = vrot.slane %v419, 6
    %v461 = vrot.slane %v420, 4
    %v462 = vrot.slane %v422, 6
    %v463 = vrot.slane %v423, 4
    %vm464 = vcmask 1041408
    %v465 = vsel %vm464, %v400, %v448
    %vm466 = vcmask 1043456
    %v467 = vsel %vm466, %v465, %v449
    %v468 = vsel %vm464, %v403, %v450
    %v469 = vsel %vm466, %v468, %v451
    %v470 = vsel %vm464, %v406, %v452
    %v471 = vsel %vm466, %v470, %v453
    %v472 = vsel %vm464, %v409, %v454
    %v473 = vsel %vm466, %v472, %v455
    %v474 = vsel %vm464, %v412, %v456
    %v475 = vsel %vm466, %v474, %v457
    %v476 = vsel %vm464, %v415, %v458
    %v477 = vsel %vm466, %v476, %v459
    %v478 = vsel %vm464, %v418, %v460
    %v479 = vsel %vm466, %v478, %v461
    %v480 = vsel %vm464, %v421, %v462
    %v481 = vsel %vm466, %v480, %v463
    %490 = vst [vmem:[#allocation2] sm:$0x3f] %v467
    %491 = vst [vmem:[#allocation2 + $0x6] sm:$0x3f] %v469
    %492 = vst [vmem:[#allocation2 + $0xc] sm:$0x3f] %v471
    %493 = vst [vmem:[#allocation2 + $0x12] sm:$0x3f] %v473
    %494 = vst [vmem:[#allocation2 + $0x18] sm:$0x3f] %v475
    %495 = vst [vmem:[#allocation2 + $0x1e] sm:$0x3f] %v477
    %496 = vst [vmem:[#allocation2 + $0x24] sm:$0x3f] %v479
    %497 = vst [vmem:[#allocation2 + $0x2a] sm:$0x3f] %v481
    %v498 = vld [vmem:[%s1] sm:$0x3]
    %s499 = scalar_lea.vmem %s1, 2
    %v500 = vld [vmem:[%s499] sm:$0x3]
    %v501 = vpack.c.bf16 %v498, %v498
    %v503 = vperm.slane %v309, 0
    %v504 = vperm.slane %v309, 1
    %v505 = vperm.slane %v309, 2
    %509 = vmatpush.bf16.msra.mxu0 %v162
    %510 = vmatpush.bf16.msra.mxu0 %v159
    %511 = vmatpush.bf16.msra.mxu0 %v156
    %512 = vmatpush.bf16.msra.mxu0 %v153
    %513 = vmatpush.bf16.msra.mxu0 %v150
    %514 = vmatpush.bf16.msra.mxu0 %v147
    %515 = vmatpush.bf16.msra.mxu0 %v144
    %516 = vmatpush.bf16.msra.mxu0 %v141
    %517 = vmatmul.bf16.gmra.mxu0 %v501
    %v518 = vpop.f32.mrf.mxu0
    %v519 = vadd.f32 %v503, %v518
    %v520 = vpop.f32.mrf.mxu0
    %521 = vdwg.mxu0
    %522 = vmatpush.bf16.msra.mxu0 %v163
    %523 = vmatpush.bf16.msra.mxu0 %v160
    %524 = vmatpush.bf16.msra.mxu0 %v157
    %525 = vmatpush.bf16.msra.mxu0 %v154
    %526 = vmatpush.bf16.msra.mxu0 %v151
    %527 = vmatpush.bf16.msra.mxu0 %v148
    %528 = vmatpush.bf16.msra.mxu0 %v145
    %529 = vmatpush.bf16.msra.mxu0 %v142
    %530 = vmatmul.bf16.gmra.mxu0 %v501
    %v531 = vpop.f32.mrf.mxu0
    %v532 = vadd.f32 %v504, %v531
    %v533 = vpop.f32.mrf.mxu0
    %534 = vdwg.mxu0
    %535 = vmatpush.bf16.msra.mxu0 %v164
    %536 = vmatpush.bf16.msra.mxu0 %v161
    %537 = vmatpush.bf16.msra.mxu0 %v158
    %538 = vmatpush.bf16.msra.mxu0 %v155
    %539 = vmatpush.bf16.msra.mxu0 %v152
    %540 = vmatpush.bf16.msra.mxu0 %v149
    %541 = vmatpush.bf16.msra.mxu0 %v146
    %542 = vmatpush.bf16.msra.mxu0 %v143
    %543 = vmatmul.bf16.gmra.mxu0 %v501
    %v544 = vpop.f32.mrf.mxu0
    %v545 = vadd.f32 %v505, %v544
    %v546 = vpop.f32.mrf.mxu0
    %547 = vdwg.mxu0
    %v548 = vpack.c.bf16 %v500, %v500
    %v550 = vperm.slane %v310, 0
    %v551 = vperm.slane %v310, 1
    %v552 = vperm.slane %v310, 2
    %556 = vmatpush.bf16.msra.mxu0 %v234
    %557 = vmatpush.bf16.msra.mxu0 %v231
    %558 = vmatpush.bf16.msra.mxu0 %v228
    %559 = vmatpush.bf16.msra.mxu0 %v225
    %560 = vmatpush.bf16.msra.mxu0 %v222
    %561 = vmatpush.bf16.msra.mxu0 %v219
    %562 = vmatpush.bf16.msra.mxu0 %v216
    %563 = vmatpush.bf16.msra.mxu0 %v213
    %564 = vmatmul.bf16.gmra.mxu0 %v548
    %v565 = vpop.f32.mrf.mxu0
    %v566 = vadd.f32 %v550, %v565
    %v567 = vpop.f32.mrf.mxu0
    %568 = vdwg.mxu0
    %569 = vmatpush.bf16.msra.mxu0 %v235
    %570 = vmatpush.bf16.msra.mxu0 %v232
    %571 = vmatpush.bf16.msra.mxu0 %v229
    %572 = vmatpush.bf16.msra.mxu0 %v226
    %573 = vmatpush.bf16.msra.mxu0 %v223
    %574 = vmatpush.bf16.msra.mxu0 %v220
    %575 = vmatpush.bf16.msra.mxu0 %v217
    %576 = vmatpush.bf16.msra.mxu0 %v214
    %577 = vmatmul.bf16.gmra.mxu0 %v548
    %v578 = vpop.f32.mrf.mxu0
    %v579 = vadd.f32 %v551, %v578
    %v580 = vpop.f32.mrf.mxu0
    %581 = vdwg.mxu0
    %582 = vmatpush.bf16.msra.mxu0 %v236
    %583 = vmatpush.bf16.msra.mxu0 %v233
    %584 = vmatpush.bf16.msra.mxu0 %v230
    %585 = vmatpush.bf16.msra.mxu0 %v227
    %586 = vmatpush.bf16.msra.mxu0 %v224
    %587 = vmatpush.bf16.msra.mxu0 %v221
    %588 = vmatpush.bf16.msra.mxu0 %v218
    %589 = vmatpush.bf16.msra.mxu0 %v215
    %590 = vmatmul.bf16.gmra.mxu0 %v548
    %v591 = vpop.f32.mrf.mxu0
    %v592 = vadd.f32 %v552, %v591
    %v593 = vpop.f32.mrf.mxu0
    %594 = vdwg.mxu0
    %v595 = vld [vmem:[#allocation2] sm:$0x3f]
    %v596 = vadd.f32 %v595, %v519
    %v597 = vmul.f32 %v596, 0.5
    %v598 = vtanh.pop %v597
    %v599 = vadd.f32 %v598, 1.0
    %v600 = vmul.f32 %v599, 0.5
    %v602 = vrot.slane %v595, 2
    %v604 = vadd.f32 %v602, %v532
    %v605 = vmul.f32 %v604, 0.5
    %v606 = vtanh.pop %v605
    %v607 = vadd.f32 %v606, 1.0
    %v608 = vmul.f32 %v607, 0.5
    %v609 = vmul.f32 %v600, %v545
    %v610 = vrot.slane %v595, 4
    %v612 = vadd.f32 %v610, %v609
    %v613 = vtanh.pop %v612
    %v614 = vsub.f32 1.0, %v608
    %v615 = vmul.f32 %v614, %v613
    %v616 = vmul.f32 %v608, %v498
    %v617 = vadd.f32 %v615, %v616
    %v618 = vpack.c.bf16 %v617, %v617
    %v620 = vperm.slane %v311, 0
    %v621 = vperm.slane %v311, 1
    %v622 = vperm.slane %v311, 2
    %626 = vmatpush.bf16.msra.mxu0 %v306
    %627 = vmatpush.bf16.msra.mxu0 %v303
    %628 = vmatpush.bf16.msra.mxu0 %v300
    %629 = vmatpush.bf16.msra.mxu0 %v297
    %630 = vmatpush.bf16.msra.mxu0 %v294
    %631 = vmatpush.bf16.msra.mxu0 %v291
    %632 = vmatpush.bf16.msra.mxu0 %v288
    %633 = vmatpush.bf16.msra.mxu0 %v285
    %634 = vmatmul.bf16.gmra.mxu0 %v618
    %v635 = vpop.f32.mrf.mxu0
    %v636 = vadd.f32 %v620, %v635
    %v637 = vpop.f32.mrf.mxu0
    %638 = vdwg.mxu0
    %639 = vmatpush.bf16.msra.mxu0 %v307
    %640 = vmatpush.bf16.msra.mxu0 %v304
    %641 = vmatpush.bf16.msra.mxu0 %v301
    %642 = vmatpush.bf16.msra.mxu0 %v298
    %643 = vmatpush.bf16.msra.mxu0 %v295
    %644 = vmatpush.bf16.msra.mxu0 %v292
    %645 = vmatpush.bf16.msra.mxu0 %v289
    %646 = vmatpush.bf16.msra.mxu0 %v286
    %647 = vmatmul.bf16.gmra.mxu0 %v618
    %v648 = vpop.f32.mrf.mxu0
    %v649 = vadd.f32 %v621, %v648
    %v650 = vpop.f32.mrf.mxu0
    %651 = vdwg.mxu0
    %652 = vmatpush.bf16.msra.mxu0 %v308
    %653 = vmatpush.bf16.msra.mxu0 %v305
    %654 = vmatpush.bf16.msra.mxu0 %v302
    %655 = vmatpush.bf16.msra.mxu0 %v299
    %656 = vmatpush.bf16.msra.mxu0 %v296
    %657 = vmatpush.bf16.msra.mxu0 %v293
    %658 = vmatpush.bf16.msra.mxu0 %v290
    %659 = vmatpush.bf16.msra.mxu0 %v287
    %660 = vmatmul.bf16.gmra.mxu0 %v618
    %v661 = vpop.f32.mrf.mxu0
    %v662 = vadd.f32 %v622, %v661
    %v663 = vpop.f32.mrf.mxu0
    %664 = vdwg.mxu0
    %665 = vmatpush.bf16.msra.mxu0 %v162
    %666 = vmatpush.bf16.msra.mxu0 %v159
    %667 = vmatpush.bf16.msra.mxu0 %v156
    %668 = vmatpush.bf16.msra.mxu0 %v153
    %669 = vmatpush.bf16.msra.mxu0 %v150
    %670 = vmatpush.bf16.msra.mxu0 %v147
    %671 = vmatpush.bf16.msra.mxu0 %v144
    %672 = vmatpush.bf16.msra.mxu0 %v141
    %673 = vmatmul.bf16.gmra.mxu0 %v618
    %v674 = vpop.f32.mrf.mxu0
    %v675 = vadd.f32 %v503, %v674
    %v676 = vpop.f32.mrf.mxu0
    %677 = vdwg.mxu0
    %678 = vmatpush.bf16.msra.mxu0 %v163
    %679 = vmatpush.bf16.msra.mxu0 %v160
    %680 = vmatpush.bf16.msra.mxu0 %v157
    %681 = vmatpush.bf16.msra.mxu0 %v154
    %682 = vmatpush.bf16.msra.mxu0 %v151
    %683 = vmatpush.bf16.msra.mxu0 %v148
    %684 = vmatpush.bf16.msra.mxu0 %v145
    %685 = vmatpush.bf16.msra.mxu0 %v142
    %686 = vmatmul.bf16.gmra.mxu0 %v618
    %v687 = vpop.f32.mrf.mxu0
    %v688 = vadd.f32 %v504, %v687
    %v689 = vpop.f32.mrf.mxu0
    %690 = vdwg.mxu0
    %691 = vmatpush.bf16.msra.mxu0 %v164
    %692 = vmatpush.bf16.msra.mxu0 %v161
    %693 = vmatpush.bf16.msra.mxu0 %v158
    %694 = vmatpush.bf16.msra.mxu0 %v155
    %695 = vmatpush.bf16.msra.mxu0 %v152
    %696 = vmatpush.bf16.msra.mxu0 %v149
    %697 = vmatpush.bf16.msra.mxu0 %v146
    %698 = vmatpush.bf16.msra.mxu0 %v143
    %699 = vmatmul.bf16.gmra.mxu0 %v618
    %v700 = vpop.f32.mrf.mxu0
    %v701 = vadd.f32 %v505, %v700
    %v702 = vpop.f32.mrf.mxu0
    %703 = vdwg.mxu0
    %v704 = vadd.f32 %v636, %v566
    %v705 = vmul.f32 %v704, 0.5
    %v706 = vtanh.pop %v705
    %v707 = vadd.f32 %v706, 1.0
    %v708 = vmul.f32 %v707, 0.5
    %v709 = vadd.f32 %v649, %v579
    %v710 = vmul.f32 %v709, 0.5
    %v711 = vtanh.pop %v710
    %v712 = vadd.f32 %v711, 1.0
    %v713 = vmul.f32 %v712, 0.5
    %v714 = vmul.f32 %v708, %v592
    %v715 = vadd.f32 %v662, %v714
    %v716 = vtanh.pop %v715
    %v717 = vsub.f32 1.0, %v713
    %v718 = vmul.f32 %v717, %v716
    %v719 = vmul.f32 %v713, %v500
    %v720 = vadd.f32 %v718, %v719
    %v721 = vpack.c.bf16 %v720, %v720
    %722 = vmatpush.bf16.msra.mxu0 %v234
    %723 = vmatpush.bf16.msra.mxu0 %v231
    %724 = vmatpush.bf16.msra.mxu0 %v228
    %725 = vmatpush.bf16.msra.mxu0 %v225
    %726 = vmatpush.bf16.msra.mxu0 %v222
    %727 = vmatpush.bf16.msra.mxu0 %v219
    %728 = vmatpush.bf16.msra.mxu0 %v216
    %729 = vmatpush.bf16.msra.mxu0 %v213
    %730 = vmatmul.bf16.gmra.mxu0 %v721
    %v731 = vpop.f32.mrf.mxu0
    %v732 = vadd.f32 %v550, %v731
    %v733 = vpop.f32.mrf.mxu0
    %734 = vdwg.mxu0
    %735 = vmatpush.bf16.msra.mxu0 %v235
    %736 = vmatpush.bf16.msra.mxu0 %v232
    %737 = vmatpush.bf16.msra.mxu0 %v229
    %738 = vmatpush.bf16.msra.mxu0 %v226
    %739 = vmatpush.bf16.msra.mxu0 %v223
    %740 = vmatpush.bf16.msra.mxu0 %v220
    %741 = vmatpush.bf16.msra.mxu0 %v217
    %742 = vmatpush.bf16.msra.mxu0 %v214
    %743 = vmatmul.bf16.gmra.mxu0 %v721
    %v744 = vpop.f32.mrf.mxu0
    %v745 = vadd.f32 %v551, %v744
    %v746 = vpop.f32.mrf.mxu0
    %747 = vdwg.mxu0
    %748 = vmatpush.bf16.msra.mxu0 %v236
    %749 = vmatpush.bf16.msra.mxu0 %v233
    %750 = vmatpush.bf16.msra.mxu0 %v230
    %751 = vmatpush.bf16.msra.mxu0 %v227
    %752 = vmatpush.bf16.msra.mxu0 %v224
    %753 = vmatpush.bf16.msra.mxu0 %v221
    %754 = vmatpush.bf16.msra.mxu0 %v218
    %755 = vmatpush.bf16.msra.mxu0 %v215
    %756 = vmatmul.bf16.gmra.mxu0 %v721
    %v757 = vpop.f32.mrf.mxu0
    %v758 = vadd.f32 %v552, %v757
    %v759 = vpop.f32.mrf.mxu0
    %760 = vdwg.mxu0
    %v761 = vmax.f32 %v720, 0.0
    %762 = vst [vmem:[#allocation3] sm:$0x3] %v761
    %s763 = scalar_lea.vmem [#allocation2], 6
    %v764 = vld [vmem:[%s763] sm:$0x3f]
    %v765 = vadd.f32 %v764, %v675
    %v766 = vmul.f32 %v765, 0.5
    %v767 = vtanh.pop %v766
    %v768 = vadd.f32 %v767, 1.0
    %v769 = vmul.f32 %v768, 0.5
    %v771 = vrot.slane %v764, 2
    %v773 = vadd.f32 %v771, %v688
    %v774 = vmul.f32 %v773, 0.5
    %v775 = vtanh.pop %v774
    %v776 = vadd.f32 %v775, 1.0
    %v777 = vmul.f32 %v776, 0.5
    %v778 = vmul.f32 %v769, %v701
    %v779 = vrot.slane %v764, 4
    %v781 = vadd.f32 %v779, %v778
    %v782 = vtanh.pop %v781
    %v783 = vsub.f32 1.0, %v777
    %v784 = vmul.f32 %v783, %v782
    %v785 = vmul.f32 %v777, %v617
    %v786 = vadd.f32 %v784, %v785
    %v787 = vpack.c.bf16 %v786, %v786
    %788 = vmatpush.bf16.msra.mxu0 %v306
    %789 = vmatpush.bf16.msra.mxu0 %v303
    %790 = vmatpush.bf16.msra.mxu0 %v300
    %791 = vmatpush.bf16.msra.mxu0 %v297
    %792 = vmatpush.bf16.msra.mxu0 %v294
    %793 = vmatpush.bf16.msra.mxu0 %v291
    %794 = vmatpush.bf16.msra.mxu0 %v288
    %795 = vmatpush.bf16.msra.mxu0 %v285
    %796 = vmatmul.bf16.gmra.mxu0 %v787
    %v797 = vpop.f32.mrf.mxu0
    %v798 = vadd.f32 %v620, %v797
    %v799 = vpop.f32.mrf.mxu0
    %800 = vdwg.mxu0
    %801 = vmatpush.bf16.msra.mxu0 %v307
    %802 = vmatpush.bf16.msra.mxu0 %v304
    %803 = vmatpush.bf16.msra.mxu0 %v301
    %804 = vmatpush.bf16.msra.mxu0 %v298
    %805 = vmatpush.bf16.msra.mxu0 %v295
    %806 = vmatpush.bf16.msra.mxu0 %v292
    %807 = vmatpush.bf16.msra.mxu0 %v289
    %808 = vmatpush.bf16.msra.mxu0 %v286
    %809 = vmatmul.bf16.gmra.mxu0 %v787
    %v810 = vpop.f32.mrf.mxu0
    %v811 = vadd.f32 %v621, %v810
    %v812 = vpop.f32.mrf.mxu0
    %813 = vdwg.mxu0
    %814 = vmatpush.bf16.msra.mxu0 %v308
    %815 = vmatpush.bf16.msra.mxu0 %v305
    %816 = vmatpush.bf16.msra.mxu0 %v302
    %817 = vmatpush.bf16.msra.mxu0 %v299
    %818 = vmatpush.bf16.msra.mxu0 %v296
    %819 = vmatpush.bf16.msra.mxu0 %v293
    %820 = vmatpush.bf16.msra.mxu0 %v290
    %821 = vmatpush.bf16.msra.mxu0 %v287
    %822 = vmatmul.bf16.gmra.mxu0 %v787
    %v823 = vpop.f32.mrf.mxu0
    %v824 = vadd.f32 %v622, %v823
    %v825 = vpop.f32.mrf.mxu0
    %826 = vdwg.mxu0
    %827 = vmatpush.bf16.msra.mxu0 %v162
    %828 = vmatpush.bf16.msra.mxu0 %v159
    %829 = vmatpush.bf16.msra.mxu0 %v156
    %830 = vmatpush.bf16.msra.mxu0 %v153
    %831 = vmatpush.bf16.msra.mxu0 %v150
    %832 = vmatpush.bf16.msra.mxu0 %v147
    %833 = vmatpush.bf16.msra.mxu0 %v144
    %834 = vmatpush.bf16.msra.mxu0 %v141
    %835 = vmatmul.bf16.gmra.mxu0 %v787
    %v836 = vpop.f32.mrf.mxu0
    %v837 = vadd.f32 %v503, %v836
    %v838 = vpop.f32.mrf.mxu0
    %839 = vdwg.mxu0
    %840 = vmatpush.bf16.msra.mxu0 %v163
    %841 = vmatpush.bf16.msra.mxu0 %v160
    %842 = vmatpush.bf16.msra.mxu0 %v157
    %843 = vmatpush.bf16.msra.mxu0 %v154
    %844 = vmatpush.bf16.msra.mxu0 %v151
    %845 = vmatpush.bf16.msra.mxu0 %v148
    %846 = vmatpush.bf16.msra.mxu0 %v145
    %847 = vmatpush.bf16.msra.mxu0 %v142
    %848 = vmatmul.bf16.gmra.mxu0 %v787
    %v849 = vpop.f32.mrf.mxu0
    %v850 = vadd.f32 %v504, %v849
    %v851 = vpop.f32.mrf.mxu0
    %852 = vdwg.mxu0
    %853 = vmatpush.bf16.msra.mxu0 %v164
    %854 = vmatpush.bf16.msra.mxu0 %v161
    %855 = vmatpush.bf16.msra.mxu0 %v158
    %856 = vmatpush.bf16.msra.mxu0 %v155
    %857 = vmatpush.bf16.msra.mxu0 %v152
    %858 = vmatpush.bf16.msra.mxu0 %v149
    %859 = vmatpush.bf16.msra.mxu0 %v146
    %860 = vmatpush.bf16.msra.mxu0 %v143
    %861 = vmatmul.bf16.gmra.mxu0 %v787
    %v862 = vpop.f32.mrf.mxu0
    %v863 = vadd.f32 %v505, %v862
    %v864 = vpop.f32.mrf.mxu0
    %865 = vdwg.mxu0
    %v866 = vadd.f32 %v798, %v732
    %v867 = vmul.f32 %v866, 0.5
    %v868 = vtanh.pop %v867
    %v869 = vadd.f32 %v868, 1.0
    %v870 = vmul.f32 %v869, 0.5
    %v871 = vadd.f32 %v811, %v745
    %v872 = vmul.f32 %v871, 0.5
    %v873 = vtanh.pop %v872
    %v874 = vadd.f32 %v873, 1.0
    %v875 = vmul.f32 %v874, 0.5
    %v876 = vmul.f32 %v870, %v758
    %v877 = vadd.f32 %v824, %v876
    %v878 = vtanh.pop %v877
    %v879 = vsub.f32 1.0, %v875
    %v880 = vmul.f32 %v879, %v878
    %v881 = vmul.f32 %v875, %v720
    %v882 = vadd.f32 %v880, %v881
    %v883 = vpack.c.bf16 %v882, %v882
    %884 = vmatpush.bf16.msra.mxu0 %v234
    %885 = vmatpush.bf16.msra.mxu0 %v231
    %886 = vmatpush.bf16.msra.mxu0 %v228
    %887 = vmatpush.bf16.msra.mxu0 %v225
    %888 = vmatpush.bf16.msra.mxu0 %v222
    %889 = vmatpush.bf16.msra.mxu0 %v219
    %890 = vmatpush.bf16.msra.mxu0 %v216
    %891 = vmatpush.bf16.msra.mxu0 %v213
    %892 = vmatmul.bf16.gmra.mxu0 %v883
    %v893 = vpop.f32.mrf.mxu0
    %v894 = vadd.f32 %v550, %v893
    %v895 = vpop.f32.mrf.mxu0
    %896 = vdwg.mxu0
    %897 = vmatpush.bf16.msra.mxu0 %v235
    %898 = vmatpush.bf16.msra.mxu0 %v232
    %899 = vmatpush.bf16.msra.mxu0 %v229
    %900 = vmatpush.bf16.msra.mxu0 %v226
    %901 = vmatpush.bf16.msra.mxu0 %v223
    %902 = vmatpush.bf16.msra.mxu0 %v220
    %903 = vmatpush.bf16.msra.mxu0 %v217
    %904 = vmatpush.bf16.msra.mxu0 %v214
    %905 = vmatmul.bf16.gmra.mxu0 %v883
    %v906 = vpop.f32.mrf.mxu0
    %v907 = vadd.f32 %v551, %v906
    %v908 = vpop.f32.mrf.mxu0
    %909 = vdwg.mxu0
    %910 = vmatpush.bf16.msra.mxu0 %v236
    %911 = vmatpush.bf16.msra.mxu0 %v233
    %912 = vmatpush.bf16.msra.mxu0 %v230
    %913 = vmatpush.bf16.msra.mxu0 %v227
    %914 = vmatpush.bf16.msra.mxu0 %v224
    %915 = vmatpush.bf16.msra.mxu0 %v221
    %916 = vmatpush.bf16.msra.mxu0 %v218
    %917 = vmatpush.bf16.msra.mxu0 %v215
    %918 = vmatmul.bf16.gmra.mxu0 %v883
    %v919 = vpop.f32.mrf.mxu0
    %v920 = vadd.f32 %v552, %v919
    %v921 = vpop.f32.mrf.mxu0
    %922 = vdwg.mxu0
    %v923 = vmax.f32 %v882, 0.0
    %s924 = scalar_lea.vmem [#allocation3], 2
    %925 = vst [vmem:[%s924] sm:$0x3] %v923
    %s926 = scalar_lea.vmem [#allocation2], 12
    %v927 = vld [vmem:[%s926] sm:$0x3f]
    %v928 = vadd.f32 %v927, %v837
    %v929 = vmul.f32 %v928, 0.5
    %v930 = vtanh.pop %v929
    %v931 = vadd.f32 %v930, 1.0
    %v932 = vmul.f32 %v931, 0.5
    %v934 = vrot.slane %v927, 2
    %v936 = vadd.f32 %v934, %v850
    %v937 = vmul.f32 %v936, 0.5
    %v938 = vtanh.pop %v937
    %v939 = vadd.f32 %v938, 1.0
    %v940 = vmul.f32 %v939, 0.5
    %v941 = vmul.f32 %v932, %v863
    %v942 = vrot.slane %v927, 4
    %v944 = vadd.f32 %v942, %v941
    %v945 = vtanh.pop %v944
    %v946 = vsub.f32 1.0, %v940
    %v947 = vmul.f32 %v946, %v945
    %v948 = vmul.f32 %v940, %v786
    %v949 = vadd.f32 %v947, %v948
    %v950 = vpack.c.bf16 %v949, %v949
    %951 = vmatpush.bf16.msra.mxu0 %v306
    %952 = vmatpush.bf16.msra.mxu0 %v303
    %953 = vmatpush.bf16.msra.mxu0 %v300
    %954 = vmatpush.bf16.msra.mxu0 %v297
    %955 = vmatpush.bf16.msra.mxu0 %v294
    %956 = vmatpush.bf16.msra.mxu0 %v291
    %957 = vmatpush.bf16.msra.mxu0 %v288
    %958 = vmatpush.bf16.msra.mxu0 %v285
    %959 = vmatmul.bf16.gmra.mxu0 %v950
    %v960 = vpop.f32.mrf.mxu0
    %v961 = vadd.f32 %v620, %v960
    %v962 = vpop.f32.mrf.mxu0
    %963 = vdwg.mxu0
    %964 = vmatpush.bf16.msra.mxu0 %v307
    %965 = vmatpush.bf16.msra.mxu0 %v304
    %966 = vmatpush.bf16.msra.mxu0 %v301
    %967 = vmatpush.bf16.msra.mxu0 %v298
    %968 = vmatpush.bf16.msra.mxu0 %v295
    %969 = vmatpush.bf16.msra.mxu0 %v292
    %970 = vmatpush.bf16.msra.mxu0 %v289
    %971 = vmatpush.bf16.msra.mxu0 %v286
    %972 = vmatmul.bf16.gmra.mxu0 %v950
    %v973 = vpop.f32.mrf.mxu0
    %v974 = vadd.f32 %v621, %v973
    %v975 = vpop.f32.mrf.mxu0
    %976 = vdwg.mxu0
    %977 = vmatpush.bf16.msra.mxu0 %v308
    %978 = vmatpush.bf16.msra.mxu0 %v305
    %979 = vmatpush.bf16.msra.mxu0 %v302
    %980 = vmatpush.bf16.msra.mxu0 %v299
    %981 = vmatpush.bf16.msra.mxu0 %v296
    %982 = vmatpush.bf16.msra.mxu0 %v293
    %983 = vmatpush.bf16.msra.mxu0 %v290
    %984 = vmatpush.bf16.msra.mxu0 %v287
    %985 = vmatmul.bf16.gmra.mxu0 %v950
    %v986 = vpop.f32.mrf.mxu0
    %v987 = vadd.f32 %v622, %v986
    %v988 = vpop.f32.mrf.mxu0
    %989 = vdwg.mxu0
    %990 = vmatpush.bf16.msra.mxu0 %v162
    %991 = vmatpush.bf16.msra.mxu0 %v159
    %992 = vmatpush.bf16.msra.mxu0 %v156
    %993 = vmatpush.bf16.msra.mxu0 %v153
    %994 = vmatpush.bf16.msra.mxu0 %v150
    %995 = vmatpush.bf16.msra.mxu0 %v147
    %996 = vmatpush.bf16.msra.mxu0 %v144
    %997 = vmatpush.bf16.msra.mxu0 %v141
    %998 = vmatmul.bf16.gmra.mxu0 %v950
    %v999 = vpop.f32.mrf.mxu0
    %v1000 = vadd.f32 %v503, %v999
    %v1001 = vpop.f32.mrf.mxu0
    %1002 = vdwg.mxu0
    %1003 = vmatpush.bf16.msra.mxu0 %v163
    %1004 = vmatpush.bf16.msra.mxu0 %v160
    %1005 = vmatpush.bf16.msra.mxu0 %v157
    %1006 = vmatpush.bf16.msra.mxu0 %v154
    %1007 = vmatpush.bf16.msra.mxu0 %v151
    %1008 = vmatpush.bf16.msra.mxu0 %v148
    %1009 = vmatpush.bf16.msra.mxu0 %v145
    %1010 = vmatpush.bf16.msra.mxu0 %v142
    %1011 = vmatmul.bf16.gmra.mxu0 %v950
    %v1012 = vpop.f32.mrf.mxu0
    %v1013 = vadd.f32 %v504, %v1012
    %v1014 = vpop.f32.mrf.mxu0
    %1015 = vdwg.mxu0
    %1016 = vmatpush.bf16.msra.mxu0 %v164
    %1017 = vmatpush.bf16.msra.mxu0 %v161
    %1018 = vmatpush.bf16.msra.mxu0 %v158
    %1019 = vmatpush.bf16.msra.mxu0 %v155
    %1020 = vmatpush.bf16.msra.mxu0 %v152
    %1021 = vmatpush.bf16.msra.mxu0 %v149
    %1022 = vmatpush.bf16.msra.mxu0 %v146
    %1023 = vmatpush.bf16.msra.mxu0 %v143
    %1024 = vmatmul.bf16.gmra.mxu0 %v950
    %v1025 = vpop.f32.mrf.mxu0
    %v1026 = vadd.f32 %v505, %v1025
    %v1027 = vpop.f32.mrf.mxu0
    %1028 = vdwg.mxu0
    %v1029 = vadd.f32 %v961, %v894
    %v1030 = vmul.f32 %v1029, 0.5
    %v1031 = vtanh.pop %v1030
    %v1032 = vadd.f32 %v1031, 1.0
    %v1033 = vmul.f32 %v1032, 0.5
    %v1034 = vadd.f32 %v974, %v907
    %v1035 = vmul.f32 %v1034, 0.5
    %v1036 = vtanh.pop %v1035
    %v1037 = vadd.f32 %v1036, 1.0
    %v1038 = vmul.f32 %v1037, 0.5
    %v1039 = vmul.f32 %v1033, %v920
    %v1040 = vadd.f32 %v987, %v1039
    %v1041 = vtanh.pop %v1040
    %v1042 = vsub.f32 1.0, %v1038
    %v1043 = vmul.f32 %v1042, %v1041
    %v1044 = vmul.f32 %v1038, %v882
    %v1045 = vadd.f32 %v1043, %v1044
    %v1046 = vpack.c.bf16 %v1045, %v1045
    %1047 = vmatpush.bf16.msra.mxu0 %v234
    %1048 = vmatpush.bf16.msra.mxu0 %v231
    %1049 = vmatpush.bf16.msra.mxu0 %v228
    %1050 = vmatpush.bf16.msra.mxu0 %v225
    %1051 = vmatpush.bf16.msra.mxu0 %v222
    %1052 = vmatpush.bf16.msra.mxu0 %v219
    %1053 = vmatpush.bf16.msra.mxu0 %v216
    %1054 = vmatpush.bf16.msra.mxu0 %v213
    %1055 = vmatmul.bf16.gmra.mxu0 %v1046
    %v1056 = vpop.f32.mrf.mxu0
    %v1057 = vadd.f32 %v550, %v1056
    %v1058 = vpop.f32.mrf.mxu0
    %1059 = vdwg.mxu0
    %1060 = vmatpush.bf16.msra.mxu0 %v235
    %1061 = vmatpush.bf16.msra.mxu0 %v232
    %1062 = vmatpush.bf16.msra.mxu0 %v229
    %1063 = vmatpush.bf16.msra.mxu0 %v226
    %1064 = vmatpush.bf16.msra.mxu0 %v223
    %1065 = vmatpush.bf16.msra.mxu0 %v220
    %1066 = vmatpush.bf16.msra.mxu0 %v217
    %1067 = vmatpush.bf16.msra.mxu0 %v214
    %1068 = vmatmul.bf16.gmra.mxu0 %v1046
    %v1069 = vpop.f32.mrf.mxu0
    %v1070 = vadd.f32 %v551, %v1069
    %v1071 = vpop.f32.mrf.mxu0
    %1072 = vdwg.mxu0
    %1073 = vmatpush.bf16.msra.mxu0 %v236
    %1074 = vmatpush.bf16.msra.mxu0 %v233
    %1075 = vmatpush.bf16.msra.mxu0 %v230
    %1076 = vmatpush.bf16.msra.mxu0 %v227
    %1077 = vmatpush.bf16.msra.mxu0 %v224
    %1078 = vmatpush.bf16.msra.mxu0 %v221
    %1079 = vmatpush.bf16.msra.mxu0 %v218
    %1080 = vmatpush.bf16.msra.mxu0 %v215
    %1081 = vmatmul.bf16.gmra.mxu0 %v1046
    %v1082 = vpop.f32.mrf.mxu0
    %v1083 = vadd.f32 %v552, %v1082
    %v1084 = vpop.f32.mrf.mxu0
    %1085 = vdwg.mxu0
    %v1086 = vmax.f32 %v1045, 0.0
    %s1087 = scalar_lea.vmem [#allocation3], 4
    %1088 = vst [vmem:[%s1087] sm:$0x3] %v1086
    %s1089 = scalar_lea.vmem [#allocation2], 18
    %v1090 = vld [vmem:[%s1089] sm:$0x3f]
    %v1091 = vadd.f32 %v1090, %v1000
    %v1092 = vmul.f32 %v1091, 0.5
    %v1093 = vtanh.pop %v1092
    %v1094 = vadd.f32 %v1093, 1.0
    %v1095 = vmul.f32 %v1094, 0.5
    %v1097 = vrot.slane %v1090, 2
    %v1099 = vadd.f32 %v1097, %v1013
    %v1100 = vmul.f32 %v1099, 0.5
    %v1101 = vtanh.pop %v1100
    %v1102 = vadd.f32 %v1101, 1.0
    %v1103 = vmul.f32 %v1102, 0.5
    %v1104 = vmul.f32 %v1095, %v1026
    %v1105 = vrot.slane %v1090, 4
    %v1107 = vadd.f32 %v1105, %v1104
    %v1108 = vtanh.pop %v1107
    %v1109 = vsub.f32 1.0, %v1103
    %v1110 = vmul.f32 %v1109, %v1108
    %v1111 = vmul.f32 %v1103, %v949
    %v1112 = vadd.f32 %v1110, %v1111
    %v1113 = vpack.c.bf16 %v1112, %v1112
    %1114 = vmatpush.bf16.msra.mxu0 %v306
    %1115 = vmatpush.bf16.msra.mxu0 %v303
    %1116 = vmatpush.bf16.msra.mxu0 %v300
    %1117 = vmatpush.bf16.msra.mxu0 %v297
    %1118 = vmatpush.bf16.msra.mxu0 %v294
    %1119 = vmatpush.bf16.msra.mxu0 %v291
    %1120 = vmatpush.bf16.msra.mxu0 %v288
    %1121 = vmatpush.bf16.msra.mxu0 %v285
    %1122 = vmatmul.bf16.gmra.mxu0 %v1113
    %v1123 = vpop.f32.mrf.mxu0
    %v1124 = vadd.f32 %v620, %v1123
    %v1125 = vpop.f32.mrf.mxu0
    %1126 = vdwg.mxu0
    %1127 = vmatpush.bf16.msra.mxu0 %v307
    %1128 = vmatpush.bf16.msra.mxu0 %v304
    %1129 = vmatpush.bf16.msra.mxu0 %v301
    %1130 = vmatpush.bf16.msra.mxu0 %v298
    %1131 = vmatpush.bf16.msra.mxu0 %v295
    %1132 = vmatpush.bf16.msra.mxu0 %v292
    %1133 = vmatpush.bf16.msra.mxu0 %v289
    %1134 = vmatpush.bf16.msra.mxu0 %v286
    %1135 = vmatmul.bf16.gmra.mxu0 %v1113
    %v1136 = vpop.f32.mrf.mxu0
    %v1137 = vadd.f32 %v621, %v1136
    %v1138 = vpop.f32.mrf.mxu0
    %1139 = vdwg.mxu0
    %1140 = vmatpush.bf16.msra.mxu0 %v308
    %1141 = vmatpush.bf16.msra.mxu0 %v305
    %1142 = vmatpush.bf16.msra.mxu0 %v302
    %1143 = vmatpush.bf16.msra.mxu0 %v299
    %1144 = vmatpush.bf16.msra.mxu0 %v296
    %1145 = vmatpush.bf16.msra.mxu0 %v293
    %1146 = vmatpush.bf16.msra.mxu0 %v290
    %1147 = vmatpush.bf16.msra.mxu0 %v287
    %1148 = vmatmul.bf16.gmra.mxu0 %v1113
    %v1149 = vpop.f32.mrf.mxu0
    %v1150 = vadd.f32 %v622, %v1149
    %v1151 = vpop.f32.mrf.mxu0
    %1152 = vdwg.mxu0
    %1153 = vmatpush.bf16.msra.mxu0 %v162
    %1154 = vmatpush.bf16.msra.mxu0 %v159
    %1155 = vmatpush.bf16.msra.mxu0 %v156
    %1156 = vmatpush.bf16.msra.mxu0 %v153
    %1157 = vmatpush.bf16.msra.mxu0 %v150
    %1158 = vmatpush.bf16.msra.mxu0 %v147
    %1159 = vmatpush.bf16.msra.mxu0 %v144
    %1160 = vmatpush.bf16.msra.mxu0 %v141
    %1161 = vmatmul.bf16.gmra.mxu0 %v1113
    %v1162 = vpop.f32.mrf.mxu0
    %v1163 = vadd.f32 %v503, %v1162
    %v1164 = vpop.f32.mrf.mxu0
    %1165 = vdwg.mxu0
    %1166 = vmatpush.bf16.msra.mxu0 %v163
    %1167 = vmatpush.bf16.msra.mxu0 %v160
    %1168 = vmatpush.bf16.msra.mxu0 %v157
    %1169 = vmatpush.bf16.msra.mxu0 %v154
    %1170 = vmatpush.bf16.msra.mxu0 %v151
    %1171 = vmatpush.bf16.msra.mxu0 %v148
    %1172 = vmatpush.bf16.msra.mxu0 %v145
    %1173 = vmatpush.bf16.msra.mxu0 %v142
    %1174 = vmatmul.bf16.gmra.mxu0 %v1113
    %v1175 = vpop.f32.mrf.mxu0
    %v1176 = vadd.f32 %v504, %v1175
    %v1177 = vpop.f32.mrf.mxu0
    %1178 = vdwg.mxu0
    %1179 = vmatpush.bf16.msra.mxu0 %v164
    %1180 = vmatpush.bf16.msra.mxu0 %v161
    %1181 = vmatpush.bf16.msra.mxu0 %v158
    %1182 = vmatpush.bf16.msra.mxu0 %v155
    %1183 = vmatpush.bf16.msra.mxu0 %v152
    %1184 = vmatpush.bf16.msra.mxu0 %v149
    %1185 = vmatpush.bf16.msra.mxu0 %v146
    %1186 = vmatpush.bf16.msra.mxu0 %v143
    %1187 = vmatmul.bf16.gmra.mxu0 %v1113
    %v1188 = vpop.f32.mrf.mxu0
    %v1189 = vadd.f32 %v505, %v1188
    %v1190 = vpop.f32.mrf.mxu0
    %1191 = vdwg.mxu0
    %v1192 = vadd.f32 %v1124, %v1057
    %v1193 = vmul.f32 %v1192, 0.5
    %v1194 = vtanh.pop %v1193
    %v1195 = vadd.f32 %v1194, 1.0
    %v1196 = vmul.f32 %v1195, 0.5
    %v1197 = vadd.f32 %v1137, %v1070
    %v1198 = vmul.f32 %v1197, 0.5
    %v1199 = vtanh.pop %v1198
    %v1200 = vadd.f32 %v1199, 1.0
    %v1201 = vmul.f32 %v1200, 0.5
    %v1202 = vmul.f32 %v1196, %v1083
    %v1203 = vadd.f32 %v1150, %v1202
    %v1204 = vtanh.pop %v1203
    %v1205 = vsub.f32 1.0, %v1201
    %v1206 = vmul.f32 %v1205, %v1204
    %v1207 = vmul.f32 %v1201, %v1045
    %v1208 = vadd.f32 %v1206, %v1207
    %v1209 = vpack.c.bf16 %v1208, %v1208
    %1210 = vmatpush.bf16.msra.mxu0 %v234
    %1211 = vmatpush.bf16.msra.mxu0 %v231
    %1212 = vmatpush.bf16.msra.mxu0 %v228
    %1213 = vmatpush.bf16.msra.mxu0 %v225
    %1214 = vmatpush.bf16.msra.mxu0 %v222
    %1215 = vmatpush.bf16.msra.mxu0 %v219
    %1216 = vmatpush.bf16.msra.mxu0 %v216
    %1217 = vmatpush.bf16.msra.mxu0 %v213
    %1218 = vmatmul.bf16.gmra.mxu0 %v1209
    %v1219 = vpop.f32.mrf.mxu0
    %v1220 = vadd.f32 %v550, %v1219
    %v1221 = vpop.f32.mrf.mxu0
    %1222 = vdwg.mxu0
    %1223 = vmatpush.bf16.msra.mxu0 %v235
    %1224 = vmatpush.bf16.msra.mxu0 %v232
    %1225 = vmatpush.bf16.msra.mxu0 %v229
    %1226 = vmatpush.bf16.msra.mxu0 %v226
    %1227 = vmatpush.bf16.msra.mxu0 %v223
    %1228 = vmatpush.bf16.msra.mxu0 %v220
    %1229 = vmatpush.bf16.msra.mxu0 %v217
    %1230 = vmatpush.bf16.msra.mxu0 %v214
    %1231 = vmatmul.bf16.gmra.mxu0 %v1209
    %v1232 = vpop.f32.mrf.mxu0
    %v1233 = vadd.f32 %v551, %v1232
    %v1234 = vpop.f32.mrf.mxu0
    %1235 = vdwg.mxu0
    %1236 = vmatpush.bf16.msra.mxu0 %v236
    %1237 = vmatpush.bf16.msra.mxu0 %v233
    %1238 = vmatpush.bf16.msra.mxu0 %v230
    %1239 = vmatpush.bf16.msra.mxu0 %v227
    %1240 = vmatpush.bf16.msra.mxu0 %v224
    %1241 = vmatpush.bf16.msra.mxu0 %v221
    %1242 = vmatpush.bf16.msra.mxu0 %v218
    %1243 = vmatpush.bf16.msra.mxu0 %v215
    %1244 = vmatmul.bf16.gmra.mxu0 %v1209
    %v1245 = vpop.f32.mrf.mxu0
    %v1246 = vadd.f32 %v552, %v1245
    %v1247 = vpop.f32.mrf.mxu0
    %1248 = vdwg.mxu0
    %v1249 = vmax.f32 %v1208, 0.0
    %s1250 = scalar_lea.vmem [#allocation3], 6
    %1251 = vst [vmem:[%s1250] sm:$0x3] %v1249
    %s1252 = scalar_lea.vmem [#allocation2], 24
    %v1253 = vld [vmem:[%s1252] sm:$0x3f]
    %v1254 = vadd.f32 %v1253, %v1163
    %v1255 = vmul.f32 %v1254, 0.5
    %v1256 = vtanh.pop %v1255
    %v1257 = vadd.f32 %v1256, 1.0
    %v1258 = vmul.f32 %v1257, 0.5
    %v1260 = vrot.slane %v1253, 2
    %v1262 = vadd.f32 %v1260, %v1176
    %v1263 = vmul.f32 %v1262, 0.5
    %v1264 = vtanh.pop %v1263
    %v1265 = vadd.f32 %v1264, 1.0
    %v1266 = vmul.f32 %v1265, 0.5
    %v1267 = vmul.f32 %v1258, %v1189
    %v1268 = vrot.slane %v1253, 4
    %v1270 = vadd.f32 %v1268, %v1267
    %v1271 = vtanh.pop %v1270
    %v1272 = vsub.f32 1.0, %v1266
    %v1273 = vmul.f32 %v1272, %v1271
    %v1274 = vmul.f32 %v1266, %v1112
    %v1275 = vadd.f32 %v1273, %v1274
    %v1276 = vpack.c.bf16 %v1275, %v1275
    %1277 = vmatpush.bf16.msra.mxu0 %v306
    %1278 = vmatpush.bf16.msra.mxu0 %v303
    %1279 = vmatpush.bf16.msra.mxu0 %v300
    %1280 = vmatpush.bf16.msra.mxu0 %v297
    %1281 = vmatpush.bf16.msra.mxu0 %v294
    %1282 = vmatpush.bf16.msra.mxu0 %v291
    %1283 = vmatpush.bf16.msra.mxu0 %v288
    %1284 = vmatpush.bf16.msra.mxu0 %v285
    %1285 = vmatmul.bf16.gmra.mxu0 %v1276
    %v1286 = vpop.f32.mrf.mxu0
    %v1287 = vadd.f32 %v620, %v1286
    %v1288 = vpop.f32.mrf.mxu0
    %1289 = vdwg.mxu0
    %1290 = vmatpush.bf16.msra.mxu0 %v307
    %1291 = vmatpush.bf16.msra.mxu0 %v304
    %1292 = vmatpush.bf16.msra.mxu0 %v301
    %1293 = vmatpush.bf16.msra.mxu0 %v298
    %1294 = vmatpush.bf16.msra.mxu0 %v295
    %1295 = vmatpush.bf16.msra.mxu0 %v292
    %1296 = vmatpush.bf16.msra.mxu0 %v289
    %1297 = vmatpush.bf16.msra.mxu0 %v286
    %1298 = vmatmul.bf16.gmra.mxu0 %v1276
    %v1299 = vpop.f32.mrf.mxu0
    %v1300 = vadd.f32 %v621, %v1299
    %v1301 = vpop.f32.mrf.mxu0
    %1302 = vdwg.mxu0
    %1303 = vmatpush.bf16.msra.mxu0 %v308
    %1304 = vmatpush.bf16.msra.mxu0 %v305
    %1305 = vmatpush.bf16.msra.mxu0 %v302
    %1306 = vmatpush.bf16.msra.mxu0 %v299
    %1307 = vmatpush.bf16.msra.mxu0 %v296
    %1308 = vmatpush.bf16.msra.mxu0 %v293
    %1309 = vmatpush.bf16.msra.mxu0 %v290
    %1310 = vmatpush.bf16.msra.mxu0 %v287
    %1311 = vmatmul.bf16.gmra.mxu0 %v1276
    %v1312 = vpop.f32.mrf.mxu0
    %v1313 = vadd.f32 %v622, %v1312
    %v1314 = vpop.f32.mrf.mxu0
    %1315 = vdwg.mxu0
    %1316 = vmatpush.bf16.msra.mxu0 %v162
    %1317 = vmatpush.bf16.msra.mxu0 %v159
    %1318 = vmatpush.bf16.msra.mxu0 %v156
    %1319 = vmatpush.bf16.msra.mxu0 %v153
    %1320 = vmatpush.bf16.msra.mxu0 %v150
    %1321 = vmatpush.bf16.msra.mxu0 %v147
    %1322 = vmatpush.bf16.msra.mxu0 %v144
    %1323 = vmatpush.bf16.msra.mxu0 %v141
    %1324 = vmatmul.bf16.gmra.mxu0 %v1276
    %v1325 = vpop.f32.mrf.mxu0
    %v1326 = vadd.f32 %v503, %v1325
    %v1327 = vpop.f32.mrf.mxu0
    %1328 = vdwg.mxu0
    %1329 = vmatpush.bf16.msra.mxu0 %v163
    %1330 = vmatpush.bf16.msra.mxu0 %v160
    %1331 = vmatpush.bf16.msra.mxu0 %v157
    %1332 = vmatpush.bf16.msra.mxu0 %v154
    %1333 = vmatpush.bf16.msra.mxu0 %v151
    %1334 = vmatpush.bf16.msra.mxu0 %v148
    %1335 = vmatpush.bf16.msra.mxu0 %v145
    %1336 = vmatpush.bf16.msra.mxu0 %v142
    %1337 = vmatmul.bf16.gmra.mxu0 %v1276
    %v1338 = vpop.f32.mrf.mxu0
    %v1339 = vadd.f32 %v504, %v1338
    %v1340 = vpop.f32.mrf.mxu0
    %1341 = vdwg.mxu0
    %1342 = vmatpush.bf16.msra.mxu0 %v164
    %1343 = vmatpush.bf16.msra.mxu0 %v161
    %1344 = vmatpush.bf16.msra.mxu0 %v158
    %1345 = vmatpush.bf16.msra.mxu0 %v155
    %1346 = vmatpush.bf16.msra.mxu0 %v152
    %1347 = vmatpush.bf16.msra.mxu0 %v149
    %1348 = vmatpush.bf16.msra.mxu0 %v146
    %1349 = vmatpush.bf16.msra.mxu0 %v143
    %1350 = vmatmul.bf16.gmra.mxu0 %v1276
    %v1351 = vpop.f32.mrf.mxu0
    %v1352 = vadd.f32 %v505, %v1351
    %v1353 = vpop.f32.mrf.mxu0
    %1354 = vdwg.mxu0
    %v1355 = vadd.f32 %v1287, %v1220
    %v1356 = vmul.f32 %v1355, 0.5
    %v1357 = vtanh.pop %v1356
    %v1358 = vadd.f32 %v1357, 1.0
    %v1359 = vmul.f32 %v1358, 0.5
    %v1360 = vadd.f32 %v1300, %v1233
    %v1361 = vmul.f32 %v1360, 0.5
    %v1362 = vtanh.pop %v1361
    %v1363 = vadd.f32 %v1362, 1.0
    %v1364 = vmul.f32 %v1363, 0.5
    %v1365 = vmul.f32 %v1359, %v1246
    %v1366 = vadd.f32 %v1313, %v1365
    %v1367 = vtanh.pop %v1366
    %v1368 = vsub.f32 1.0, %v1364
    %v1369 = vmul.f32 %v1368, %v1367
    %v1370 = vmul.f32 %v1364, %v1208
    %v1371 = vadd.f32 %v1369, %v1370
    %v1372 = vpack.c.bf16 %v1371, %v1371
    %1373 = vmatpush.bf16.msra.mxu0 %v234
    %1374 = vmatpush.bf16.msra.mxu0 %v231
    %1375 = vmatpush.bf16.msra.mxu0 %v228
    %1376 = vmatpush.bf16.msra.mxu0 %v225
    %1377 = vmatpush.bf16.msra.mxu0 %v222
    %1378 = vmatpush.bf16.msra.mxu0 %v219
    %1379 = vmatpush.bf16.msra.mxu0 %v216
    %1380 = vmatpush.bf16.msra.mxu0 %v213
    %1381 = vmatmul.bf16.gmra.mxu0 %v1372
    %v1382 = vpop.f32.mrf.mxu0
    %v1383 = vadd.f32 %v550, %v1382
    %v1384 = vpop.f32.mrf.mxu0
    %1385 = vdwg.mxu0
    %1386 = vmatpush.bf16.msra.mxu0 %v235
    %1387 = vmatpush.bf16.msra.mxu0 %v232
    %1388 = vmatpush.bf16.msra.mxu0 %v229
    %1389 = vmatpush.bf16.msra.mxu0 %v226
    %1390 = vmatpush.bf16.msra.mxu0 %v223
    %1391 = vmatpush.bf16.msra.mxu0 %v220
    %1392 = vmatpush.bf16.msra.mxu0 %v217
    %1393 = vmatpush.bf16.msra.mxu0 %v214
    %1394 = vmatmul.bf16.gmra.mxu0 %v1372
    %v1395 = vpop.f32.mrf.mxu0
    %v1396 = vadd.f32 %v551, %v1395
    %v1397 = vpop.f32.mrf.mxu0
    %1398 = vdwg.mxu0
    %1399 = vmatpush.bf16.msra.mxu0 %v236
    %1400 = vmatpush.bf16.msra.mxu0 %v233
    %1401 = vmatpush.bf16.msra.mxu0 %v230
    %1402 = vmatpush.bf16.msra.mxu0 %v227
    %1403 = vmatpush.bf16.msra.mxu0 %v224
    %1404 = vmatpush.bf16.msra.mxu0 %v221
    %1405 = vmatpush.bf16.msra.mxu0 %v218
    %1406 = vmatpush.bf16.msra.mxu0 %v215
    %1407 = vmatmul.bf16.gmra.mxu0 %v1372
    %v1408 = vpop.f32.mrf.mxu0
    %v1409 = vadd.f32 %v552, %v1408
    %v1410 = vpop.f32.mrf.mxu0
    %1411 = vdwg.mxu0
    %v1412 = vmax.f32 %v1371, 0.0
    %s1413 = scalar_lea.vmem [#allocation3], 8
    %1414 = vst [vmem:[%s1413] sm:$0x3] %v1412
    %s1415 = scalar_lea.vmem [#allocation2], 30
    %v1416 = vld [vmem:[%s1415] sm:$0x3f]
    %v1417 = vadd.f32 %v1416, %v1326
    %v1418 = vmul.f32 %v1417, 0.5
    %v1419 = vtanh.pop %v1418
    %v1420 = vadd.f32 %v1419, 1.0
    %v1421 = vmul.f32 %v1420, 0.5
    %v1423 = vrot.slane %v1416, 2
    %v1425 = vadd.f32 %v1423, %v1339
    %v1426 = vmul.f32 %v1425, 0.5
    %v1427 = vtanh.pop %v1426
    %v1428 = vadd.f32 %v1427, 1.0
    %v1429 = vmul.f32 %v1428, 0.5
    %v1430 = vmul.f32 %v1421, %v1352
    %v1431 = vrot.slane %v1416, 4
    %v1433 = vadd.f32 %v1431, %v1430
    %v1434 = vtanh.pop %v1433
    %v1435 = vsub.f32 1.0, %v1429
    %v1436 = vmul.f32 %v1435, %v1434
    %v1437 = vmul.f32 %v1429, %v1275
    %v1438 = vadd.f32 %v1436, %v1437
    %v1439 = vpack.c.bf16 %v1438, %v1438
    %1440 = vmatpush.bf16.msra.mxu0 %v306
    %1441 = vmatpush.bf16.msra.mxu0 %v303
    %1442 = vmatpush.bf16.msra.mxu0 %v300
    %1443 = vmatpush.bf16.msra.mxu0 %v297
    %1444 = vmatpush.bf16.msra.mxu0 %v294
    %1445 = vmatpush.bf16.msra.mxu0 %v291
    %1446 = vmatpush.bf16.msra.mxu0 %v288
    %1447 = vmatpush.bf16.msra.mxu0 %v285
    %1448 = vmatmul.bf16.gmra.mxu0 %v1439
    %v1449 = vpop.f32.mrf.mxu0
    %v1450 = vadd.f32 %v620, %v1449
    %v1451 = vpop.f32.mrf.mxu0
    %1452 = vdwg.mxu0
    %1453 = vmatpush.bf16.msra.mxu0 %v307
    %1454 = vmatpush.bf16.msra.mxu0 %v304
    %1455 = vmatpush.bf16.msra.mxu0 %v301
    %1456 = vmatpush.bf16.msra.mxu0 %v298
    %1457 = vmatpush.bf16.msra.mxu0 %v295
    %1458 = vmatpush.bf16.msra.mxu0 %v292
    %1459 = vmatpush.bf16.msra.mxu0 %v289
    %1460 = vmatpush.bf16.msra.mxu0 %v286
    %1461 = vmatmul.bf16.gmra.mxu0 %v1439
    %v1462 = vpop.f32.mrf.mxu0
    %v1463 = vadd.f32 %v621, %v1462
    %v1464 = vpop.f32.mrf.mxu0
    %1465 = vdwg.mxu0
    %1466 = vmatpush.bf16.msra.mxu0 %v308
    %1467 = vmatpush.bf16.msra.mxu0 %v305
    %1468 = vmatpush.bf16.msra.mxu0 %v302
    %1469 = vmatpush.bf16.msra.mxu0 %v299
    %1470 = vmatpush.bf16.msra.mxu0 %v296
    %1471 = vmatpush.bf16.msra.mxu0 %v293
    %1472 = vmatpush.bf16.msra.mxu0 %v290
    %1473 = vmatpush.bf16.msra.mxu0 %v287
    %1474 = vmatmul.bf16.gmra.mxu0 %v1439
    %v1475 = vpop.f32.mrf.mxu0
    %v1476 = vadd.f32 %v622, %v1475
    %v1477 = vpop.f32.mrf.mxu0
    %1478 = vdwg.mxu0
    %1479 = vmatpush.bf16.msra.mxu0 %v162
    %1480 = vmatpush.bf16.msra.mxu0 %v159
    %1481 = vmatpush.bf16.msra.mxu0 %v156
    %1482 = vmatpush.bf16.msra.mxu0 %v153
    %1483 = vmatpush.bf16.msra.mxu0 %v150
    %1484 = vmatpush.bf16.msra.mxu0 %v147
    %1485 = vmatpush.bf16.msra.mxu0 %v144
    %1486 = vmatpush.bf16.msra.mxu0 %v141
    %1487 = vmatmul.bf16.gmra.mxu0 %v1439
    %v1488 = vpop.f32.mrf.mxu0
    %v1489 = vadd.f32 %v503, %v1488
    %v1490 = vpop.f32.mrf.mxu0
    %1491 = vdwg.mxu0
    %1492 = vmatpush.bf16.msra.mxu0 %v163
    %1493 = vmatpush.bf16.msra.mxu0 %v160
    %1494 = vmatpush.bf16.msra.mxu0 %v157
    %1495 = vmatpush.bf16.msra.mxu0 %v154
    %1496 = vmatpush.bf16.msra.mxu0 %v151
    %1497 = vmatpush.bf16.msra.mxu0 %v148
    %1498 = vmatpush.bf16.msra.mxu0 %v145
    %1499 = vmatpush.bf16.msra.mxu0 %v142
    %1500 = vmatmul.bf16.gmra.mxu0 %v1439
    %v1501 = vpop.f32.mrf.mxu0
    %v1502 = vadd.f32 %v504, %v1501
    %v1503 = vpop.f32.mrf.mxu0
    %1504 = vdwg.mxu0
    %1505 = vmatpush.bf16.msra.mxu0 %v164
    %1506 = vmatpush.bf16.msra.mxu0 %v161
    %1507 = vmatpush.bf16.msra.mxu0 %v158
    %1508 = vmatpush.bf16.msra.mxu0 %v155
    %1509 = vmatpush.bf16.msra.mxu0 %v152
    %1510 = vmatpush.bf16.msra.mxu0 %v149
    %1511 = vmatpush.bf16.msra.mxu0 %v146
    %1512 = vmatpush.bf16.msra.mxu0 %v143
    %1513 = vmatmul.bf16.gmra.mxu0 %v1439
    %v1514 = vpop.f32.mrf.mxu0
    %v1515 = vadd.f32 %v505, %v1514
    %v1516 = vpop.f32.mrf.mxu0
    %1517 = vdwg.mxu0
    %v1518 = vadd.f32 %v1450, %v1383
    %v1519 = vmul.f32 %v1518, 0.5
    %v1520 = vtanh.pop %v1519
    %v1521 = vadd.f32 %v1520, 1.0
    %v1522 = vmul.f32 %v1521, 0.5
    %v1523 = vadd.f32 %v1463, %v1396
    %v1524 = vmul.f32 %v1523, 0.5
    %v1525 = vtanh.pop %v1524
    %v1526 = vadd.f32 %v1525, 1.0
    %v1527 = vmul.f32 %v1526, 0.5
    %v1528 = vmul.f32 %v1522, %v1409
    %v1529 = vadd.f32 %v1476, %v1528
    %v1530 = vtanh.pop %v1529
    %v1531 = vsub.f32 1.0, %v1527
    %v1532 = vmul.f32 %v1531, %v1530
    %v1533 = vmul.f32 %v1527, %v1371
    %v1534 = vadd.f32 %v1532, %v1533
    %v1535 = vpack.c.bf16 %v1534, %v1534
    %1536 = vmatpush.bf16.msra.mxu0 %v234
    %1537 = vmatpush.bf16.msra.mxu0 %v231
    %1538 = vmatpush.bf16.msra.mxu0 %v228
    %1539 = vmatpush.bf16.msra.mxu0 %v225
    %1540 = vmatpush.bf16.msra.mxu0 %v222
    %1541 = vmatpush.bf16.msra.mxu0 %v219
    %1542 = vmatpush.bf16.msra.mxu0 %v216
    %1543 = vmatpush.bf16.msra.mxu0 %v213
    %1544 = vmatmul.bf16.gmra.mxu0 %v1535
    %v1545 = vpop.f32.mrf.mxu0
    %v1546 = vadd.f32 %v550, %v1545
    %v1547 = vpop.f32.mrf.mxu0
    %1548 = vdwg.mxu0
    %1549 = vmatpush.bf16.msra.mxu0 %v235
    %1550 = vmatpush.bf16.msra.mxu0 %v232
    %1551 = vmatpush.bf16.msra.mxu0 %v229
    %1552 = vmatpush.bf16.msra.mxu0 %v226
    %1553 = vmatpush.bf16.msra.mxu0 %v223
    %1554 = vmatpush.bf16.msra.mxu0 %v220
    %1555 = vmatpush.bf16.msra.mxu0 %v217
    %1556 = vmatpush.bf16.msra.mxu0 %v214
    %1557 = vmatmul.bf16.gmra.mxu0 %v1535
    %v1558 = vpop.f32.mrf.mxu0
    %v1559 = vadd.f32 %v551, %v1558
    %v1560 = vpop.f32.mrf.mxu0
    %1561 = vdwg.mxu0
    %1562 = vmatpush.bf16.msra.mxu0 %v236
    %1563 = vmatpush.bf16.msra.mxu0 %v233
    %1564 = vmatpush.bf16.msra.mxu0 %v230
    %1565 = vmatpush.bf16.msra.mxu0 %v227
    %1566 = vmatpush.bf16.msra.mxu0 %v224
    %1567 = vmatpush.bf16.msra.mxu0 %v221
    %1568 = vmatpush.bf16.msra.mxu0 %v218
    %1569 = vmatpush.bf16.msra.mxu0 %v215
    %1570 = vmatmul.bf16.gmra.mxu0 %v1535
    %v1571 = vpop.f32.mrf.mxu0
    %v1572 = vadd.f32 %v552, %v1571
    %v1573 = vpop.f32.mrf.mxu0
    %1574 = vdwg.mxu0
    %v1575 = vmax.f32 %v1534, 0.0
    %s1576 = scalar_lea.vmem [#allocation3], 10
    %1577 = vst [vmem:[%s1576] sm:$0x3] %v1575
    %s1578 = scalar_lea.vmem [#allocation2], 36
    %v1579 = vld [vmem:[%s1578] sm:$0x3f]
    %v1580 = vadd.f32 %v1579, %v1489
    %v1581 = vmul.f32 %v1580, 0.5
    %v1582 = vtanh.pop %v1581
    %v1583 = vadd.f32 %v1582, 1.0
    %v1584 = vmul.f32 %v1583, 0.5
    %v1586 = vrot.slane %v1579, 2
    %v1588 = vadd.f32 %v1586, %v1502
    %v1589 = vmul.f32 %v1588, 0.5
    %v1590 = vtanh.pop %v1589
    %v1591 = vadd.f32 %v1590, 1.0
    %v1592 = vmul.f32 %v1591, 0.5
    %v1593 = vmul.f32 %v1584, %v1515
    %v1594 = vrot.slane %v1579, 4
    %v1596 = vadd.f32 %v1594, %v1593
    %v1597 = vtanh.pop %v1596
    %v1598 = vsub.f32 1.0, %v1592
    %v1599 = vmul.f32 %v1598, %v1597
    %v1600 = vmul.f32 %v1592, %v1438
    %v1601 = vadd.f32 %v1599, %v1600
    %v1602 = vpack.c.bf16 %v1601, %v1601
    %1603 = vmatpush.bf16.msra.mxu0 %v306
    %1604 = vmatpush.bf16.msra.mxu0 %v303
    %1605 = vmatpush.bf16.msra.mxu0 %v300
    %1606 = vmatpush.bf16.msra.mxu0 %v297
    %1607 = vmatpush.bf16.msra.mxu0 %v294
    %1608 = vmatpush.bf16.msra.mxu0 %v291
    %1609 = vmatpush.bf16.msra.mxu0 %v288
    %1610 = vmatpush.bf16.msra.mxu0 %v285
    %1611 = vmatmul.bf16.gmra.mxu0 %v1602
    %v1612 = vpop.f32.mrf.mxu0
    %v1613 = vadd.f32 %v620, %v1612
    %v1614 = vpop.f32.mrf.mxu0
    %1615 = vdwg.mxu0
    %1616 = vmatpush.bf16.msra.mxu0 %v307
    %1617 = vmatpush.bf16.msra.mxu0 %v304
    %1618 = vmatpush.bf16.msra.mxu0 %v301
    %1619 = vmatpush.bf16.msra.mxu0 %v298
    %1620 = vmatpush.bf16.msra.mxu0 %v295
    %1621 = vmatpush.bf16.msra.mxu0 %v292
    %1622 = vmatpush.bf16.msra.mxu0 %v289
    %1623 = vmatpush.bf16.msra.mxu0 %v286
    %1624 = vmatmul.bf16.gmra.mxu0 %v1602
    %v1625 = vpop.f32.mrf.mxu0
    %v1626 = vadd.f32 %v621, %v1625
    %v1627 = vpop.f32.mrf.mxu0
    %1628 = vdwg.mxu0
    %1629 = vmatpush.bf16.msra.mxu0 %v308
    %1630 = vmatpush.bf16.msra.mxu0 %v305
    %1631 = vmatpush.bf16.msra.mxu0 %v302
    %1632 = vmatpush.bf16.msra.mxu0 %v299
    %1633 = vmatpush.bf16.msra.mxu0 %v296
    %1634 = vmatpush.bf16.msra.mxu0 %v293
    %1635 = vmatpush.bf16.msra.mxu0 %v290
    %1636 = vmatpush.bf16.msra.mxu0 %v287
    %1637 = vmatmul.bf16.gmra.mxu0 %v1602
    %v1638 = vpop.f32.mrf.mxu0
    %v1639 = vadd.f32 %v622, %v1638
    %v1640 = vpop.f32.mrf.mxu0
    %1641 = vdwg.mxu0
    %1642 = vmatpush.bf16.msra.mxu0 %v162
    %1643 = vmatpush.bf16.msra.mxu0 %v159
    %1644 = vmatpush.bf16.msra.mxu0 %v156
    %1645 = vmatpush.bf16.msra.mxu0 %v153
    %1646 = vmatpush.bf16.msra.mxu0 %v150
    %1647 = vmatpush.bf16.msra.mxu0 %v147
    %1648 = vmatpush.bf16.msra.mxu0 %v144
    %1649 = vmatpush.bf16.msra.mxu0 %v141
    %1650 = vmatmul.bf16.gmra.mxu0 %v1602
    %v1651 = vpop.f32.mrf.mxu0
    %v1652 = vadd.f32 %v503, %v1651
    %v1653 = vpop.f32.mrf.mxu0
    %1654 = vdwg.mxu0
    %1655 = vmatpush.bf16.msra.mxu0 %v163
    %1656 = vmatpush.bf16.msra.mxu0 %v160
    %1657 = vmatpush.bf16.msra.mxu0 %v157
    %1658 = vmatpush.bf16.msra.mxu0 %v154
    %1659 = vmatpush.bf16.msra.mxu0 %v151
    %1660 = vmatpush.bf16.msra.mxu0 %v148
    %1661 = vmatpush.bf16.msra.mxu0 %v145
    %1662 = vmatpush.bf16.msra.mxu0 %v142
    %1663 = vmatmul.bf16.gmra.mxu0 %v1602
    %v1664 = vpop.f32.mrf.mxu0
    %v1665 = vadd.f32 %v504, %v1664
    %v1666 = vpop.f32.mrf.mxu0
    %1667 = vdwg.mxu0
    %1668 = vmatpush.bf16.msra.mxu0 %v164
    %1669 = vmatpush.bf16.msra.mxu0 %v161
    %1670 = vmatpush.bf16.msra.mxu0 %v158
    %1671 = vmatpush.bf16.msra.mxu0 %v155
    %1672 = vmatpush.bf16.msra.mxu0 %v152
    %1673 = vmatpush.bf16.msra.mxu0 %v149
    %1674 = vmatpush.bf16.msra.mxu0 %v146
    %1675 = vmatpush.bf16.msra.mxu0 %v143
    %1676 = vmatmul.bf16.gmra.mxu0 %v1602
    %v1677 = vpop.f32.mrf.mxu0
    %v1678 = vadd.f32 %v505, %v1677
    %v1679 = vpop.f32.mrf.mxu0
    %1680 = vdwg.mxu0
    %v1681 = vadd.f32 %v1613, %v1546
    %v1682 = vmul.f32 %v1681, 0.5
    %v1683 = vtanh.pop %v1682
    %v1684 = vadd.f32 %v1683, 1.0
    %v1685 = vmul.f32 %v1684, 0.5
    %v1686 = vadd.f32 %v1626, %v1559
    %v1687 = vmul.f32 %v1686, 0.5
    %v1688 = vtanh.pop %v1687
    %v1689 = vadd.f32 %v1688, 1.0
    %v1690 = vmul.f32 %v1689, 0.5
    %v1691 = vmul.f32 %v1685, %v1572
    %v1692 = vadd.f32 %v1639, %v1691
    %v1693 = vtanh.pop %v1692
    %v1694 = vsub.f32 1.0, %v1690
    %v1695 = vmul.f32 %v1694, %v1693
    %v1696 = vmul.f32 %v1690, %v1534
    %v1697 = vadd.f32 %v1695, %v1696
    %v1698 = vpack.c.bf16 %v1697, %v1697
    %1699 = vmatpush.bf16.msra.mxu0 %v234
    %1700 = vmatpush.bf16.msra.mxu0 %v231
    %1701 = vmatpush.bf16.msra.mxu0 %v228
    %1702 = vmatpush.bf16.msra.mxu0 %v225
    %1703 = vmatpush.bf16.msra.mxu0 %v222
    %1704 = vmatpush.bf16.msra.mxu0 %v219
    %1705 = vmatpush.bf16.msra.mxu0 %v216
    %1706 = vmatpush.bf16.msra.mxu0 %v213
    %1707 = vmatmul.bf16.gmra.mxu0 %v1698
    %v1708 = vpop.f32.mrf.mxu0
    %v1709 = vadd.f32 %v550, %v1708
    %v1710 = vpop.f32.mrf.mxu0
    %1711 = vdwg.mxu0
    %1712 = vmatpush.bf16.msra.mxu0 %v235
    %1713 = vmatpush.bf16.msra.mxu0 %v232
    %1714 = vmatpush.bf16.msra.mxu0 %v229
    %1715 = vmatpush.bf16.msra.mxu0 %v226
    %1716 = vmatpush.bf16.msra.mxu0 %v223
    %1717 = vmatpush.bf16.msra.mxu0 %v220
    %1718 = vmatpush.bf16.msra.mxu0 %v217
    %1719 = vmatpush.bf16.msra.mxu0 %v214
    %1720 = vmatmul.bf16.gmra.mxu0 %v1698
    %v1721 = vpop.f32.mrf.mxu0
    %v1722 = vadd.f32 %v551, %v1721
    %v1723 = vpop.f32.mrf.mxu0
    %1724 = vdwg.mxu0
    %1725 = vmatpush.bf16.msra.mxu0 %v236
    %1726 = vmatpush.bf16.msra.mxu0 %v233
    %1727 = vmatpush.bf16.msra.mxu0 %v230
    %1728 = vmatpush.bf16.msra.mxu0 %v227
    %1729 = vmatpush.bf16.msra.mxu0 %v224
    %1730 = vmatpush.bf16.msra.mxu0 %v221
    %1731 = vmatpush.bf16.msra.mxu0 %v218
    %1732 = vmatpush.bf16.msra.mxu0 %v215
    %1733 = vmatmul.bf16.gmra.mxu0 %v1698
    %v1734 = vpop.f32.mrf.mxu0
    %v1735 = vadd.f32 %v552, %v1734
    %v1736 = vpop.f32.mrf.mxu0
    %1737 = vdwg.mxu0
    %v1738 = vmax.f32 %v1697, 0.0
    %s1739 = scalar_lea.vmem [#allocation3], 12
    %1740 = vst [vmem:[%s1739] sm:$0x3] %v1738
    %s1741 = scalar_lea.vmem [#allocation2], 42
    %v1742 = vld [vmem:[%s1741] sm:$0x3f]
    %v1743 = vadd.f32 %v1742, %v1652
    %v1744 = vmul.f32 %v1743, 0.5
    %v1745 = vtanh.pop %v1744
    %v1746 = vadd.f32 %v1745, 1.0
    %v1747 = vmul.f32 %v1746, 0.5
    %v1749 = vrot.slane %v1742, 2
    %v1751 = vadd.f32 %v1749, %v1665
    %v1752 = vmul.f32 %v1751, 0.5
    %v1753 = vtanh.pop %v1752
    %v1754 = vadd.f32 %v1753, 1.0
    %v1755 = vmul.f32 %v1754, 0.5
    %v1756 = vmul.f32 %v1747, %v1678
    %v1757 = vrot.slane %v1742, 4
    %v1759 = vadd.f32 %v1757, %v1756
    %v1760 = vtanh.pop %v1759
    %v1761 = vsub.f32 1.0, %v1755
    %v1762 = vmul.f32 %v1761, %v1760
    %v1763 = vmul.f32 %v1755, %v1601
    %v1764 = vadd.f32 %v1762, %v1763
    %v1765 = vpack.c.bf16 %v1764, %v1764
    %1766 = vmatpush.bf16.msra.mxu0 %v306
    %1767 = vmatpush.bf16.msra.mxu0 %v303
    %1768 = vmatpush.bf16.msra.mxu0 %v300
    %1769 = vmatpush.bf16.msra.mxu0 %v297
    %1770 = vmatpush.bf16.msra.mxu0 %v294
    %1771 = vmatpush.bf16.msra.mxu0 %v291
    %1772 = vmatpush.bf16.msra.mxu0 %v288
    %1773 = vmatpush.bf16.msra.mxu0 %v285
    %1774 = vmatmul.bf16.gmra.mxu0 %v1765
    %v1775 = vpop.f32.mrf.mxu0
    %v1776 = vadd.f32 %v620, %v1775
    %v1777 = vpop.f32.mrf.mxu0
    %1778 = vdwg.mxu0
    %1779 = vmatpush.bf16.msra.mxu0 %v307
    %1780 = vmatpush.bf16.msra.mxu0 %v304
    %1781 = vmatpush.bf16.msra.mxu0 %v301
    %1782 = vmatpush.bf16.msra.mxu0 %v298
    %1783 = vmatpush.bf16.msra.mxu0 %v295
    %1784 = vmatpush.bf16.msra.mxu0 %v292
    %1785 = vmatpush.bf16.msra.mxu0 %v289
    %1786 = vmatpush.bf16.msra.mxu0 %v286
    %1787 = vmatmul.bf16.gmra.mxu0 %v1765
    %v1788 = vpop.f32.mrf.mxu0
    %v1789 = vadd.f32 %v621, %v1788
    %v1790 = vpop.f32.mrf.mxu0
    %1791 = vdwg.mxu0
    %1792 = vmatpush.bf16.msra.mxu0 %v308
    %1793 = vmatpush.bf16.msra.mxu0 %v305
    %1794 = vmatpush.bf16.msra.mxu0 %v302
    %1795 = vmatpush.bf16.msra.mxu0 %v299
    %1796 = vmatpush.bf16.msra.mxu0 %v296
    %1797 = vmatpush.bf16.msra.mxu0 %v293
    %1798 = vmatpush.bf16.msra.mxu0 %v290
    %1799 = vmatpush.bf16.msra.mxu0 %v287
    %1800 = vmatmul.bf16.gmra.mxu0 %v1765
    %v1801 = vpop.f32.mrf.mxu0
    %v1802 = vadd.f32 %v622, %v1801
    %v1803 = vpop.f32.mrf.mxu0
    %1804 = vdwg.mxu0
    %v1805 = vadd.f32 %v1776, %v1709
    %v1806 = vmul.f32 %v1805, 0.5
    %v1807 = vtanh.pop %v1806
    %v1808 = vadd.f32 %v1807, 1.0
    %v1809 = vmul.f32 %v1808, 0.5
    %v1810 = vadd.f32 %v1789, %v1722
    %v1811 = vmul.f32 %v1810, 0.5
    %v1812 = vtanh.pop %v1811
    %v1813 = vadd.f32 %v1812, 1.0
    %v1814 = vmul.f32 %v1813, 0.5
    %v1815 = vmul.f32 %v1809, %v1735
    %v1816 = vadd.f32 %v1802, %v1815
    %v1817 = vtanh.pop %v1816
    %v1818 = vsub.f32 1.0, %v1814
    %v1819 = vmul.f32 %v1818, %v1817
    %v1820 = vmul.f32 %v1814, %v1697
    %v1821 = vadd.f32 %v1819, %v1820
    %v1822 = vmax.f32 %v1821, 0.0
    %s1823 = scalar_lea.vmem [#allocation3], 14
    %1824 = vst [vmem:[%s1823] sm:$0x3] %v1822
    %1825 = vst [vmem:[#allocation11] sm:$0x3] %v1764
    %s1826 = scalar_lea.vmem [#allocation11], 2
    %1827 = vst [vmem:[%s1826] sm:$0x3] %v1821
    %v1828 = vld [vmem:[#allocation3] sm:$0x3]
    %v1829 = vld [vmem:[#allocation3 + $0x2] sm:$0x3]
    %v1830 = vld [vmem:[#allocation3 + $0x4] sm:$0x3]
    %v1831 = vld [vmem:[#allocation3 + $0x6] sm:$0x3]
    %v1832 = vld [vmem:[#allocation3 + $0x8] sm:$0x3]
    %v1833 = vld [vmem:[#allocation3 + $0xa] sm:$0x3]
    %v1834 = vld [vmem:[#allocation3 + $0xc] sm:$0x3]
    %v1835 = vld [vmem:[#allocation3 + $0xe] sm:$0x3]
    %v1836 = vld [vmem:[%s10] sm:$0x1]
    %v1838 = vperm.slane %v1836, 0
    %v1840 = vmul.f32 %v1828, %v1838
    %v1841 = vmul.f32 %v1829, %v1838
    %v1842 = vmul.f32 %v1830, %v1838
    %v1843 = vmul.f32 %v1831, %v1838
    %v1844 = vmul.f32 %v1832, %v1838
    %v1845 = vmul.f32 %v1833, %v1838
    %v1846 = vmul.f32 %v1834, %v1838
    %v1847 = vmul.f32 %v1835, %v1838
    %v1848 = vsel %vm464, %v1840, 0.0
    %1849 = vadd.xlane.f32.xlu0 %v1848
    %v1850 = vpop.xlane.xlu0 %1849
    %v1851 = vsel %vm464, %v1841, 0.0
    %1852 = vadd.xlane.f32.xlu0 %v1851
    %v1853 = vpop.xlane.xlu0 %1852
    %v1854 = vsel %vm464, %v1842, 0.0
    %1855 = vadd.xlane.f32.xlu0 %v1854
    %v1856 = vpop.xlane.xlu0 %1855
    %v1857 = vsel %vm464, %v1843, 0.0
    %1858 = vadd.xlane.f32.xlu0 %v1857
    %v1859 = vpop.xlane.xlu0 %1858
    %v1860 = vsel %vm464, %v1844, 0.0
    %1861 = vadd.xlane.f32.xlu0 %v1860
    %v1862 = vpop.xlane.xlu0 %1861
    %v1863 = vsel %vm464, %v1845, 0.0
    %1864 = vadd.xlane.f32.xlu0 %v1863
    %v1865 = vpop.xlane.xlu0 %1864
    %v1866 = vsel %vm464, %v1846, 0.0
    %1867 = vadd.xlane.f32.xlu0 %v1866
    %v1868 = vpop.xlane.xlu0 %1867
    %v1869 = vsel %vm464, %v1847, 0.0
    %1870 = vadd.xlane.f32.xlu0 %v1869
    %v1871 = vpop.xlane.xlu0 %1870
    %v1872 = vld [vmem:[#allocation4] sm:$0x1]
    %v1874 = vperm.slane %v1872, 0
    %v1876 = vadd.f32 %v1850, %v1874
    %v1877 = vadd.f32 %v1853, %v1874
    %v1878 = vadd.f32 %v1856, %v1874
    %v1879 = vadd.f32 %v1859, %v1874
    %v1880 = vadd.f32 %v1862, %v1874
    %v1881 = vadd.f32 %v1865, %v1874
    %v1882 = vadd.f32 %v1868, %v1874
    %v1883 = vadd.f32 %v1871, %v1874
    %vm1884 = vcmask 1024
    %1885 = vst.msk [vmem:[%s12] sm:$0x3] %vm1884, %v1876
    %1886 = vst.msk [vmem:[%s12 + $0x2] sm:$0x3] %vm1884, %v1877
    %1887 = vst.msk [vmem:[%s12 + $0x4] sm:$0x3] %vm1884, %v1878
    %1888 = vst.msk [vmem:[%s12 + $0x6] sm:$0x3] %vm1884, %v1879
    %1889 = vst.msk [vmem:[%s12 + $0x8] sm:$0x3] %vm1884, %v1880
    %1890 = vst.msk [vmem:[%s12 + $0xa] sm:$0x3] %vm1884, %v1881
    %1891 = vst.msk [vmem:[%s12 + $0xc] sm:$0x3] %vm1884, %v1882
    %1892 = vst.msk [vmem:[%s12 + $0xe] sm:$0x3] %vm1884, %v1883
    // Predicated region
    $region62: #{tpu_custom_call.1} parent=1 // pred_check
      _
    $region63: #{tpu_custom_call.1} parent=1 // pred_check_branch
      %1894 = sbr.rel (0) target = $region65
    $region64: #{tpu_custom_call.1} parent=1 // pred_region
      _
    $region65: #{tpu_custom_call.1} parent=1 // pred_fallthru
      _
    // Predicated region
    $region66: #{tpu_custom_call.1} parent=1 // pred_check
      _
    $region67: #{tpu_custom_call.1} parent=1 // pred_check_branch
      %1896 = sbr.rel (0) target = $region69
    $region68: #{tpu_custom_call.1} parent=1 // pred_region
      %1898 = vsyncadd [#allocation7], 0
      %s1899 = sshll.u32 [#allocation11], 4
      %s1900 = int_to_ptr.vmem [resolvable:$true] %s1899
      %s1901 = sshll.u32 %s13, 4
      %s1902 = int_to_ptr.hbm [resolvable:$true] %s1901
      %1907 = dma.vmem_to_hbm [thread:$0]  %s1900, 64, %s1902, [#allocation7], 32, 32, 2
    $region69: #{tpu_custom_call.1} parent=1 // pred_fallthru
      _
    // Predicated region
    $region70: #{tpu_custom_call.1} parent=1 // pred_check
      _
    $region71: #{tpu_custom_call.1} parent=1 // pred_check_branch
      %1909 = sbr.rel (0) target = $region73
    $region72: #{tpu_custom_call.1} parent=1 // pred_region
      _
    $region73: #{tpu_custom_call.1} parent=1 // pred_fallthru
      _
    // Predicated region
    $region74: #{tpu_custom_call.1} parent=1 // pred_check
      _
    $region75: #{tpu_custom_call.1} parent=1 // pred_check_branch
      %1911 = sbr.rel (0) target = $region77
    $region76: #{tpu_custom_call.1} parent=1 // pred_region
      %1913 = dma.done [#allocation7], 64
    $region77: #{tpu_custom_call.1} parent=1 // pred_fallthru
      _
    %1914 = vsyncpa [#allocation6], 1
    %1915 = vsyncpa [#allocation9], 1
    %1916 = vsyncpa [#allocation7], 1

</llo_original>
